<compile_context>
chip_gen: v7x
topology: tpu7x:2x2x1
jax: 0.10.0
libtpu: 0.0.40
codegen_flags: <defaults>
</compile_context>

<pallas_src>
import functools

import jax
import jax.numpy as jnp
from jax.experimental import pallas as pl
from jax.experimental.pallas import tpu as pltpu


def _pick_strip_rows(H, W):
    """Largest divisor of H such that strip_rows * W <= 128 (final-conv M-strip)."""
    target = max(1, 128 // max(W, 1))
    best = 1
    for cand in range(1, min(H, target) + 1):
        if H % cand == 0:
            best = cand
    return best


def _fused_head_kernel(x_ref, wh_ref, bh_ref, wo_ref, bo_ref, o_ref, im_ref,
                       *, H, W, C, n_hidden, strip_rows):
    """One batch element per grid step; all conv layers chained in VMEM.

    x_ref:  (1, H, W, C)           bf16 input tile
    wh_ref: (n_hidden*3, 3C, C)    bf16 hidden weights, [layer*3+dy][dx*C+cin][cout]
    bh_ref: (n_hidden, 1, C)       f32 hidden biases
    wo_ref: (3, 3C, Cout_pad)      bf16 output weights (lane padded)
    bo_ref: (1, Cout_pad)          f32 output bias (lane padded)
    o_ref:  (1, H, W, Cout_pad)    f32 output tile (lane dense)
    im_ref: (H+2, W, 3C)           bf16 scratch: per padded row, the 3 dx taps
                                   packed along channels (partial im2col).
    """
    KC = 3 * C
    cout_pad = o_ref.shape[-1]
    n_strips = H // strip_rows
    dt = im_ref.dtype

    # ---- halo zeroing: only 2 rows + 2 boundary columns, every step --------
    im_ref[pl.ds(0, 1), :, :] = jnp.zeros((1, W, KC), dt)          # padded row 0
    im_ref[pl.ds(H + 1, 1), :, :] = jnp.zeros((1, W, KC), dt)      # padded row H+1
    # col 0 of the dx=0 block and col W-1 of the dx=2 block stay zero forever.
    im_ref[pl.ds(1, H), pl.ds(0, 1), pl.ds(0, C)] = jnp.zeros((H, 1, C), dt)
    im_ref[pl.ds(1, H), pl.ds(W - 1, 1), pl.ds(2 * C, C)] = jnp.zeros((H, 1, C), dt)

    def write_packed(act):
        """Store an (H, W, C) activation as packed dx taps into rows 1..H."""
        # dx = 1 (center tap): aligned, full-width store.
        im_ref[pl.ds(1, H), :, pl.ds(C, C)] = act
        # dx = 0 tap: im[y, j, 0:C] = act[y-1, j-1]   (j >= 1; col 0 stays 0).
        im_ref[pl.ds(1, H), pl.ds(1, W - 1), pl.ds(0, C)] = act[:, : W - 1, :]
        # dx = 2 tap: im[y, j, 2C:3C] = act[y-1, j+1] (j <= W-2; col W-1 stays 0).
        im_ref[pl.ds(1, H), pl.ds(0, W - 1), pl.ds(2 * C, C)] = act[:, 1:, :]

    def conv3x3(row0, nrows, w_of_dy, cout):
        """3x3 conv over output rows [row0, row0+nrows): 3 K=3C MXU dots in a
        single linear accumulation chain."""
        acc = jnp.zeros((nrows * W, cout), jnp.float32)
        for dy in range(3):  # dy slice = leading-axis address offset (cheap)
            patch = im_ref[pl.ds(row0 + dy, nrows), :, :].reshape(nrows * W, KC)
            acc = acc + jnp.dot(patch, w_of_dy(dy),
                                preferred_element_type=jnp.float32)
        return acc

    # ---- stage the input into the packed scratch ---------------------------
    write_packed(x_ref[0])

    # ---- hidden conv + ReLU layers (dynamic weight indexing) ---------------
    @pl.loop(0, n_hidden)
    def _(layer):
        acc = conv3x3(0, H, lambda dy: wh_ref[layer * 3 + dy], C)
        act = jnp.maximum(acc + bh_ref[layer], 0.0)        # f32 bias + ReLU
        write_packed(act.astype(dt).reshape(H, W, C))

    # ---- final regression conv (no ReLU), M-strips, lane-dense store -------
    @pl.loop(0, n_strips, unroll=True)
    def _(s):
        r0 = s * strip_rows
        acc = conv3x3(r0, strip_rows, lambda dy: wo_ref[dy], cout_pad)
        acc = acc + bo_ref[...]
        o_ref[pl.ds(0, 1), pl.ds(r0, strip_rows), :, :] = (
            acc.reshape(1, strip_rows, W, cout_pad).astype(o_ref.dtype))


def _retina_head_pallas(x_nhwc, w_hidden, b_hidden, w_out, b_out):
    """Fused head.  x_nhwc: (N,H,W,C) bf16; returns (N,H,W,Cout_pad) f32."""
    N, H, W, C = x_nhwc.shape
    n_hidden = w_hidden.shape[0] // 3
    cout_pad = w_out.shape[-1]
    strip_rows = _pick_strip_rows(H, W)

    kernel = functools.partial(_fused_head_kernel, H=H, W=W, C=C,
                               n_hidden=n_hidden, strip_rows=strip_rows)

    flops = 2 * N * H * W * 9 * C * (n_hidden * C + cout_pad)
    bytes_accessed = int(
        x_nhwc.size * x_nhwc.dtype.itemsize
        + w_hidden.size * w_hidden.dtype.itemsize
        + b_hidden.size * b_hidden.dtype.itemsize
        + w_out.size * w_out.dtype.itemsize
        + b_out.size * b_out.dtype.itemsize
        + N * H * W * cout_pad * 4)

    return pl.pallas_call(
        kernel,
        out_shape=jax.ShapeDtypeStruct((N, H, W, cout_pad), jnp.float32),
        grid_spec=pltpu.PrefetchScalarGridSpec(
            num_scalar_prefetch=0,
            grid=(N,),
            in_specs=[
                pl.BlockSpec((1, H, W, C), lambda n: (n, 0, 0, 0)),
                pl.BlockSpec(w_hidden.shape, lambda n: (0, 0, 0)),
                pl.BlockSpec(b_hidden.shape, lambda n: (0, 0, 0)),
                pl.BlockSpec(w_out.shape, lambda n: (0, 0, 0)),
                pl.BlockSpec(b_out.shape, lambda n: (0, 0)),
            ],
            out_specs=pl.BlockSpec((1, H, W, cout_pad), lambda n: (n, 0, 0, 0)),
            scratch_shapes=[pltpu.VMEM((H + 2, W, 3 * C), jnp.bfloat16)],
        ),
        compiler_params=pltpu.CompilerParams(
            dimension_semantics=("parallel",),
            vmem_limit_bytes=64 * 1024 * 1024),
        cost_estimate=pl.CostEstimate(
            flops=flops, transcendentals=0, bytes_accessed=bytes_accessed),
    )(x_nhwc, w_hidden, b_hidden, w_out, b_out)


def init_retina_reg_head_params(key, inplanes, num_anchors, num_layers=4):
    """Synthetic init mirroring the PyTorch module: weights ~ N(0, 0.01),
    biases = 0.  Weights are stored tap-major (9, Cin, Cout), i.e. the torch
    (Cout, Cin, 3, 3) tensor permuted to (ky, kx, Cin, Cout) and flattened."""
    keys = jax.random.split(key, num_layers + 1)
    w_hidden = jnp.stack([
        0.01 * jax.random.normal(keys[i], (9, inplanes, inplanes),
                                 dtype=jnp.float32)
        for i in range(num_layers)])
    b_hidden = jnp.zeros((num_layers, 1, inplanes), dtype=jnp.float32)
    cout = num_anchors * 4
    w_out = 0.01 * jax.random.normal(keys[num_layers], (9, inplanes, cout),
                                     dtype=jnp.float32)
    b_out = jnp.zeros((1, cout), dtype=jnp.float32)
    return (w_hidden, b_hidden, w_out, b_out)


def retina_reg_head_forward(x_nchw, params):
    """Full RetinaRegHead forward.  Input/output in NCHW (PyTorch convention).

    NOTE: the NCHW<->NHWC transposes and the 128->Cout slice are XLA glue
    around the fused kernel; keep the surrounding graph NHWC in production."""
    w_hidden, b_hidden, w_out, b_out = params
    n_hidden, _, C, _ = w_hidden.shape
    cout = w_out.shape[-1]
    cout_pad = ((cout + 127) // 128) * 128           # lane-dense output channels
    pad_c = cout_pad - cout

    # Pack taps dy-major with K = dx*C + cin (partial im2col weights), bf16.
    wh = w_hidden.reshape(n_hidden * 3, 3 * C, C).astype(jnp.bfloat16)
    bh = b_hidden.astype(jnp.float32)
    wo = (jnp.pad(w_out, ((0, 0), (0, 0), (0, pad_c)))
          .reshape(3, 3 * C, cout_pad).astype(jnp.bfloat16))
    bo = jnp.pad(b_out, ((0, 0), (0, pad_c))).astype(jnp.float32)

    x_nhwc = jnp.transpose(x_nchw, (0, 2, 3, 1)).astype(jnp.bfloat16)
    y = _retina_head_pallas(x_nhwc, wh, bh, wo, bo)
    return jnp.transpose(y[..., :cout], (0, 3, 1, 2))  # NHWC -> NCHW


# ---------------- pure-JAX reference (correctness check only) ----------------
def _conv3x3_ref(x_nhwc, w_taps, bias):
    cin = x_nhwc.shape[-1]
    cout = w_taps.shape[-1]
    w_hwio = w_taps.reshape(3, 3, cin, cout)
    y = jax.lax.conv_general_dilated(
        x_nhwc, w_hwio, window_strides=(1, 1), padding="SAME",
        dimension_numbers=("NHWC", "HWIO", "NHWC"),
        precision=jax.lax.Precision.HIGHEST)
    return y + bias.reshape(1, 1, 1, cout)


def retina_reg_head_reference(x_nchw, params):
    w_hidden, b_hidden, w_out, b_out = params
    x = jnp.transpose(x_nchw, (0, 2, 3, 1))
    for i in range(w_hidden.shape[0]):
        x = jax.nn.relu(_conv3x3_ref(x, w_hidden[i], b_hidden[i]))
    x = _conv3x3_ref(x, w_out, b_out)
    return jnp.transpose(x, (0, 3, 1, 2))


if __name__ == "__main__":
    # Small shapes consistent with the module: batch=2, inplanes=32,
    # spatial 16x16, num_anchors=9 -> out channels = 36.
    N, C, H, W = 2, 32, 16, 16
    num_anchors = 9

    key = jax.random.PRNGKey(0)
    k_x, k_p = jax.random.split(key)
    x = jax.random.normal(k_x, (N, C, H, W), dtype=jnp.float32)
    params = init_retina_reg_head_params(k_p, C, num_anchors, num_layers=4)

    out = jax.block_until_ready(jax.jit(retina_reg_head_forward)(x, params))
    assert out.shape == (N, num_anchors * 4, H, W), out.shape
    assert out.dtype == jnp.float32

    ref = jax.block_until_ready(retina_reg_head_reference(x, params))
    # bf16 MXU operands / bf16 resident activations vs an f32 HIGHEST-precision
    # reference: check error relative to the output scale.
    err = float(jnp.max(jnp.abs(out - ref)))
    scale = float(jnp.max(jnp.abs(ref)))
    assert err <= 5e-2 * scale + 1e-7, (err, scale)
    print("KERNEL_OK")
</pallas_src>

<mosaic_0001>
module attributes {stable_mosaic.version = 11 : i64} {
  func.func @_fused_head_kernel(%arg0: i32, %arg1: memref<1x16x16x32xbf16, #tpu.memory_space<vmem>>, %arg2: memref<12x96x32xbf16, #tpu.memory_space<vmem>>, %arg3: memref<4x1x32xf32, #tpu.memory_space<vmem>>, %arg4: memref<3x96x128xbf16, #tpu.memory_space<vmem>>, %arg5: memref<1x128xf32, #tpu.memory_space<vmem>>, %arg6: memref<1x16x16x128xf32, #tpu.memory_space<vmem>>, %arg7: memref<18x16x96xbf16, #tpu.memory_space<vmem>>) attributes {dimension_semantics = [#tpu.dimension_semantics<parallel>], iteration_bounds = array<i64: 2>, scalar_prefetch = 0 : i64, scratch_operands = 1 : i64, tpu.core_type = #tpu.core_type<tc>, window_params = [{transform_indices = @transform_0, window_bounds = array<i64: 1, 16, 16, 32>}, {pipeline_mode = #tpu.pipeline_mode<synchronous>, transform_indices = @transform_1, window_bounds = array<i64: 12, 96, 32>}, {pipeline_mode = #tpu.pipeline_mode<synchronous>, transform_indices = @transform_2, window_bounds = array<i64: 4, 1, 32>}, {pipeline_mode = #tpu.pipeline_mode<synchronous>, transform_indices = @transform_3, window_bounds = array<i64: 3, 96, 128>}, {pipeline_mode = #tpu.pipeline_mode<synchronous>, transform_indices = @transform_4, window_bounds = array<i64: 1, 128>}, {transform_indices = @transform_5, window_bounds = array<i64: 1, 16, 16, 128>}]} {
    %cst = arith.constant 0.000000e+00 : bf16
    %0 = vector.broadcast %cst : bf16 to vector<1x16x96xbf16>
    %c0 = arith.constant 0 : index
    %c0_0 = arith.constant 0 : index
    %c0_1 = arith.constant 0 : index
    %1 = vector.load %arg7[%c0, %c0_0, %c0_1] : memref<18x16x96xbf16, #tpu.memory_space<vmem>>, vector<1x16x96xbf16>
    tpu.vector_store %arg7[%c0, %c0_0, %c0_1], %0 {strides = array<i32>} : memref<18x16x96xbf16, #tpu.memory_space<vmem>>, vector<1x16x96xbf16>,
    %cst_2 = arith.constant 0.000000e+00 : bf16
    %2 = vector.broadcast %cst_2 : bf16 to vector<1x16x96xbf16>
    %c17 = arith.constant 17 : index
    %c0_3 = arith.constant 0 : index
    %c0_4 = arith.constant 0 : index
    %3 = vector.load %arg7[%c17, %c0_3, %c0_4] : memref<18x16x96xbf16, #tpu.memory_space<vmem>>, vector<1x16x96xbf16>
    tpu.vector_store %arg7[%c17, %c0_3, %c0_4], %2 {strides = array<i32>} : memref<18x16x96xbf16, #tpu.memory_space<vmem>>, vector<1x16x96xbf16>,
    %cst_5 = arith.constant 0.000000e+00 : bf16
    %4 = vector.broadcast %cst_5 : bf16 to vector<16x1x32xbf16>
    %c1 = arith.constant 1 : index
    %c0_6 = arith.constant 0 : index
    %c0_7 = arith.constant 0 : index
    %5 = vector.load %arg7[%c1, %c0_6, %c0_7] : memref<18x16x96xbf16, #tpu.memory_space<vmem>>, vector<16x1x32xbf16>
    tpu.vector_store %arg7[%c1, %c0_6, %c0_7], %4 {strides = array<i32>} : memref<18x16x96xbf16, #tpu.memory_space<vmem>>, vector<16x1x32xbf16>,
    %cst_8 = arith.constant 0.000000e+00 : bf16
    %6 = vector.broadcast %cst_8 : bf16 to vector<16x1x32xbf16>
    %c1_9 = arith.constant 1 : index
    %c15 = arith.constant 15 : index
    %c64 = arith.constant 64 : index
    %7 = vector.load %arg7[%c1_9, %c15, %c64] : memref<18x16x96xbf16, #tpu.memory_space<vmem>>, vector<16x1x32xbf16>
    tpu.vector_store %arg7[%c1_9, %c15, %c64], %6 {strides = array<i32>} : memref<18x16x96xbf16, #tpu.memory_space<vmem>>, vector<16x1x32xbf16>,
    %c0_10 = arith.constant 0 : index
    %c0_11 = arith.constant 0 : index
    %c0_12 = arith.constant 0 : index
    %c0_13 = arith.constant 0 : index
    %8 = vector.load %arg1[%c0_10, %c0_11, %c0_12, %c0_13] : memref<1x16x16x32xbf16, #tpu.memory_space<vmem>>, vector<1x16x16x32xbf16>
    %9 = vector.shape_cast %8 : vector<1x16x16x32xbf16> to vector<16x16x32xbf16>
    %c1_14 = arith.constant 1 : index
    %c0_15 = arith.constant 0 : index
    %c32 = arith.constant 32 : index
    %10 = vector.load %arg7[%c1_14, %c0_15, %c32] : memref<18x16x96xbf16, #tpu.memory_space<vmem>>, vector<16x16x32xbf16>
    tpu.vector_store %arg7[%c1_14, %c0_15, %c32], %9 {strides = array<i32>} : memref<18x16x96xbf16, #tpu.memory_space<vmem>>, vector<16x16x32xbf16>,
    %11 = vector.extract_strided_slice %9 {offsets = [0, 0, 0], sizes = [16, 15, 32], strides = [1, 1, 1]} : vector<16x16x32xbf16> to vector<16x15x32xbf16>
    %c1_16 = arith.constant 1 : index
    %c1_17 = arith.constant 1 : index
    %c0_18 = arith.constant 0 : index
    %12 = vector.load %arg7[%c1_16, %c1_17, %c0_18] : memref<18x16x96xbf16, #tpu.memory_space<vmem>>, vector<16x15x32xbf16>
    tpu.vector_store %arg7[%c1_16, %c1_17, %c0_18], %11 {strides = array<i32>} : memref<18x16x96xbf16, #tpu.memory_space<vmem>>, vector<16x15x32xbf16>,
    %13 = vector.extract_strided_slice %9 {offsets = [0, 1, 0], sizes = [16, 15, 32], strides = [1, 1, 1]} : vector<16x16x32xbf16> to vector<16x15x32xbf16>
    %c1_19 = arith.constant 1 : index
    %c0_20 = arith.constant 0 : index
    %c64_21 = arith.constant 64 : index
    %14 = vector.load %arg7[%c1_19, %c0_20, %c64_21] : memref<18x16x96xbf16, #tpu.memory_space<vmem>>, vector<16x15x32xbf16>
    tpu.vector_store %arg7[%c1_19, %c0_20, %c64_21], %13 {strides = array<i32>} : memref<18x16x96xbf16, #tpu.memory_space<vmem>>, vector<16x15x32xbf16>,
    %c0_i32 = arith.constant 0 : i32
    %c4_i32 = arith.constant 4 : i32
    %15 = arith.addi %c0_i32, %c4_i32 : i32
    %c1_i32 = arith.constant 1 : i32
    scf.for %arg8 = %c0_i32 to %15 step %c1_i32  : i32 {
      %c1_i32_83 = arith.constant 1 : i32
      %84 = arith.muli %arg8, %c1_i32_83 : i32
      %c0_i32_84 = arith.constant 0 : i32
      %85 = arith.addi %c0_i32_84, %84 : i32
      %cst_85 = arith.constant 0.000000e+00 : f32
      %86 = vector.broadcast %cst_85 : f32 to vector<256x32xf32>
      %c0_86 = arith.constant 0 : index
      %c0_87 = arith.constant 0 : index
      %c0_88 = arith.constant 0 : index
      %87 = vector.load %arg7[%c0_86, %c0_87, %c0_88] : memref<18x16x96xbf16, #tpu.memory_space<vmem>>, vector<16x16x96xbf16>
      %88 = vector.shape_cast %87 : vector<16x16x96xbf16> to vector<256x96xbf16>
      %c3_i32 = arith.constant 3 : i32
      %89 = arith.muli %85, %c3_i32 : i32
      %c0_i32_89 = arith.constant 0 : i32
      %90 = arith.addi %89, %c0_i32_89 : i32
      %91 = arith.index_cast %90 : i32 to index
      %c0_90 = arith.constant 0 : index
      %c0_91 = arith.constant 0 : index
      %92 = vector.load %arg2[%91, %c0_90, %c0_91] : memref<12x96x32xbf16, #tpu.memory_space<vmem>>, vector<1x96x32xbf16>
      %93 = vector.shape_cast %92 : vector<1x96x32xbf16> to vector<96x32xbf16>
      %cst_92 = arith.constant dense<0.000000e+00> : vector<256x32xf32>
      %94 = tpu.matmul %88, %93, %cst_92 {dimension_numbers = #tpu.dot_dimension_numbers<[1], [0], [0], [1], [0, 0, 1, 1], [], []>} : vector<256x96xbf16>, vector<96x32xbf16>, vector<256x32xf32> -> vector<256x32xf32>
      %95 = arith.addf %86, %94 : vector<256x32xf32>
      %c1_93 = arith.constant 1 : index
      %c0_94 = arith.constant 0 : index
      %c0_95 = arith.constant 0 : index
      %96 = vector.load %arg7[%c1_93, %c0_94, %c0_95] : memref<18x16x96xbf16, #tpu.memory_space<vmem>>, vector<16x16x96xbf16>
      %97 = vector.shape_cast %96 : vector<16x16x96xbf16> to vector<256x96xbf16>
      %c3_i32_96 = arith.constant 3 : i32
      %98 = arith.muli %85, %c3_i32_96 : i32
      %c1_i32_97 = arith.constant 1 : i32
      %99 = arith.addi %98, %c1_i32_97 : i32
      %100 = arith.index_cast %99 : i32 to index
      %c0_98 = arith.constant 0 : index
      %c0_99 = arith.constant 0 : index
      %101 = vector.load %arg2[%100, %c0_98, %c0_99] : memref<12x96x32xbf16, #tpu.memory_space<vmem>>, vector<1x96x32xbf16>
      %102 = vector.shape_cast %101 : vector<1x96x32xbf16> to vector<96x32xbf16>
      %cst_100 = arith.constant dense<0.000000e+00> : vector<256x32xf32>
      %103 = tpu.matmul %97, %102, %cst_100 {dimension_numbers = #tpu.dot_dimension_numbers<[1], [0], [0], [1], [0, 0, 1, 1], [], []>} : vector<256x96xbf16>, vector<96x32xbf16>, vector<256x32xf32> -> vector<256x32xf32>
      %104 = arith.addf %95, %103 : vector<256x32xf32>
      %c2_101 = arith.constant 2 : index
      %c0_102 = arith.constant 0 : index
      %c0_103 = arith.constant 0 : index
      %105 = vector.load %arg7[%c2_101, %c0_102, %c0_103] : memref<18x16x96xbf16, #tpu.memory_space<vmem>>, vector<16x16x96xbf16>
      %106 = vector.shape_cast %105 : vector<16x16x96xbf16> to vector<256x96xbf16>
      %c3_i32_104 = arith.constant 3 : i32
      %107 = arith.muli %85, %c3_i32_104 : i32
      %c2_i32_105 = arith.constant 2 : i32
      %108 = arith.addi %107, %c2_i32_105 : i32
      %109 = arith.index_cast %108 : i32 to index
      %c0_106 = arith.constant 0 : index
      %c0_107 = arith.constant 0 : index
      %110 = vector.load %arg2[%109, %c0_106, %c0_107] : memref<12x96x32xbf16, #tpu.memory_space<vmem>>, vector<1x96x32xbf16>
      %111 = vector.shape_cast %110 : vector<1x96x32xbf16> to vector<96x32xbf16>
      %cst_108 = arith.constant dense<0.000000e+00> : vector<256x32xf32>
      %112 = tpu.matmul %106, %111, %cst_108 {dimension_numbers = #tpu.dot_dimension_numbers<[1], [0], [0], [1], [0, 0, 1, 1], [], []>} : vector<256x96xbf16>, vector<96x32xbf16>, vector<256x32xf32> -> vector<256x32xf32>
      %113 = arith.addf %104, %112 : vector<256x32xf32>
      %114 = arith.index_cast %85 : i32 to index
      %c0_109 = arith.constant 0 : index
      %c0_110 = arith.constant 0 : index
      %115 = vector.load %arg3[%114, %c0_109, %c0_110] : memref<4x1x32xf32, #tpu.memory_space<vmem>>, vector<1x1x32xf32>
      %116 = vector.shape_cast %115 : vector<1x1x32xf32> to vector<1x32xf32>
      %117 = vector.broadcast %116 : vector<1x32xf32> to vector<256x32xf32>
      %118 = arith.addf %113, %117 : vector<256x32xf32>
      %cst_111 = arith.constant 0.000000e+00 : f32
      %119 = vector.broadcast %cst_111 : f32 to vector<256x32xf32>
      %120 = arith.maximumf %118, %119 : vector<256x32xf32>
      %121 = arith.truncf %120 : vector<256x32xf32> to vector<256x32xbf16>
      %122 = vector.shape_cast %121 : vector<256x32xbf16> to vector<16x16x32xbf16>
      %c1_112 = arith.constant 1 : index
      %c0_113 = arith.constant 0 : index
      %c32_114 = arith.constant 32 : index
      %123 = vector.load %arg7[%c1_112, %c0_113, %c32_114] : memref<18x16x96xbf16, #tpu.memory_space<vmem>>, vector<16x16x32xbf16>
      tpu.vector_store %arg7[%c1_112, %c0_113, %c32_114], %122 {strides = array<i32>} : memref<18x16x96xbf16, #tpu.memory_space<vmem>>, vector<16x16x32xbf16>,
      %124 = vector.extract_strided_slice %122 {offsets = [0, 0, 0], sizes = [16, 15, 32], strides = [1, 1, 1]} : vector<16x16x32xbf16> to vector<16x15x32xbf16>
      %c1_115 = arith.constant 1 : index
      %c1_116 = arith.constant 1 : index
      %c0_117 = arith.constant 0 : index
      %125 = vector.load %arg7[%c1_115, %c1_116, %c0_117] : memref<18x16x96xbf16, #tpu.memory_space<vmem>>, vector<16x15x32xbf16>
      tpu.vector_store %arg7[%c1_115, %c1_116, %c0_117], %124 {strides = array<i32>} : memref<18x16x96xbf16, #tpu.memory_space<vmem>>, vector<16x15x32xbf16>,
      %126 = vector.extract_strided_slice %122 {offsets = [0, 1, 0], sizes = [16, 15, 32], strides = [1, 1, 1]} : vector<16x16x32xbf16> to vector<16x15x32xbf16>
      %c1_118 = arith.constant 1 : index
      %c0_119 = arith.constant 0 : index
      %c64_120 = arith.constant 64 : index
      %127 = vector.load %arg7[%c1_118, %c0_119, %c64_120] : memref<18x16x96xbf16, #tpu.memory_space<vmem>>, vector<16x15x32xbf16>
      tpu.vector_store %arg7[%c1_118, %c0_119, %c64_120], %126 {strides = array<i32>} : memref<18x16x96xbf16, #tpu.memory_space<vmem>>, vector<16x15x32xbf16>,
    }
    %c4_i32_22 = arith.constant 4 : i32
    %c0_i32_23 = arith.constant 0 : i32
    %c1_i32_24 = arith.constant 1 : i32
    %16 = arith.muli %c0_i32_23, %c1_i32_24 : i32
    %c0_i32_25 = arith.constant 0 : i32
    %17 = arith.addi %c0_i32_25, %16 : i32
    %c8_i32 = arith.constant 8 : i32
    %18 = arith.muli %17, %c8_i32 : i32
    %cst_26 = arith.constant 0.000000e+00 : f32
    %19 = vector.broadcast %cst_26 : f32 to vector<128x128xf32>
    %c0_i32_27 = arith.constant 0 : i32
    %20 = arith.addi %18, %c0_i32_27 : i32
    %21 = arith.index_cast %20 : i32 to index
    %c0_28 = arith.constant 0 : index
    %c0_29 = arith.constant 0 : index
    %22 = vector.load %arg7[%21, %c0_28, %c0_29] : memref<18x16x96xbf16, #tpu.memory_space<vmem>>, vector<8x16x96xbf16>
    %23 = vector.shape_cast %22 : vector<8x16x96xbf16> to vector<128x96xbf16>
    %c0_30 = arith.constant 0 : index
    %c0_31 = arith.constant 0 : index
    %c0_32 = arith.constant 0 : index
    %24 = vector.load %arg4[%c0_30, %c0_31, %c0_32] : memref<3x96x128xbf16, #tpu.memory_space<vmem>>, vector<1x96x128xbf16>
    %25 = vector.shape_cast %24 : vector<1x96x128xbf16> to vector<96x128xbf16>
    %cst_33 = arith.constant dense<0.000000e+00> : vector<128x128xf32>
    %26 = tpu.matmul %23, %25, %cst_33 {dimension_numbers = #tpu.dot_dimension_numbers<[1], [0], [0], [1], [0, 0, 1, 1], [], []>} : vector<128x96xbf16>, vector<96x128xbf16>, vector<128x128xf32> -> vector<128x128xf32>
    %27 = arith.addf %19, %26 : vector<128x128xf32>
    %c1_i32_34 = arith.constant 1 : i32
    %28 = arith.addi %18, %c1_i32_34 : i32
    %29 = arith.index_cast %28 : i32 to index
    %c0_35 = arith.constant 0 : index
    %c0_36 = arith.constant 0 : index
    %30 = vector.load %arg7[%29, %c0_35, %c0_36] : memref<18x16x96xbf16, #tpu.memory_space<vmem>>, vector<8x16x96xbf16>
    %31 = vector.shape_cast %30 : vector<8x16x96xbf16> to vector<128x96xbf16>
    %c1_37 = arith.constant 1 : index
    %c0_38 = arith.constant 0 : index
    %c0_39 = arith.constant 0 : index
    %32 = vector.load %arg4[%c1_37, %c0_38, %c0_39] : memref<3x96x128xbf16, #tpu.memory_space<vmem>>, vector<1x96x128xbf16>
    %33 = vector.shape_cast %32 : vector<1x96x128xbf16> to vector<96x128xbf16>
    %cst_40 = arith.constant dense<0.000000e+00> : vector<128x128xf32>
    %34 = tpu.matmul %31, %33, %cst_40 {dimension_numbers = #tpu.dot_dimension_numbers<[1], [0], [0], [1], [0, 0, 1, 1], [], []>} : vector<128x96xbf16>, vector<96x128xbf16>, vector<128x128xf32> -> vector<128x128xf32>
    %35 = arith.addf %27, %34 : vector<128x128xf32>
    %c2_i32 = arith.constant 2 : i32
    %36 = arith.addi %18, %c2_i32 : i32
    %37 = arith.index_cast %36 : i32 to index
    %c0_41 = arith.constant 0 : index
    %c0_42 = arith.constant 0 : index
    %38 = vector.load %arg7[%37, %c0_41, %c0_42] : memref<18x16x96xbf16, #tpu.memory_space<vmem>>, vector<8x16x96xbf16>
    %39 = vector.shape_cast %38 : vector<8x16x96xbf16> to vector<128x96xbf16>
    %c2 = arith.constant 2 : index
    %c0_43 = arith.constant 0 : index
    %c0_44 = arith.constant 0 : index
    %40 = vector.load %arg4[%c2, %c0_43, %c0_44] : memref<3x96x128xbf16, #tpu.memory_space<vmem>>, vector<1x96x128xbf16>
    %41 = vector.shape_cast %40 : vector<1x96x128xbf16> to vector<96x128xbf16>
    %cst_45 = arith.constant dense<0.000000e+00> : vector<128x128xf32>
    %42 = tpu.matmul %39, %41, %cst_45 {dimension_numbers = #tpu.dot_dimension_numbers<[1], [0], [0], [1], [0, 0, 1, 1], [], []>} : vector<128x96xbf16>, vector<96x128xbf16>, vector<128x128xf32> -> vector<128x128xf32>
    %43 = arith.addf %35, %42 : vector<128x128xf32>
    %c0_46 = arith.constant 0 : index
    %c0_47 = arith.constant 0 : index
    %44 = vector.load %arg5[%c0_46, %c0_47] : memref<1x128xf32, #tpu.memory_space<vmem>>, vector<1x128xf32>
    %45 = vector.broadcast %44 : vector<1x128xf32> to vector<128x128xf32>
    %46 = arith.addf %43, %45 : vector<128x128xf32>
    %47 = vector.shape_cast %46 : vector<128x128xf32> to vector<1x8x16x128xf32>
    %c0_48 = arith.constant 0 : index
    %48 = arith.index_cast %18 : i32 to index
    %c0_49 = arith.constant 0 : index
    %c0_50 = arith.constant 0 : index
    %49 = vector.load %arg6[%c0_48, %48, %c0_49, %c0_50] : memref<1x16x16x128xf32, #tpu.memory_space<vmem>>, vector<1x8x16x128xf32>
    tpu.vector_store %arg6[%c0_48, %48, %c0_49, %c0_50], %47 {strides = array<i32>} : memref<1x16x16x128xf32, #tpu.memory_space<vmem>>, vector<1x8x16x128xf32>,
    %c1_i32_51 = arith.constant 1 : i32
    %c1_i32_52 = arith.constant 1 : i32
    %50 = arith.muli %c1_i32_51, %c1_i32_52 : i32
    %c0_i32_53 = arith.constant 0 : i32
    %51 = arith.addi %c0_i32_53, %50 : i32
    %c8_i32_54 = arith.constant 8 : i32
    %52 = arith.muli %51, %c8_i32_54 : i32
    %cst_55 = arith.constant 0.000000e+00 : f32
    %53 = vector.broadcast %cst_55 : f32 to vector<128x128xf32>
    %c0_i32_56 = arith.constant 0 : i32
    %54 = arith.addi %52, %c0_i32_56 : i32
    %55 = arith.index_cast %54 : i32 to index
    %c0_57 = arith.constant 0 : index
    %c0_58 = arith.constant 0 : index
    %56 = vector.load %arg7[%55, %c0_57, %c0_58] : memref<18x16x96xbf16, #tpu.memory_space<vmem>>, vector<8x16x96xbf16>
    %57 = vector.shape_cast %56 : vector<8x16x96xbf16> to vector<128x96xbf16>
    %c0_59 = arith.constant 0 : index
    %c0_60 = arith.constant 0 : index
    %c0_61 = arith.constant 0 : index
    %58 = vector.load %arg4[%c0_59, %c0_60, %c0_61] : memref<3x96x128xbf16, #tpu.memory_space<vmem>>, vector<1x96x128xbf16>
    %59 = vector.shape_cast %58 : vector<1x96x128xbf16> to vector<96x128xbf16>
    %cst_62 = arith.constant dense<0.000000e+00> : vector<128x128xf32>
    %60 = tpu.matmul %57, %59, %cst_62 {dimension_numbers = #tpu.dot_dimension_numbers<[1], [0], [0], [1], [0, 0, 1, 1], [], []>} : vector<128x96xbf16>, vector<96x128xbf16>, vector<128x128xf32> -> vector<128x128xf32>
    %61 = arith.addf %53, %60 : vector<128x128xf32>
    %c1_i32_63 = arith.constant 1 : i32
    %62 = arith.addi %52, %c1_i32_63 : i32
    %63 = arith.index_cast %62 : i32 to index
    %c0_64 = arith.constant 0 : index
    %c0_65 = arith.constant 0 : index
    %64 = vector.load %arg7[%63, %c0_64, %c0_65] : memref<18x16x96xbf16, #tpu.memory_space<vmem>>, vector<8x16x96xbf16>
    %65 = vector.shape_cast %64 : vector<8x16x96xbf16> to vector<128x96xbf16>
    %c1_66 = arith.constant 1 : index
    %c0_67 = arith.constant 0 : index
    %c0_68 = arith.constant 0 : index
    %66 = vector.load %arg4[%c1_66, %c0_67, %c0_68] : memref<3x96x128xbf16, #tpu.memory_space<vmem>>, vector<1x96x128xbf16>
    %67 = vector.shape_cast %66 : vector<1x96x128xbf16> to vector<96x128xbf16>
    %cst_69 = arith.constant dense<0.000000e+00> : vector<128x128xf32>
    %68 = tpu.matmul %65, %67, %cst_69 {dimension_numbers = #tpu.dot_dimension_numbers<[1], [0], [0], [1], [0, 0, 1, 1], [], []>} : vector<128x96xbf16>, vector<96x128xbf16>, vector<128x128xf32> -> vector<128x128xf32>
    %69 = arith.addf %61, %68 : vector<128x128xf32>
    %c2_i32_70 = arith.constant 2 : i32
    %70 = arith.addi %52, %c2_i32_70 : i32
    %71 = arith.index_cast %70 : i32 to index
    %c0_71 = arith.constant 0 : index
    %c0_72 = arith.constant 0 : index
    %72 = vector.load %arg7[%71, %c0_71, %c0_72] : memref<18x16x96xbf16, #tpu.memory_space<vmem>>, vector<8x16x96xbf16>
    %73 = vector.shape_cast %72 : vector<8x16x96xbf16> to vector<128x96xbf16>
    %c2_73 = arith.constant 2 : index
    %c0_74 = arith.constant 0 : index
    %c0_75 = arith.constant 0 : index
    %74 = vector.load %arg4[%c2_73, %c0_74, %c0_75] : memref<3x96x128xbf16, #tpu.memory_space<vmem>>, vector<1x96x128xbf16>
    %75 = vector.shape_cast %74 : vector<1x96x128xbf16> to vector<96x128xbf16>
    %cst_76 = arith.constant dense<0.000000e+00> : vector<128x128xf32>
    %76 = tpu.matmul %73, %75, %cst_76 {dimension_numbers = #tpu.dot_dimension_numbers<[1], [0], [0], [1], [0, 0, 1, 1], [], []>} : vector<128x96xbf16>, vector<96x128xbf16>, vector<128x128xf32> -> vector<128x128xf32>
    %77 = arith.addf %69, %76 : vector<128x128xf32>
    %c0_77 = arith.constant 0 : index
    %c0_78 = arith.constant 0 : index
    %78 = vector.load %arg5[%c0_77, %c0_78] : memref<1x128xf32, #tpu.memory_space<vmem>>, vector<1x128xf32>
    %79 = vector.broadcast %78 : vector<1x128xf32> to vector<128x128xf32>
    %80 = arith.addf %77, %79 : vector<128x128xf32>
    %81 = vector.shape_cast %80 : vector<128x128xf32> to vector<1x8x16x128xf32>
    %c0_79 = arith.constant 0 : index
    %82 = arith.index_cast %52 : i32 to index
    %c0_80 = arith.constant 0 : index
    %c0_81 = arith.constant 0 : index
    %83 = vector.load %arg6[%c0_79, %82, %c0_80, %c0_81] : memref<1x16x16x128xf32, #tpu.memory_space<vmem>>, vector<1x8x16x128xf32>
    tpu.vector_store %arg6[%c0_79, %82, %c0_80, %c0_81], %81 {strides = array<i32>} : memref<1x16x16x128xf32, #tpu.memory_space<vmem>>, vector<1x8x16x128xf32>,
    %c2_i32_82 = arith.constant 2 : i32
    return
  }
  func.func @transform_0(%arg0: i32) -> (i32, i32, i32, i32) {
    %c0_i32 = arith.constant 0 : i32
    %c0_i32_0 = arith.constant 0 : i32
    %c0_i32_1 = arith.constant 0 : i32
    %c0_i32_2 = arith.constant 0 : i32
    return %arg0, %c0_i32, %c0_i32_0, %c0_i32_1 : i32, i32, i32, i32
  }
  func.func @transform_1(%arg0: i32) -> (i32, i32, i32) {
    %c0_i32 = arith.constant 0 : i32
    %c0_i32_0 = arith.constant 0 : i32
    %c0_i32_1 = arith.constant 0 : i32
    %c0_i32_2 = arith.constant 0 : i32
    return %c0_i32, %c0_i32_0, %c0_i32_1 : i32, i32, i32
  }
  func.func @transform_2(%arg0: i32) -> (i32, i32, i32) {
    %c0_i32 = arith.constant 0 : i32
    %c0_i32_0 = arith.constant 0 : i32
    %c0_i32_1 = arith.constant 0 : i32
    %c0_i32_2 = arith.constant 0 : i32
    return %c0_i32, %c0_i32_0, %c0_i32_1 : i32, i32, i32
  }
  func.func @transform_3(%arg0: i32) -> (i32, i32, i32) {
    %c0_i32 = arith.constant 0 : i32
    %c0_i32_0 = arith.constant 0 : i32
    %c0_i32_1 = arith.constant 0 : i32
    %c0_i32_2 = arith.constant 0 : i32
    return %c0_i32, %c0_i32_0, %c0_i32_1 : i32, i32, i32
  }
  func.func @transform_4(%arg0: i32) -> (i32, i32) {
    %c0_i32 = arith.constant 0 : i32
    %c0_i32_0 = arith.constant 0 : i32
    %c0_i32_1 = arith.constant 0 : i32
    return %c0_i32, %c0_i32_0 : i32, i32
  }
  func.func @transform_5(%arg0: i32) -> (i32, i32, i32, i32) {
    %c0_i32 = arith.constant 0 : i32
    %c0_i32_0 = arith.constant 0 : i32
    %c0_i32_1 = arith.constant 0 : i32
    %c0_i32_2 = arith.constant 0 : i32
    return %arg0, %c0_i32, %c0_i32_0, %c0_i32_1 : i32, i32, i32, i32
  }
}

</mosaic_0001>

<llo_original>
// kernel: retina_reg_head_forward.1
$region0: #{retina_reg_head_forward.1}
  #allocation0 [shape = 'u32[]', space=smem, size = 0x4, offset = 0x4, fixed_abs, tag = 'smem constant byte address 0x4 - core index']
  #allocation1 [shape = 'u32[144,128]{1,0:T(1,128)}', space=vmem, size = 0x12000, scoped, tag = 'internal scratch']
  #allocation2 [shape = 'bf16[18,16,96]{2,1,0:T(16,128)(2,1)}', space=vmem, size = 0x12000, scoped, tag = 'scratch operand']
  %s0 = inlined_call_operand.hbm [shape: bf16[2,16,16,32], index: 0, kind: input, shape index: {}]
  %s1 = inlined_call_operand.hbm [shape: bf16[12,96,32], index: 1, kind: input, shape index: {}]
  %s2 = inlined_call_operand.hbm [shape: f32[4,1,32], index: 2, kind: input, shape index: {}]
  %s3 = inlined_call_operand.hbm [shape: bf16[3,96,128], index: 3, kind: input, shape index: {}]
  %s4 = inlined_call_operand.hbm [shape: f32[1,128], index: 4, kind: input, shape index: {}]
  %s5 = inlined_call_operand.hbm [shape: f32[2,16,16,128], index: 5, kind: output, shape index: {}]
  %s6 = sld [smem:[#allocation0]]
  $region80: #{retina_reg_head_forward.1} parent=0
    _
  %s8 = ssub.s32 1, %s6
  %s9 = scalar_select 0, %s8, %s6
  $region1: #{retina_reg_head_forward.1} parent=0
    #allocation3 [shape = 'u8[131072]{0}', space=vmem, size = 0x20000, scoped, tag = 'input window, operand 0']
    #allocation4 [shape = 's32[2]{0}', space=sflag, size = 0x8, scoped, tag = 'scoped memory for retina_reg_head_forward.1']
    #allocation5 [shape = 's32[2]{0}', space=sflag, size = 0x8, scoped, tag = 'scoped memory for retina_reg_head_forward.1']
    #allocation6 [shape = 'u8[294912]{0}', space=vmem, size = 0x48000, scoped, tag = 'input window, operand 1, single buffered']
    #allocation7 [shape = 's32[1]{0}', space=sflag, size = 0x4, scoped, tag = 'scoped memory for retina_reg_head_forward.1']
    #allocation8 [shape = 'u8[2048]{0}', space=vmem, size = 0x800, scoped, tag = 'input window, operand 2, single buffered']
    #allocation9 [shape = 'u8[73728]{0}', space=vmem, size = 0x12000, scoped, tag = 'input window, operand 3, single buffered']
    #allocation10 [shape = 's32[1]{0}', space=sflag, size = 0x4, scoped, tag = 'scoped memory for retina_reg_head_forward.1']
    #allocation11 [shape = 'u8[512]{0}', space=vmem, size = 0x400, scoped, tag = 'input window, operand 4, single buffered']
    #allocation12 [shape = 'u8[262144]{0}', space=vmem, size = 0x40000, scoped, tag = 'output window, operand 0']
    %10 = vsyncpa [#allocation4], 0
    %s11 = scalar_lea.sflag [#allocation4], 1
    %12 = vsyncpa %s11, 0
    %13 = vsyncpa [#allocation7], 0
    %14 = vsyncpa [#allocation10], 0
    %15 = vsyncpa [#allocation5], 0
    %s16 = scalar_lea.sflag [#allocation5], 1
    %17 = vsyncpa %s16, 0
    loop: start=0, step=1, limit=4
    $region2: #{retina_reg_head_forward.1} parent=1 // loop_pre_header
      _
    $region3: #{retina_reg_head_forward.1} parent=1 // loop_header
      %s19 = sphi 0, %s23
      %p20 = scmp.ge.s32.totalorder %s19, 4
      %s29 = sphi 0, %s31
      %s32 = sphi 0, %s29
      %s33 = sphi 0, %s32
      %s49 = sphi 0, %s33
      %s53 = sphi 0, %s53
      %s55 = sphi 0, %s53
      %s56 = sphi 0, %s55
      %s70 = sphi 0, %s56
      %s74 = sphi 0, %s74
      %s76 = sphi 0, %s74
      %s77 = sphi 0, %s76
      %s91 = sphi 0, %s77
      %s95 = sphi 0, %s95
      %s97 = sphi 0, %s95
      %s98 = sphi 0, %s97
      %s112 = sphi 0, %s98
      %s116 = sphi 0, %s116
      %s118 = sphi 0, %s116
      %s119 = sphi 0, %s118
      %s133 = sphi 0, %s119
      %s139 = sphi 0, %s141
      %s142 = sphi 0, %s139
      %s143 = sphi 0, %s142
      %s159 = sphi 0, %s143
    $region4: #{retina_reg_head_forward.1} parent=1 // loop_header_branch
      %22 = sbr.rel (%p20) target = $region8
    $region5: #{retina_reg_head_forward.1} parent=1 // loop_body
      %s24 = ssub.s32 %s19, 1
      %s25 = ssub.s32 %s19, 2
      %s26 = sadd.s32 %s19, 1
      %s27 = ssub.s32 %s19, %s26
      %p28 = scmp.eq.s32.totalorder %s27, 0
      %s30 = sadd.s32 %s29, 1
      %s31 = scalar_select %p28, %s29, %s30
      %p34 = pneg %p28
      %p35 = scmp.eq.s32.totalorder %s19, 1
      %p36 = por %p34, %p35
      %p37 = scmp.ne.s32.totalorder %s29, %s32
      %p38 = scmp.eq.s32.totalorder %s19, 0
      %p39 = por %p37, %p38
      %p40 = scmp.ne.s32.totalorder %s29, %s32
      %p41 = scmp.eq.s32.totalorder %s24, 1
      %p42 = por %p40, %p41
      %p43 = scmp.ne.s32.totalorder %s32, %s33
      %p44 = scmp.eq.s32.totalorder %s24, 0
      %p45 = por %p43, %p44
      %p46 = scmp.ne.s32.totalorder %s32, %s33
      %p47 = scmp.eq.s32.totalorder %s25, 1
      %p48 = por %p46, %p47
      %p50 = scmp.ne.s32.totalorder %s33, %s49
      %p51 = scmp.eq.s32.totalorder %s25, 0
      %p52 = por %p50, %p51
      %s54 = sadd.s32 %s53, 1
      %p57 = scmp.eq.s32.totalorder %s19, 1
      %p58 = scmp.ne.s32.totalorder %s53, %s55
      %p59 = scmp.eq.s32.totalorder %s19, 0
      %p60 = por %p58, %p59
      %p61 = scmp.ne.s32.totalorder %s53, %s55
      %p62 = scmp.eq.s32.totalorder %s24, 1
      %p63 = por %p61, %p62
      %p64 = scmp.ne.s32.totalorder %s55, %s56
      %p65 = scmp.eq.s32.totalorder %s24, 0
      %p66 = por %p64, %p65
      %p67 = scmp.ne.s32.totalorder %s55, %s56
      %p68 = scmp.eq.s32.totalorder %s25, 1
      %p69 = por %p67, %p68
      %p71 = scmp.ne.s32.totalorder %s56, %s70
      %p72 = scmp.eq.s32.totalorder %s25, 0
      %p73 = por %p71, %p72
      %s75 = sadd.s32 %s74, 1
      %p78 = scmp.eq.s32.totalorder %s19, 1
      %p79 = scmp.ne.s32.totalorder %s74, %s76
      %p80 = scmp.eq.s32.totalorder %s19, 0
      %p81 = por %p79, %p80
      %p82 = scmp.ne.s32.totalorder %s74, %s76
      %p83 = scmp.eq.s32.totalorder %s24, 1
      %p84 = por %p82, %p83
      %p85 = scmp.ne.s32.totalorder %s76, %s77
      %p86 = scmp.eq.s32.totalorder %s24, 0
      %p87 = por %p85, %p86
      %p88 = scmp.ne.s32.totalorder %s76, %s77
      %p89 = scmp.eq.s32.totalorder %s25, 1
      %p90 = por %p88, %p89
      %p92 = scmp.ne.s32.totalorder %s77, %s91
      %p93 = scmp.eq.s32.totalorder %s25, 0
      %p94 = por %p92, %p93
      %s96 = sadd.s32 %s95, 1
      %p99 = scmp.eq.s32.totalorder %s19, 1
      %p100 = scmp.ne.s32.totalorder %s95, %s97
      %p101 = scmp.eq.s32.totalorder %s19, 0
      %p102 = por %p100, %p101
      %p103 = scmp.ne.s32.totalorder %s95, %s97
      %p104 = scmp.eq.s32.totalorder %s24, 1
      %p105 = por %p103, %p104
      %p106 = scmp.ne.s32.totalorder %s97, %s98
      %p107 = scmp.eq.s32.totalorder %s24, 0
      %p108 = por %p106, %p107
      %p109 = scmp.ne.s32.totalorder %s97, %s98
      %p110 = scmp.eq.s32.totalorder %s25, 1
      %p111 = por %p109, %p110
      %p113 = scmp.ne.s32.totalorder %s98, %s112
      %p114 = scmp.eq.s32.totalorder %s25, 0
      %p115 = por %p113, %p114
      %s117 = sadd.s32 %s116, 1
      %p120 = scmp.eq.s32.totalorder %s19, 1
      %p121 = scmp.ne.s32.totalorder %s116, %s118
      %p122 = scmp.eq.s32.totalorder %s19, 0
      %p123 = por %p121, %p122
      %p124 = scmp.ne.s32.totalorder %s116, %s118
      %p125 = scmp.eq.s32.totalorder %s24, 1
      %p126 = por %p124, %p125
      %p127 = scmp.ne.s32.totalorder %s118, %s119
      %p128 = scmp.eq.s32.totalorder %s24, 0
      %p129 = por %p127, %p128
      %p130 = scmp.ne.s32.totalorder %s118, %s119
      %p131 = scmp.eq.s32.totalorder %s25, 1
      %p132 = por %p130, %p131
      %p134 = scmp.ne.s32.totalorder %s119, %s133
      %p135 = scmp.eq.s32.totalorder %s25, 0
      %p136 = por %p134, %p135
      %s137 = ssub.s32 %s19, %s26
      %p138 = scmp.eq.s32.totalorder %s137, 0
      %s140 = sadd.s32 %s139, 1
      %s141 = scalar_select %p138, %s139, %s140
      %p144 = pneg %p138
      %p145 = scmp.eq.s32.totalorder %s19, 1
      %p146 = por %p144, %p145
      %p147 = scmp.ne.s32.totalorder %s139, %s142
      %p148 = scmp.eq.s32.totalorder %s19, 0
      %p149 = por %p147, %p148
      %p150 = scmp.ne.s32.totalorder %s139, %s142
      %p151 = scmp.eq.s32.totalorder %s24, 1
      %p152 = por %p150, %p151
      %p153 = scmp.ne.s32.totalorder %s142, %s143
      %p154 = scmp.eq.s32.totalorder %s24, 0
      %p155 = por %p153, %p154
      %p156 = scmp.ne.s32.totalorder %s142, %s143
      %p157 = scmp.eq.s32.totalorder %s25, 1
      %p158 = por %p156, %p157
      %p160 = scmp.ne.s32.totalorder %s143, %s159
      %p161 = scmp.eq.s32.totalorder %s25, 0
      %p162 = por %p160, %p161
      %p163 = scmp.le.s32.totalorder 1, %s19
      %p164 = scmp.lt.s32.totalorder %s19, 3
      %p165 = pnand %p163, %p164
      %p166 = pneg %p165
      // Predicated region
      $region9: #{retina_reg_head_forward.1} parent=5 // pred_check
        _
      $region10: #{retina_reg_head_forward.1} parent=5 // pred_check_branch
        %168 = sbr.rel (%p165) target = $region12
      $region11: #{retina_reg_head_forward.1} parent=5 // pred_region
        %s169 = ssub.s32 %s19, 1
        // Predicated region
        $region13: #{retina_reg_head_forward.1} parent=11 // pred_check
          %p170 = pneg %p66
        $region14: #{retina_reg_head_forward.1} parent=11 // pred_check_branch
          %172 = sbr.rel (%p170) target = $region16
        $region15: #{retina_reg_head_forward.1} parent=11 // pred_region
          %s174 = ssub.s32 9216, 9216
          %175 = vsyncadd [#allocation7], %s174
          %s176 = sshll.u32 [#allocation6], 4
          %s177 = int_to_ptr.vmem [resolvable:$true] %s176
          %182 = dma.hbm_to_vmem [thread:$0]  %s1, 9216, %s177, [#allocation7], 64, 64, 4
        $region16: #{retina_reg_head_forward.1} parent=11 // pred_fallthru
          _
        // Predicated region
        $region17: #{retina_reg_head_forward.1} parent=11 // pred_check
          %p183 = pneg %p87
        $region18: #{retina_reg_head_forward.1} parent=11 // pred_check_branch
          %185 = sbr.rel (%p183) target = $region20
        $region19: #{retina_reg_head_forward.1} parent=11 // pred_region
          %s187 = ssub.s32 64, 64
          %188 = vsyncadd [#allocation7], %s187
          %s189 = sshll.u32 [#allocation8], 4
          %s190 = int_to_ptr.vmem [resolvable:$true] %s189
          %195 = dma.hbm_to_vmem [thread:$0]  %s2, 64, %s190, [#allocation7], 16, 16, 1
        $region20: #{retina_reg_head_forward.1} parent=11 // pred_fallthru
          _
        // Predicated region
        $region21: #{retina_reg_head_forward.1} parent=11 // pred_check
          %p196 = pneg %p108
        $region22: #{retina_reg_head_forward.1} parent=11 // pred_check_branch
          %198 = sbr.rel (%p196) target = $region24
        $region23: #{retina_reg_head_forward.1} parent=11 // pred_region
          %s200 = ssub.s32 2304, 2304
          %201 = vsyncadd [#allocation10], %s200
          %s202 = sshll.u32 [#allocation9], 4
          %s203 = int_to_ptr.vmem [resolvable:$true] %s202
          %208 = dma.hbm_to_vmem [thread:$0]  %s3, 2304, %s203, [#allocation10], 64, 64, 4
        $region24: #{retina_reg_head_forward.1} parent=11 // pred_fallthru
          _
        // Predicated region
        $region25: #{retina_reg_head_forward.1} parent=11 // pred_check
          %p209 = pneg %p129
        $region26: #{retina_reg_head_forward.1} parent=11 // pred_check_branch
          %211 = sbr.rel (%p209) target = $region28
        $region27: #{retina_reg_head_forward.1} parent=11 // pred_region
          %s213 = ssub.s32 16, 16
          %214 = vsyncadd [#allocation10], %s213
          %s216 = sshll.u32 [#allocation11], 4
          %s217 = int_to_ptr.vmem [resolvable:$true] %s216
          %219 = dma.hbm_to_vmem [thread:$0]  %s4, 16, %s217, [#allocation10]
        $region28: #{retina_reg_head_forward.1} parent=11 // pred_fallthru
          _
      $region12: #{retina_reg_head_forward.1} parent=5 // pred_fallthru
        _
      %p220 = scmp.lt.s32.totalorder %s19, 2
      // Predicated region
      $region29: #{retina_reg_head_forward.1} parent=5 // pred_check
        %p221 = pneg %p220
      $region30: #{retina_reg_head_forward.1} parent=5 // pred_check_branch
        %223 = sbr.rel (%p221) target = $region32
      $region31: #{retina_reg_head_forward.1} parent=5 // pred_region
        // Predicated region
        $region33: #{retina_reg_head_forward.1} parent=31 // pred_check
          %p224 = pneg %p39
        $region34: #{retina_reg_head_forward.1} parent=31 // pred_check_branch
          %226 = sbr.rel (%p224) target = $region36
        $region35: #{retina_reg_head_forward.1} parent=31 // pred_region
          %s227 = sand.u32 %s29, 1
          %s228 = scalar_lea.sflag [#allocation4], %s227
          %s229 = sand.u32 %s29, 1
          %s230 = smul.addr %s229, 128
          %s231 = scalar_lea.vmem [#allocation3], %s230
          %s233 = ssub.s32 2048, 2048
          %234 = vsyncadd %s228, %s233
          %s235 = smul.addr %s19, 32
          %s236 = smul.addr %s235, 64
          %s237 = scalar_lea.hbm %s0, %s236
          %s238 = sshll.u32 %s231, 4
          %s239 = int_to_ptr.vmem [resolvable:$true] %s238
          %244 = dma.hbm_to_vmem [thread:$0]  %s237, 2048, %s239, %s228, 64, 64, 4
        $region36: #{retina_reg_head_forward.1} parent=31 // pred_fallthru
          _
      $region32: #{retina_reg_head_forward.1} parent=5 // pred_fallthru
        _
      %p245 = scmp.le.s32.totalorder 1, %s19
      %p246 = scmp.lt.s32.totalorder %s19, 3
      %p247 = pnand %p245, %p246
      %p248 = pneg %p247
      // Predicated region
      $region37: #{retina_reg_head_forward.1} parent=5 // pred_check
        _
      $region38: #{retina_reg_head_forward.1} parent=5 // pred_check_branch
        %250 = sbr.rel (%p247) target = $region40
      $region39: #{retina_reg_head_forward.1} parent=5 // pred_region
        %s251 = ssub.s32 %s19, 1
        %s252 = sand.u32 %s32, 1
        %s253 = scalar_lea.sflag [#allocation4], %s252
        %s254 = sand.u32 %s32, 1
        %s255 = smul.addr %s254, 128
        %s256 = scalar_lea.vmem [#allocation3], %s255
        // Predicated region
        $region41: #{retina_reg_head_forward.1} parent=39 // pred_check
          %p257 = pneg %p45
        $region42: #{retina_reg_head_forward.1} parent=39 // pred_check_branch
          %259 = sbr.rel (%p257) target = $region44
        $region43: #{retina_reg_head_forward.1} parent=39 // pred_region
          %260 = dma.done %s253, 2048
        $region44: #{retina_reg_head_forward.1} parent=39 // pred_fallthru
          _
        // Predicated region
        $region45: #{retina_reg_head_forward.1} parent=39 // pred_check
          %p261 = pneg %p66
        $region46: #{retina_reg_head_forward.1} parent=39 // pred_check_branch
          %263 = sbr.rel (%p261) target = $region48
        $region47: #{retina_reg_head_forward.1} parent=39 // pred_region
          %264 = dma.done [#allocation7], 9216
        $region48: #{retina_reg_head_forward.1} parent=39 // pred_fallthru
          _
        // Predicated region
        $region49: #{retina_reg_head_forward.1} parent=39 // pred_check
          %p265 = pneg %p87
        $region50: #{retina_reg_head_forward.1} parent=39 // pred_check_branch
          %267 = sbr.rel (%p265) target = $region52
        $region51: #{retina_reg_head_forward.1} parent=39 // pred_region
          %268 = dma.done [#allocation7], 64
        $region52: #{retina_reg_head_forward.1} parent=39 // pred_fallthru
          _
        // Predicated region
        $region53: #{retina_reg_head_forward.1} parent=39 // pred_check
          %p269 = pneg %p108
        $region54: #{retina_reg_head_forward.1} parent=39 // pred_check_branch
          %271 = sbr.rel (%p269) target = $region56
        $region55: #{retina_reg_head_forward.1} parent=39 // pred_region
          %272 = dma.done [#allocation10], 2304
        $region56: #{retina_reg_head_forward.1} parent=39 // pred_fallthru
          _
        // Predicated region
        $region57: #{retina_reg_head_forward.1} parent=39 // pred_check
          %p273 = pneg %p129
        $region58: #{retina_reg_head_forward.1} parent=39 // pred_check_branch
          %275 = sbr.rel (%p273) target = $region60
        $region59: #{retina_reg_head_forward.1} parent=39 // pred_region
          %276 = dma.done [#allocation10], 16
        $region60: #{retina_reg_head_forward.1} parent=39 // pred_fallthru
          _
        %s277 = sand.u32 %s32, 1
        %s278 = scalar_lea.sflag [#allocation4], %s277
        %s279 = sand.u32 %s32, 1
        %s280 = smul.addr %s279, 128
        %s281 = scalar_lea.vmem [#allocation3], %s280
        %p282 = pneg %p45
        %p283 = pneg %p42
        %p284 = pneg %p66
        %p285 = pneg %p63
        %p286 = pneg %p87
        %p287 = pneg %p84
        %p288 = pneg %p108
        %p289 = pneg %p105
        %p290 = pneg %p129
        %p291 = pneg %p126
        %p292 = pneg %p155
        %p293 = pneg %p152
        %s294 = sand.u32 %s142, 1
        %s295 = scalar_lea.sflag [#allocation5], %s294
        %s296 = sand.u32 %s142, 1
        %s297 = smul.addr %s296, 256
        %s298 = scalar_lea.vmem [#allocation12], %s297
        %vm300 = vcmask 785408
        %301 = vst.msk [vmem:[#allocation2] sm:$0xff] %vm300, 0
        %s302 = scalar_lea.vmem [#allocation2], 136
        %303 = vst.msk [vmem:[%s302] sm:$0xff] %vm300, 0
        %s304 = scalar_lea.vmem [#allocation2], 8
        %vm305 = vcmask 253952
        %vm306 = vsmask.f32 256
        %vm307 = vmand %vm305, %vm306
        %v308 = vld [vmem:[%s304] sm:$0x1]
        %v309 = vsel %vm307, 0, %v308
        %310 = vst [vmem:[%s304] sm:$0x1] %v309
        %v311 = vld [vmem:[%s304 + $0x8] sm:$0x1]
        %v312 = vsel %vm307, 0, %v311
        %313 = vst [vmem:[%s304 + $0x8] sm:$0x1] %v312
        %v314 = vld [vmem:[%s304 + $0x10] sm:$0x1]
        %v315 = vsel %vm307, 0, %v314
        %316 = vst [vmem:[%s304 + $0x10] sm:$0x1] %v315
        %v317 = vld [vmem:[%s304 + $0x18] sm:$0x1]
        %v318 = vsel %vm307, 0, %v317
        %319 = vst [vmem:[%s304 + $0x18] sm:$0x1] %v318
        %v320 = vld [vmem:[%s304 + $0x20] sm:$0x1]
        %v321 = vsel %vm307, 0, %v320
        %322 = vst [vmem:[%s304 + $0x20] sm:$0x1] %v321
        %v323 = vld [vmem:[%s304 + $0x28] sm:$0x1]
        %v324 = vsel %vm307, 0, %v323
        %325 = vst [vmem:[%s304 + $0x28] sm:$0x1] %v324
        %v326 = vld [vmem:[%s304 + $0x30] sm:$0x1]
        %v327 = vsel %vm307, 0, %v326
        %328 = vst [vmem:[%s304 + $0x30] sm:$0x1] %v327
        %v329 = vld [vmem:[%s304 + $0x38] sm:$0x1]
        %v330 = vsel %vm307, 0, %v329
        %331 = vst [vmem:[%s304 + $0x38] sm:$0x1] %v330
        %v332 = vld [vmem:[%s304 + $0x40] sm:$0x1]
        %v333 = vsel %vm307, 0, %v332
        %334 = vst [vmem:[%s304 + $0x40] sm:$0x1] %v333
        %v335 = vld [vmem:[%s304 + $0x48] sm:$0x1]
        %v336 = vsel %vm307, 0, %v335
        %337 = vst [vmem:[%s304 + $0x48] sm:$0x1] %v336
        %v338 = vld [vmem:[%s304 + $0x50] sm:$0x1]
        %v339 = vsel %vm307, 0, %v338
        %340 = vst [vmem:[%s304 + $0x50] sm:$0x1] %v339
        %v341 = vld [vmem:[%s304 + $0x58] sm:$0x1]
        %v342 = vsel %vm307, 0, %v341
        %343 = vst [vmem:[%s304 + $0x58] sm:$0x1] %v342
        %v344 = vld [vmem:[%s304 + $0x60] sm:$0x1]
        %v345 = vsel %vm307, 0, %v344
        %346 = vst [vmem:[%s304 + $0x60] sm:$0x1] %v345
        %v347 = vld [vmem:[%s304 + $0x68] sm:$0x1]
        %v348 = vsel %vm307, 0, %v347
        %349 = vst [vmem:[%s304 + $0x68] sm:$0x1] %v348
        %v350 = vld [vmem:[%s304 + $0x70] sm:$0x1]
        %v351 = vsel %vm307, 0, %v350
        %352 = vst [vmem:[%s304 + $0x70] sm:$0x1] %v351
        %v353 = vld [vmem:[%s304 + $0x78] sm:$0x1]
        %v354 = vsel %vm307, 0, %v353
        %355 = vst [vmem:[%s304 + $0x78] sm:$0x1] %v354
        %vm356 = vcmask 785927
        %vm357 = vsmask.f32 7966
        %vm358 = vmand %vm356, %vm357
        %v359 = vld [vmem:[%s304] sm:$0x80]
        %v360 = vsel %vm358, 0, %v359
        %361 = vst [vmem:[%s304] sm:$0x80] %v360
        %v362 = vld [vmem:[%s304 + $0x8] sm:$0x80]
        %v363 = vsel %vm358, 0, %v362
        %364 = vst [vmem:[%s304 + $0x8] sm:$0x80] %v363
        %v365 = vld [vmem:[%s304 + $0x10] sm:$0x80]
        %v366 = vsel %vm358, 0, %v365
        %367 = vst [vmem:[%s304 + $0x10] sm:$0x80] %v366
        %v368 = vld [vmem:[%s304 + $0x18] sm:$0x80]
        %v369 = vsel %vm358, 0, %v368
        %370 = vst [vmem:[%s304 + $0x18] sm:$0x80] %v369
        %v371 = vld [vmem:[%s304 + $0x20] sm:$0x80]
        %v372 = vsel %vm358, 0, %v371
        %373 = vst [vmem:[%s304 + $0x20] sm:$0x80] %v372
        %v374 = vld [vmem:[%s304 + $0x28] sm:$0x80]
        %v375 = vsel %vm358, 0, %v374
        %376 = vst [vmem:[%s304 + $0x28] sm:$0x80] %v375
        %v377 = vld [vmem:[%s304 + $0x30] sm:$0x80]
        %v378 = vsel %vm358, 0, %v377
        %379 = vst [vmem:[%s304 + $0x30] sm:$0x80] %v378
        %v380 = vld [vmem:[%s304 + $0x38] sm:$0x80]
        %v381 = vsel %vm358, 0, %v380
        %382 = vst [vmem:[%s304 + $0x38] sm:$0x80] %v381
        %v383 = vld [vmem:[%s304 + $0x40] sm:$0x80]
        %v384 = vsel %vm358, 0, %v383
        %385 = vst [vmem:[%s304 + $0x40] sm:$0x80] %v384
        %v386 = vld [vmem:[%s304 + $0x48] sm:$0x80]
        %v387 = vsel %vm358, 0, %v386
        %388 = vst [vmem:[%s304 + $0x48] sm:$0x80] %v387
        %v389 = vld [vmem:[%s304 + $0x50] sm:$0x80]
        %v390 = vsel %vm358, 0, %v389
        %391 = vst [vmem:[%s304 + $0x50] sm:$0x80] %v390
        %v392 = vld [vmem:[%s304 + $0x58] sm:$0x80]
        %v393 = vsel %vm358, 0, %v392
        %394 = vst [vmem:[%s304 + $0x58] sm:$0x80] %v393
        %v395 = vld [vmem:[%s304 + $0x60] sm:$0x80]
        %v396 = vsel %vm358, 0, %v395
        %397 = vst [vmem:[%s304 + $0x60] sm:$0x80] %v396
        %v398 = vld [vmem:[%s304 + $0x68] sm:$0x80]
        %v399 = vsel %vm358, 0, %v398
        %400 = vst [vmem:[%s304 + $0x68] sm:$0x80] %v399
        %v401 = vld [vmem:[%s304 + $0x70] sm:$0x80]
        %v402 = vsel %vm358, 0, %v401
        %403 = vst [vmem:[%s304 + $0x70] sm:$0x80] %v402
        %v404 = vld [vmem:[%s304 + $0x78] sm:$0x80]
        %v405 = vsel %vm358, 0, %v404
        %406 = vst [vmem:[%s304 + $0x78] sm:$0x80] %v405
        %v407 = vld [vmem:[%s256] sm:$0xf]
        %v408 = vld [vmem:[%s256 + $0x4] sm:$0xf]
        %v409 = vld [vmem:[%s256 + $0x8] sm:$0xf]
        %v410 = vld [vmem:[%s256 + $0xc] sm:$0xf]
        %v411 = vld [vmem:[%s256 + $0x10] sm:$0xf]
        %v412 = vld [vmem:[%s256 + $0x14] sm:$0xf]
        %v413 = vld [vmem:[%s256 + $0x18] sm:$0xf]
        %v414 = vld [vmem:[%s256 + $0x1c] sm:$0xf]
        %v415 = vld [vmem:[%s256 + $0x20] sm:$0xf]
        %v416 = vld [vmem:[%s256 + $0x24] sm:$0xf]
        %v417 = vld [vmem:[%s256 + $0x28] sm:$0xf]
        %v418 = vld [vmem:[%s256 + $0x2c] sm:$0xf]
        %v419 = vld [vmem:[%s256 + $0x30] sm:$0xf]
        %v420 = vld [vmem:[%s256 + $0x34] sm:$0xf]
        %v421 = vld [vmem:[%s256 + $0x38] sm:$0xf]
        %v422 = vld [vmem:[%s256 + $0x3c] sm:$0xf]
        %v423 = vld [vmem:[%s256 + $0x40] sm:$0xf]
        %v424 = vld [vmem:[%s256 + $0x44] sm:$0xf]
        %v425 = vld [vmem:[%s256 + $0x48] sm:$0xf]
        %v426 = vld [vmem:[%s256 + $0x4c] sm:$0xf]
        %v427 = vld [vmem:[%s256 + $0x50] sm:$0xf]
        %v428 = vld [vmem:[%s256 + $0x54] sm:$0xf]
        %v429 = vld [vmem:[%s256 + $0x58] sm:$0xf]
        %v430 = vld [vmem:[%s256 + $0x5c] sm:$0xf]
        %v431 = vld [vmem:[%s256 + $0x60] sm:$0xf]
        %v432 = vld [vmem:[%s256 + $0x64] sm:$0xf]
        %v433 = vld [vmem:[%s256 + $0x68] sm:$0xf]
        %v434 = vld [vmem:[%s256 + $0x6c] sm:$0xf]
        %v435 = vld [vmem:[%s256 + $0x70] sm:$0xf]
        %v436 = vld [vmem:[%s256 + $0x74] sm:$0xf]
        %v437 = vld [vmem:[%s256 + $0x78] sm:$0xf]
        %v438 = vld [vmem:[%s256 + $0x7c] sm:$0xf]
        %v471 = vunpack.c.l.b16 %v407
        %v472 = vunpack.c.l.b16 %v408
        %v473 = vunpack.c.l.b16 %v409
        %v474 = vunpack.c.l.b16 %v410
        %v475 = vunpack.c.l.b16 %v411
        %v476 = vunpack.c.l.b16 %v412
        %v477 = vunpack.c.l.b16 %v413
        %v478 = vunpack.c.l.b16 %v414
        %v479 = vunpack.c.l.b16 %v415
        %v480 = vunpack.c.l.b16 %v416
        %v481 = vunpack.c.l.b16 %v417
        %v482 = vunpack.c.l.b16 %v418
        %v483 = vunpack.c.l.b16 %v419
        %v484 = vunpack.c.l.b16 %v420
        %v485 = vunpack.c.l.b16 %v421
        %v486 = vunpack.c.l.b16 %v422
        %v487 = vunpack.c.l.b16 %v423
        %v488 = vunpack.c.l.b16 %v424
        %v489 = vunpack.c.l.b16 %v425
        %v490 = vunpack.c.l.b16 %v426
        %v491 = vunpack.c.l.b16 %v427
        %v492 = vunpack.c.l.b16 %v428
        %v493 = vunpack.c.l.b16 %v429
        %v494 = vunpack.c.l.b16 %v430
        %v495 = vunpack.c.l.b16 %v431
        %v496 = vunpack.c.l.b16 %v432
        %v497 = vunpack.c.l.b16 %v433
        %v498 = vunpack.c.l.b16 %v434
        %v499 = vunpack.c.l.b16 %v435
        %v500 = vunpack.c.l.b16 %v436
        %v501 = vunpack.c.l.b16 %v437
        %v502 = vunpack.c.l.b16 %v438
        %v503 = vpack.c.b16 %v472, %v471
        %v504 = vpack.c.b16 %v474, %v473
        %v505 = vpack.c.b16 %v476, %v475
        %v506 = vpack.c.b16 %v478, %v477
        %v507 = vpack.c.b16 %v480, %v479
        %v508 = vpack.c.b16 %v482, %v481
        %v509 = vpack.c.b16 %v484, %v483
        %v510 = vpack.c.b16 %v486, %v485
        %v511 = vpack.c.b16 %v488, %v487
        %v512 = vpack.c.b16 %v490, %v489
        %v513 = vpack.c.b16 %v492, %v491
        %v514 = vpack.c.b16 %v494, %v493
        %v515 = vpack.c.b16 %v496, %v495
        %v516 = vpack.c.b16 %v498, %v497
        %v517 = vpack.c.b16 %v500, %v499
        %v518 = vpack.c.b16 %v502, %v501
        %519 = vrot.lane.b32.xlu0 %v503, 32
        %v520 = vpop.permute.xlu0 %519
        %521 = vrot.lane.b32.xlu0 %v504, 32
        %v522 = vpop.permute.xlu0 %521
        %523 = vrot.lane.b32.xlu0 %v505, 32
        %v524 = vpop.permute.xlu0 %523
        %525 = vrot.lane.b32.xlu0 %v506, 32
        %v526 = vpop.permute.xlu0 %525
        %527 = vrot.lane.b32.xlu0 %v507, 32
        %v528 = vpop.permute.xlu0 %527
        %529 = vrot.lane.b32.xlu0 %v508, 32
        %v530 = vpop.permute.xlu0 %529
        %531 = vrot.lane.b32.xlu0 %v509, 32
        %v532 = vpop.permute.xlu0 %531
        %533 = vrot.lane.b32.xlu0 %v510, 32
        %v534 = vpop.permute.xlu0 %533
        %535 = vrot.lane.b32.xlu0 %v511, 32
        %v536 = vpop.permute.xlu0 %535
        %537 = vrot.lane.b32.xlu0 %v512, 32
        %v538 = vpop.permute.xlu0 %537
        %539 = vrot.lane.b32.xlu0 %v513, 32
        %v540 = vpop.permute.xlu0 %539
        %541 = vrot.lane.b32.xlu0 %v514, 32
        %v542 = vpop.permute.xlu0 %541
        %543 = vrot.lane.b32.xlu0 %v515, 32
        %v544 = vpop.permute.xlu0 %543
        %545 = vrot.lane.b32.xlu0 %v516, 32
        %v546 = vpop.permute.xlu0 %545
        %547 = vrot.lane.b32.xlu0 %v517, 32
        %v548 = vpop.permute.xlu0 %547
        %549 = vrot.lane.b32.xlu0 %v518, 32
        %v550 = vpop.permute.xlu0 %549
        %vm567 = vcmask 523520
        %568 = vst.msk [vmem:[%s304] sm:$0xff] %vm567, %v520
        %569 = vst.msk [vmem:[%s304 + $0x8] sm:$0xff] %vm567, %v522
        %570 = vst.msk [vmem:[%s304 + $0x10] sm:$0xff] %vm567, %v524
        %571 = vst.msk [vmem:[%s304 + $0x18] sm:$0xff] %vm567, %v526
        %572 = vst.msk [vmem:[%s304 + $0x20] sm:$0xff] %vm567, %v528
        %573 = vst.msk [vmem:[%s304 + $0x28] sm:$0xff] %vm567, %v530
        %574 = vst.msk [vmem:[%s304 + $0x30] sm:$0xff] %vm567, %v532
        %575 = vst.msk [vmem:[%s304 + $0x38] sm:$0xff] %vm567, %v534
        %576 = vst.msk [vmem:[%s304 + $0x40] sm:$0xff] %vm567, %v536
        %577 = vst.msk [vmem:[%s304 + $0x48] sm:$0xff] %vm567, %v538
        %578 = vst.msk [vmem:[%s304 + $0x50] sm:$0xff] %vm567, %v540
        %579 = vst.msk [vmem:[%s304 + $0x58] sm:$0xff] %vm567, %v542
        %580 = vst.msk [vmem:[%s304 + $0x60] sm:$0xff] %vm567, %v544
        %581 = vst.msk [vmem:[%s304 + $0x68] sm:$0xff] %vm567, %v546
        %582 = vst.msk [vmem:[%s304 + $0x70] sm:$0xff] %vm567, %v548
        %583 = vst.msk [vmem:[%s304 + $0x78] sm:$0xff] %vm567, %v550
        %v585 = vshrl.u32 %v503, 16
        %v587 = vrot.slane %v585, 7
        %v588 = vshll.u32 %v503, 16
        %v590 = vor.u32 %v587, %v588
        %v592 = vshrl.u32 %v504, 16
        %v594 = vrot.slane %v592, 7
        %v595 = vshll.u32 %v504, 16
        %v597 = vor.u32 %v594, %v595
        %v599 = vshrl.u32 %v505, 16
        %v601 = vrot.slane %v599, 7
        %v602 = vshll.u32 %v505, 16
        %v604 = vor.u32 %v601, %v602
        %v606 = vshrl.u32 %v506, 16
        %v608 = vrot.slane %v606, 7
        %v609 = vshll.u32 %v506, 16
        %v611 = vor.u32 %v608, %v609
        %v613 = vshrl.u32 %v507, 16
        %v615 = vrot.slane %v613, 7
        %v616 = vshll.u32 %v507, 16
        %v618 = vor.u32 %v615, %v616
        %v620 = vshrl.u32 %v508, 16
        %v622 = vrot.slane %v620, 7
        %v623 = vshll.u32 %v508, 16
        %v625 = vor.u32 %v622, %v623
        %v627 = vshrl.u32 %v509, 16
        %v629 = vrot.slane %v627, 7
        %v630 = vshll.u32 %v509, 16
        %v632 = vor.u32 %v629, %v630
        %v634 = vshrl.u32 %v510, 16
        %v636 = vrot.slane %v634, 7
        %v637 = vshll.u32 %v510, 16
        %v639 = vor.u32 %v636, %v637
        %v641 = vshrl.u32 %v511, 16
        %v643 = vrot.slane %v641, 7
        %v644 = vshll.u32 %v511, 16
        %v646 = vor.u32 %v643, %v644
        %v648 = vshrl.u32 %v512, 16
        %v650 = vrot.slane %v648, 7
        %v651 = vshll.u32 %v512, 16
        %v653 = vor.u32 %v650, %v651
        %v655 = vshrl.u32 %v513, 16
        %v657 = vrot.slane %v655, 7
        %v658 = vshll.u32 %v513, 16
        %v660 = vor.u32 %v657, %v658
        %v662 = vshrl.u32 %v514, 16
        %v664 = vrot.slane %v662, 7
        %v665 = vshll.u32 %v514, 16
        %v667 = vor.u32 %v664, %v665
        %v669 = vshrl.u32 %v515, 16
        %v671 = vrot.slane %v669, 7
        %v672 = vshll.u32 %v515, 16
        %v674 = vor.u32 %v671, %v672
        %v676 = vshrl.u32 %v516, 16
        %v678 = vrot.slane %v676, 7
        %v679 = vshll.u32 %v516, 16
        %v681 = vor.u32 %v678, %v679
        %v683 = vshrl.u32 %v517, 16
        %v685 = vrot.slane %v683, 7
        %v686 = vshll.u32 %v517, 16
        %v688 = vor.u32 %v685, %v686
        %v690 = vshrl.u32 %v518, 16
        %v692 = vrot.slane %v690, 7
        %v693 = vshll.u32 %v518, 16
        %v695 = vor.u32 %v692, %v693
        %vm712 = vcmask 261120
        %vm713 = vsmask.f32 7938
        %vm714 = vmand %vm712, %vm713
        %v715 = vld [vmem:[%s304] sm:$0xff]
        %v716 = vsel %vm714, %v590, %v715
        %717 = vst [vmem:[%s304] sm:$0xff] %v716
        %v718 = vld [vmem:[%s304 + $0x8] sm:$0xff]
        %v719 = vsel %vm714, %v597, %v718
        %720 = vst [vmem:[%s304 + $0x8] sm:$0xff] %v719
        %v721 = vld [vmem:[%s304 + $0x10] sm:$0xff]
        %v722 = vsel %vm714, %v604, %v721
        %723 = vst [vmem:[%s304 + $0x10] sm:$0xff] %v722
        %v724 = vld [vmem:[%s304 + $0x18] sm:$0xff]
        %v725 = vsel %vm714, %v611, %v724
        %726 = vst [vmem:[%s304 + $0x18] sm:$0xff] %v725
        %v727 = vld [vmem:[%s304 + $0x20] sm:$0xff]
        %v728 = vsel %vm714, %v618, %v727
        %729 = vst [vmem:[%s304 + $0x20] sm:$0xff] %v728
        %v730 = vld [vmem:[%s304 + $0x28] sm:$0xff]
        %v731 = vsel %vm714, %v625, %v730
        %732 = vst [vmem:[%s304 + $0x28] sm:$0xff] %v731
        %v733 = vld [vmem:[%s304 + $0x30] sm:$0xff]
        %v734 = vsel %vm714, %v632, %v733
        %735 = vst [vmem:[%s304 + $0x30] sm:$0xff] %v734
        %v736 = vld [vmem:[%s304 + $0x38] sm:$0xff]
        %v737 = vsel %vm714, %v639, %v736
        %738 = vst [vmem:[%s304 + $0x38] sm:$0xff] %v737
        %v739 = vld [vmem:[%s304 + $0x40] sm:$0xff]
        %v740 = vsel %vm714, %v646, %v739
        %741 = vst [vmem:[%s304 + $0x40] sm:$0xff] %v740
        %v742 = vld [vmem:[%s304 + $0x48] sm:$0xff]
        %v743 = vsel %vm714, %v653, %v742
        %744 = vst [vmem:[%s304 + $0x48] sm:$0xff] %v743
        %v745 = vld [vmem:[%s304 + $0x50] sm:$0xff]
        %v746 = vsel %vm714, %v660, %v745
        %747 = vst [vmem:[%s304 + $0x50] sm:$0xff] %v746
        %v748 = vld [vmem:[%s304 + $0x58] sm:$0xff]
        %v749 = vsel %vm714, %v667, %v748
        %750 = vst [vmem:[%s304 + $0x58] sm:$0xff] %v749
        %v751 = vld [vmem:[%s304 + $0x60] sm:$0xff]
        %v752 = vsel %vm714, %v674, %v751
        %753 = vst [vmem:[%s304 + $0x60] sm:$0xff] %v752
        %v754 = vld [vmem:[%s304 + $0x68] sm:$0xff]
        %v755 = vsel %vm714, %v681, %v754
        %756 = vst [vmem:[%s304 + $0x68] sm:$0xff] %v755
        %v757 = vld [vmem:[%s304 + $0x70] sm:$0xff]
        %v758 = vsel %vm714, %v688, %v757
        %759 = vst [vmem:[%s304 + $0x70] sm:$0xff] %v758
        %v760 = vld [vmem:[%s304 + $0x78] sm:$0xff]
        %v761 = vsel %vm714, %v695, %v760
        %762 = vst [vmem:[%s304 + $0x78] sm:$0xff] %v761
        %v763 = vrot.slane %v588, 1
        %v764 = vor.u32 %v585, %v763
        %v765 = vrot.slane %v595, 1
        %v766 = vor.u32 %v592, %v765
        %v767 = vrot.slane %v602, 1
        %v768 = vor.u32 %v599, %v767
        %v769 = vrot.slane %v609, 1
        %v770 = vor.u32 %v606, %v769
        %v771 = vrot.slane %v616, 1
        %v772 = vor.u32 %v613, %v771
        %v773 = vrot.slane %v623, 1
        %v774 = vor.u32 %v620, %v773
        %v775 = vrot.slane %v630, 1
        %v776 = vor.u32 %v627, %v775
        %v777 = vrot.slane %v637, 1
        %v778 = vor.u32 %v634, %v777
        %v779 = vrot.slane %v644, 1
        %v780 = vor.u32 %v641, %v779
        %v781 = vrot.slane %v651, 1
        %v782 = vor.u32 %v648, %v781
        %v783 = vrot.slane %v658, 1
        %v784 = vor.u32 %v655, %v783
        %v785 = vrot.slane %v665, 1
        %v786 = vor.u32 %v662, %v785
        %v787 = vrot.slane %v672, 1
        %v788 = vor.u32 %v669, %v787
        %v789 = vrot.slane %v679, 1
        %v790 = vor.u32 %v676, %v789
        %v791 = vrot.slane %v686, 1
        %v792 = vor.u32 %v683, %v791
        %v793 = vrot.slane %v693, 1
        %v794 = vor.u32 %v690, %v793
        %795 = vrot.lane.b32.xlu0 %v764, 64
        %v796 = vpop.permute.xlu0 %795
        %797 = vrot.lane.b32.xlu0 %v766, 64
        %v798 = vpop.permute.xlu0 %797
        %799 = vrot.lane.b32.xlu0 %v768, 64
        %v800 = vpop.permute.xlu0 %799
        %801 = vrot.lane.b32.xlu0 %v770, 64
        %v802 = vpop.permute.xlu0 %801
        %803 = vrot.lane.b32.xlu0 %v772, 64
        %v804 = vpop.permute.xlu0 %803
        %805 = vrot.lane.b32.xlu0 %v774, 64
        %v806 = vpop.permute.xlu0 %805
        %807 = vrot.lane.b32.xlu0 %v776, 64
        %v808 = vpop.permute.xlu0 %807
        %809 = vrot.lane.b32.xlu0 %v778, 64
        %v810 = vpop.permute.xlu0 %809
        %811 = vrot.lane.b32.xlu0 %v780, 64
        %v812 = vpop.permute.xlu0 %811
        %813 = vrot.lane.b32.xlu0 %v782, 64
        %v814 = vpop.permute.xlu0 %813
        %815 = vrot.lane.b32.xlu0 %v784, 64
        %v816 = vpop.permute.xlu0 %815
        %817 = vrot.lane.b32.xlu0 %v786, 64
        %v818 = vpop.permute.xlu0 %817
        %819 = vrot.lane.b32.xlu0 %v788, 64
        %v820 = vpop.permute.xlu0 %819
        %821 = vrot.lane.b32.xlu0 %v790, 64
        %v822 = vpop.permute.xlu0 %821
        %823 = vrot.lane.b32.xlu0 %v792, 64
        %v824 = vpop.permute.xlu0 %823
        %825 = vrot.lane.b32.xlu0 %v794, 64
        %v826 = vpop.permute.xlu0 %825
        %vm843 = vcmask 785920
        %vm844 = vsmask.f32 7424
        %vm845 = vmand %vm843, %vm844
        %v846 = vld [vmem:[%s304] sm:$0xff]
        %v847 = vsel %vm845, %v796, %v846
        %848 = vst [vmem:[%s304] sm:$0xff] %v847
        %v849 = vld [vmem:[%s304 + $0x8] sm:$0xff]
        %v850 = vsel %vm845, %v798, %v849
        %851 = vst [vmem:[%s304 + $0x8] sm:$0xff] %v850
        %v852 = vld [vmem:[%s304 + $0x10] sm:$0xff]
        %v853 = vsel %vm845, %v800, %v852
        %854 = vst [vmem:[%s304 + $0x10] sm:$0xff] %v853
        %v855 = vld [vmem:[%s304 + $0x18] sm:$0xff]
        %v856 = vsel %vm845, %v802, %v855
        %857 = vst [vmem:[%s304 + $0x18] sm:$0xff] %v856
        %v858 = vld [vmem:[%s304 + $0x20] sm:$0xff]
        %v859 = vsel %vm845, %v804, %v858
        %860 = vst [vmem:[%s304 + $0x20] sm:$0xff] %v859
        %v861 = vld [vmem:[%s304 + $0x28] sm:$0xff]
        %v862 = vsel %vm845, %v806, %v861
        %863 = vst [vmem:[%s304 + $0x28] sm:$0xff] %v862
        %v864 = vld [vmem:[%s304 + $0x30] sm:$0xff]
        %v865 = vsel %vm845, %v808, %v864
        %866 = vst [vmem:[%s304 + $0x30] sm:$0xff] %v865
        %v867 = vld [vmem:[%s304 + $0x38] sm:$0xff]
        %v868 = vsel %vm845, %v810, %v867
        %869 = vst [vmem:[%s304 + $0x38] sm:$0xff] %v868
        %v870 = vld [vmem:[%s304 + $0x40] sm:$0xff]
        %v871 = vsel %vm845, %v812, %v870
        %872 = vst [vmem:[%s304 + $0x40] sm:$0xff] %v871
        %v873 = vld [vmem:[%s304 + $0x48] sm:$0xff]
        %v874 = vsel %vm845, %v814, %v873
        %875 = vst [vmem:[%s304 + $0x48] sm:$0xff] %v874
        %v876 = vld [vmem:[%s304 + $0x50] sm:$0xff]
        %v877 = vsel %vm845, %v816, %v876
        %878 = vst [vmem:[%s304 + $0x50] sm:$0xff] %v877
        %v879 = vld [vmem:[%s304 + $0x58] sm:$0xff]
        %v880 = vsel %vm845, %v818, %v879
        %881 = vst [vmem:[%s304 + $0x58] sm:$0xff] %v880
        %v882 = vld [vmem:[%s304 + $0x60] sm:$0xff]
        %v883 = vsel %vm845, %v820, %v882
        %884 = vst [vmem:[%s304 + $0x60] sm:$0xff] %v883
        %v885 = vld [vmem:[%s304 + $0x68] sm:$0xff]
        %v886 = vsel %vm845, %v822, %v885
        %887 = vst [vmem:[%s304 + $0x68] sm:$0xff] %v886
        %v888 = vld [vmem:[%s304 + $0x70] sm:$0xff]
        %v889 = vsel %vm845, %v824, %v888
        %890 = vst [vmem:[%s304 + $0x70] sm:$0xff] %v889
        %v891 = vld [vmem:[%s304 + $0x78] sm:$0xff]
        %v892 = vsel %vm845, %v826, %v891
        %893 = vst [vmem:[%s304 + $0x78] sm:$0xff] %v892
        loop: start=0, step=1, limit=4
        $region61: #{retina_reg_head_forward.1} parent=39 // loop_pre_header
          _
        $region62: #{retina_reg_head_forward.1} parent=39 // loop_header
          %s895 = sphi 0, %s899
          %p896 = scmp.ge.s32.totalorder %s895, 4
        $region63: #{retina_reg_head_forward.1} parent=39 // loop_header_branch
          %898 = sbr.rel (%p896) target = $region67
        $region64: #{retina_reg_head_forward.1} parent=39 // loop_body
          %v900 = vld [vmem:[#allocation2] sm:$0xff]
          %v901 = vld [vmem:[#allocation2 + $0x8] sm:$0xff]
          %v902 = vld [vmem:[#allocation2 + $0x10] sm:$0xff]
          %v903 = vld [vmem:[#allocation2 + $0x18] sm:$0xff]
          %v904 = vld [vmem:[#allocation2 + $0x20] sm:$0xff]
          %v905 = vld [vmem:[#allocation2 + $0x28] sm:$0xff]
          %v906 = vld [vmem:[#allocation2 + $0x30] sm:$0xff]
          %v907 = vld [vmem:[#allocation2 + $0x38] sm:$0xff]
          %v908 = vld [vmem:[#allocation2 + $0x40] sm:$0xff]
          %v909 = vld [vmem:[#allocation2 + $0x48] sm:$0xff]
          %v910 = vld [vmem:[#allocation2 + $0x50] sm:$0xff]
          %v911 = vld [vmem:[#allocation2 + $0x58] sm:$0xff]
          %v912 = vld [vmem:[#allocation2 + $0x60] sm:$0xff]
          %v913 = vld [vmem:[#allocation2 + $0x68] sm:$0xff]
          %v914 = vld [vmem:[#allocation2 + $0x70] sm:$0xff]
          %v915 = vld [vmem:[#allocation2 + $0x78] sm:$0xff]
          %s916 = smul.u32 %s895, 3
          %s917 = smul.u32 %s916, 12
          %s918 = smul.addr %s917, 4
          %s919 = scalar_lea.vmem [#allocation6], %s918
          %v920 = vld [vmem:[%s919] sm:$0xf]
          %v921 = vld [vmem:[%s919 + $0x4] sm:$0xf]
          %v922 = vld [vmem:[%s919 + $0x8] sm:$0xf]
          %v923 = vld [vmem:[%s919 + $0xc] sm:$0xf]
          %v924 = vld [vmem:[%s919 + $0x10] sm:$0xf]
          %v925 = vld [vmem:[%s919 + $0x14] sm:$0xf]
          %v926 = vld [vmem:[%s919 + $0x18] sm:$0xf]
          %v927 = vld [vmem:[%s919 + $0x1c] sm:$0xf]
          %v928 = vld [vmem:[%s919 + $0x20] sm:$0xf]
          %v929 = vld [vmem:[%s919 + $0x24] sm:$0xf]
          %v930 = vld [vmem:[%s919 + $0x28] sm:$0xf]
          %v931 = vld [vmem:[%s919 + $0x2c] sm:$0xf]
          %v932 = vld [vmem:[%s304] sm:$0xff]
          %v933 = vld [vmem:[%s304 + $0x8] sm:$0xff]
          %v934 = vld [vmem:[%s304 + $0x10] sm:$0xff]
          %v935 = vld [vmem:[%s304 + $0x18] sm:$0xff]
          %v936 = vld [vmem:[%s304 + $0x20] sm:$0xff]
          %v937 = vld [vmem:[%s304 + $0x28] sm:$0xff]
          %v938 = vld [vmem:[%s304 + $0x30] sm:$0xff]
          %v939 = vld [vmem:[%s304 + $0x38] sm:$0xff]
          %v940 = vld [vmem:[%s304 + $0x40] sm:$0xff]
          %v941 = vld [vmem:[%s304 + $0x48] sm:$0xff]
          %v942 = vld [vmem:[%s304 + $0x50] sm:$0xff]
          %v943 = vld [vmem:[%s304 + $0x58] sm:$0xff]
          %v944 = vld [vmem:[%s304 + $0x60] sm:$0xff]
          %v945 = vld [vmem:[%s304 + $0x68] sm:$0xff]
          %v946 = vld [vmem:[%s304 + $0x70] sm:$0xff]
          %v947 = vld [vmem:[%s304 + $0x78] sm:$0xff]
          %s948 = sadd.s32 %s916, 1
          %s949 = smul.u32 %s948, 12
          %s950 = smul.addr %s949, 4
          %s951 = scalar_lea.vmem [#allocation6], %s950
          %v952 = vld [vmem:[%s951] sm:$0xf]
          %v953 = vld [vmem:[%s951 + $0x4] sm:$0xf]
          %v954 = vld [vmem:[%s951 + $0x8] sm:$0xf]
          %v955 = vld [vmem:[%s951 + $0xc] sm:$0xf]
          %v956 = vld [vmem:[%s951 + $0x10] sm:$0xf]
          %v957 = vld [vmem:[%s951 + $0x14] sm:$0xf]
          %v958 = vld [vmem:[%s951 + $0x18] sm:$0xf]
          %v959 = vld [vmem:[%s951 + $0x1c] sm:$0xf]
          %v960 = vld [vmem:[%s951 + $0x20] sm:$0xf]
          %v961 = vld [vmem:[%s951 + $0x24] sm:$0xf]
          %v962 = vld [vmem:[%s951 + $0x28] sm:$0xf]
          %v963 = vld [vmem:[%s951 + $0x2c] sm:$0xf]
          %v976 = vunpack.c.l.b16 %v952
          %v977 = vunpack.c.l.b16 %v953
          %v978 = vunpack.c.l.b16 %v954
          %v979 = vunpack.c.l.b16 %v955
          %v980 = vunpack.c.l.b16 %v956
          %v981 = vunpack.c.l.b16 %v957
          %v982 = vunpack.c.l.b16 %v958
          %v983 = vunpack.c.l.b16 %v959
          %v984 = vunpack.c.l.b16 %v960
          %v985 = vunpack.c.l.b16 %v961
          %v986 = vunpack.c.l.b16 %v962
          %v987 = vunpack.c.l.b16 %v963
          %v988 = vpack.c.b16 %v977, %v976
          %v989 = vpack.c.b16 %v979, %v978
          %v990 = vpack.c.b16 %v981, %v980
          %v991 = vpack.c.b16 %v983, %v982
          %v992 = vpack.c.b16 %v985, %v984
          %v993 = vpack.c.b16 %v987, %v986
          %v1001 = vsel %vm300, %v932, 0
          %v1004 = vsel %vm300, %v933, 0
          %v1007 = vsel %vm300, %v934, 0
          %v1010 = vsel %vm300, %v935, 0
          %v1013 = vsel %vm300, %v936, 0
          %v1016 = vsel %vm300, %v937, 0
          %v1019 = vsel %vm300, %v938, 0
          %v1022 = vsel %vm300, %v939, 0
          %v1025 = vsel %vm300, %v940, 0
          %v1028 = vsel %vm300, %v941, 0
          %v1031 = vsel %vm300, %v942, 0
          %v1034 = vsel %vm300, %v943, 0
          %v1037 = vsel %vm300, %v944, 0
          %v1040 = vsel %vm300, %v945, 0
          %v1043 = vsel %vm300, %v946, 0
          %v1046 = vsel %vm300, %v947, 0
          %1048 = vmatprep.subr.bf16.mxu0 0
          %1049 = vmatpush1.bf16.msra.mxu0 %v988
          %1050 = vmatprep.subr.bf16.mxu0 0
          %1051 = vmatpush1.bf16.msra.mxu0 %v989
          %1052 = vmatprep.subr.bf16.mxu0 0
          %1053 = vmatpush1.bf16.msra.mxu0 %v990
          %1054 = vmatprep.subr.bf16.mxu0 0
          %1055 = vmatpush1.bf16.msra.mxu0 %v991
          %1056 = vmatprep.subr.bf16.mxu0 0
          %1057 = vmatpush1.bf16.msra.mxu0 %v992
          %1058 = vmatprep.subr.bf16.mxu0 0
          %1059 = vmatpush1.bf16.msra.mxu0 %v993
          %1060 = vmatprep.subr.bf16.mxu0 0
          %1061 = vmatpush1.bf16.msra.mxu0 0
          %1062 = vmatprep.subr.bf16.mxu0 0
          %1063 = vmatpush1.bf16.msra.mxu0 0
          %1064 = vmatprep.subr.bf16.mxu0 0
          %1065 = vmatpush1.bf16.msra.mxu0 0
          %1066 = vmatprep.subr.bf16.mxu0 0
          %1067 = vmatpush1.bf16.msra.mxu0 0
          %1068 = vmatprep.subr.bf16.mxu0 0
          %1069 = vmatpush1.bf16.msra.mxu0 0
          %1070 = vmatprep.subr.bf16.mxu0 0
          %1071 = vmatpush1.bf16.msra.mxu0 0
          %1072 = vmatprep.subr.bf16.mxu0 0
          %1073 = vmatpush1.bf16.msra.mxu0 0
          %1074 = vmatprep.subr.bf16.mxu0 0
          %1075 = vmatpush1.bf16.msra.mxu0 0
          %1076 = vmatprep.subr.bf16.mxu0 0
          %1077 = vmatpush1.bf16.msra.mxu0 0
          %1078 = vmatprep.subr.bf16.mxu0 0
          %1079 = vmatpush1.bf16.msra.mxu0 0
          %1080 = vmatprep.mubr.bf16.mxu0 0
          %1081 = vmatmul.mubr.bf16.gmra.mrb[0].mxu0 %v1001
          %v1082 = vpop.f32.mrb[0].mxu0
          %v1083 = vadd.f32 0.0, %v1082
          %v1084 = vpop.f32.mrb[0].mxu0
          %v1085 = vpop.f32.mrb[0].mxu0
          %v1086 = vadd.f32 0.0, %v1085
          %v1087 = vpop.f32.mrb[0].mxu0
          %1088 = vmatprep.mubr.bf16.mxu0 0
          %1089 = vmatmul.mubr.bf16.gmra.mrb[0].mxu0 %v1004
          %v1090 = vpop.f32.mrb[0].mxu0
          %v1091 = vadd.f32 0.0, %v1090
          %v1092 = vpop.f32.mrb[0].mxu0
          %v1093 = vpop.f32.mrb[0].mxu0
          %v1094 = vadd.f32 0.0, %v1093
          %v1095 = vpop.f32.mrb[0].mxu0
          %1096 = vmatprep.mubr.bf16.mxu0 0
          %1097 = vmatmul.mubr.bf16.gmra.mrb[0].mxu0 %v1007
          %v1098 = vpop.f32.mrb[0].mxu0
          %v1099 = vadd.f32 0.0, %v1098
          %v1100 = vpop.f32.mrb[0].mxu0
          %v1101 = vpop.f32.mrb[0].mxu0
          %v1102 = vadd.f32 0.0, %v1101
          %v1103 = vpop.f32.mrb[0].mxu0
          %1104 = vmatprep.mubr.bf16.mxu0 0
          %1105 = vmatmul.mubr.bf16.gmra.mrb[0].mxu0 %v1010
          %v1106 = vpop.f32.mrb[0].mxu0
          %v1107 = vadd.f32 0.0, %v1106
          %v1108 = vpop.f32.mrb[0].mxu0
          %v1109 = vpop.f32.mrb[0].mxu0
          %v1110 = vadd.f32 0.0, %v1109
          %v1111 = vpop.f32.mrb[0].mxu0
          %1112 = vmatprep.mubr.bf16.mxu0 0
          %1113 = vmatmul.mubr.bf16.gmra.mrb[0].mxu0 %v1013
          %v1114 = vpop.f32.mrb[0].mxu0
          %v1115 = vadd.f32 0.0, %v1114
          %v1116 = vpop.f32.mrb[0].mxu0
          %v1117 = vpop.f32.mrb[0].mxu0
          %v1118 = vadd.f32 0.0, %v1117
          %v1119 = vpop.f32.mrb[0].mxu0
          %1120 = vmatprep.mubr.bf16.mxu0 0
          %1121 = vmatmul.mubr.bf16.gmra.mrb[0].mxu0 %v1016
          %v1122 = vpop.f32.mrb[0].mxu0
          %v1123 = vadd.f32 0.0, %v1122
          %v1124 = vpop.f32.mrb[0].mxu0
          %v1125 = vpop.f32.mrb[0].mxu0
          %v1126 = vadd.f32 0.0, %v1125
          %v1127 = vpop.f32.mrb[0].mxu0
          %1128 = vmatprep.mubr.bf16.mxu0 0
          %1129 = vmatmul.mubr.bf16.gmra.mrb[0].mxu0 %v1019
          %v1130 = vpop.f32.mrb[0].mxu0
          %v1131 = vadd.f32 0.0, %v1130
          %v1132 = vpop.f32.mrb[0].mxu0
          %v1133 = vpop.f32.mrb[0].mxu0
          %v1134 = vadd.f32 0.0, %v1133
          %v1135 = vpop.f32.mrb[0].mxu0
          %1136 = vmatprep.mubr.bf16.mxu0 0
          %1137 = vmatmul.mubr.bf16.gmra.mrb[0].mxu0 %v1022
          %v1138 = vpop.f32.mrb[0].mxu0
          %v1139 = vadd.f32 0.0, %v1138
          %v1140 = vpop.f32.mrb[0].mxu0
          %v1141 = vpop.f32.mrb[0].mxu0
          %v1142 = vadd.f32 0.0, %v1141
          %v1143 = vpop.f32.mrb[0].mxu0
          %1144 = vmatprep.mubr.bf16.mxu0 0
          %1145 = vmatmul.mubr.bf16.gmra.mrb[0].mxu0 %v1025
          %v1146 = vpop.f32.mrb[0].mxu0
          %v1147 = vadd.f32 0.0, %v1146
          %v1148 = vpop.f32.mrb[0].mxu0
          %v1149 = vpop.f32.mrb[0].mxu0
          %v1150 = vadd.f32 0.0, %v1149
          %v1151 = vpop.f32.mrb[0].mxu0
          %1152 = vmatprep.mubr.bf16.mxu0 0
          %1153 = vmatmul.mubr.bf16.gmra.mrb[0].mxu0 %v1028
          %v1154 = vpop.f32.mrb[0].mxu0
          %v1155 = vadd.f32 0.0, %v1154
          %v1156 = vpop.f32.mrb[0].mxu0
          %v1157 = vpop.f32.mrb[0].mxu0
          %v1158 = vadd.f32 0.0, %v1157
          %v1159 = vpop.f32.mrb[0].mxu0
          %1160 = vmatprep.mubr.bf16.mxu0 0
          %1161 = vmatmul.mubr.bf16.gmra.mrb[0].mxu0 %v1031
          %v1162 = vpop.f32.mrb[0].mxu0
          %v1163 = vadd.f32 0.0, %v1162
          %v1164 = vpop.f32.mrb[0].mxu0
          %v1165 = vpop.f32.mrb[0].mxu0
          %v1166 = vadd.f32 0.0, %v1165
          %v1167 = vpop.f32.mrb[0].mxu0
          %1168 = vmatprep.mubr.bf16.mxu0 0
          %1169 = vmatmul.mubr.bf16.gmra.mrb[0].mxu0 %v1034
          %v1170 = vpop.f32.mrb[0].mxu0
          %v1171 = vadd.f32 0.0, %v1170
          %v1172 = vpop.f32.mrb[0].mxu0
          %v1173 = vpop.f32.mrb[0].mxu0
          %v1174 = vadd.f32 0.0, %v1173
          %v1175 = vpop.f32.mrb[0].mxu0
          %1176 = vmatprep.mubr.bf16.mxu0 0
          %1177 = vmatmul.mubr.bf16.gmra.mrb[0].mxu0 %v1037
          %v1178 = vpop.f32.mrb[0].mxu0
          %v1179 = vadd.f32 0.0, %v1178
          %v1180 = vpop.f32.mrb[0].mxu0
          %v1181 = vpop.f32.mrb[0].mxu0
          %v1182 = vadd.f32 0.0, %v1181
          %v1183 = vpop.f32.mrb[0].mxu0
          %1184 = vmatprep.mubr.bf16.mxu0 0
          %1185 = vmatmul.mubr.bf16.gmra.mrb[0].mxu0 %v1040
          %v1186 = vpop.f32.mrb[0].mxu0
          %v1187 = vadd.f32 0.0, %v1186
          %v1188 = vpop.f32.mrb[0].mxu0
          %v1189 = vpop.f32.mrb[0].mxu0
          %v1190 = vadd.f32 0.0, %v1189
          %v1191 = vpop.f32.mrb[0].mxu0
          %1192 = vmatprep.mubr.bf16.mxu0 0
          %1193 = vmatmul.mubr.bf16.gmra.mrb[0].mxu0 %v1043
          %v1194 = vpop.f32.mrb[0].mxu0
          %v1195 = vadd.f32 0.0, %v1194
          %v1196 = vpop.f32.mrb[0].mxu0
          %v1197 = vpop.f32.mrb[0].mxu0
          %v1198 = vadd.f32 0.0, %v1197
          %v1199 = vpop.f32.mrb[0].mxu0
          %1200 = vmatprep.mubr.bf16.mxu0 0
          %1201 = vmatmul.mubr.bf16.gmra.mrb[0].mxu0 %v1046
          %v1202 = vpop.f32.mrb[0].mxu0
          %v1203 = vadd.f32 0.0, %v1202
          %v1204 = vpop.f32.mrb[0].mxu0
          %v1205 = vpop.f32.mrb[0].mxu0
          %v1206 = vadd.f32 0.0, %v1205
          %v1207 = vpop.f32.mrb[0].mxu0
          %1208 = vdwg.mxu0
          %v1221 = vunpack.c.l.b16 %v920
          %v1222 = vunpack.c.l.b16 %v921
          %v1223 = vunpack.c.l.b16 %v922
          %v1224 = vunpack.c.l.b16 %v923
          %v1225 = vunpack.c.l.b16 %v924
          %v1226 = vunpack.c.l.b16 %v925
          %v1227 = vunpack.c.l.b16 %v926
          %v1228 = vunpack.c.l.b16 %v927
          %v1229 = vunpack.c.l.b16 %v928
          %v1230 = vunpack.c.l.b16 %v929
          %v1231 = vunpack.c.l.b16 %v930
          %v1232 = vunpack.c.l.b16 %v931
          %v1233 = vpack.c.b16 %v1222, %v1221
          %v1234 = vpack.c.b16 %v1224, %v1223
          %v1235 = vpack.c.b16 %v1226, %v1225
          %v1236 = vpack.c.b16 %v1228, %v1227
          %v1237 = vpack.c.b16 %v1230, %v1229
          %v1238 = vpack.c.b16 %v1232, %v1231
          %v1246 = vsel %vm300, %v900, 0
          %v1249 = vsel %vm300, %v901, 0
          %v1252 = vsel %vm300, %v902, 0
          %v1255 = vsel %vm300, %v903, 0
          %v1258 = vsel %vm300, %v904, 0
          %v1261 = vsel %vm300, %v905, 0
          %v1264 = vsel %vm300, %v906, 0
          %v1267 = vsel %vm300, %v907, 0
          %v1270 = vsel %vm300, %v908, 0
          %v1273 = vsel %vm300, %v909, 0
          %v1276 = vsel %vm300, %v910, 0
          %v1279 = vsel %vm300, %v911, 0
          %v1282 = vsel %vm300, %v912, 0
          %v1285 = vsel %vm300, %v913, 0
          %v1288 = vsel %vm300, %v914, 0
          %v1291 = vsel %vm300, %v915, 0
          %1293 = vmatprep.subr.bf16.mxu0 0
          %1294 = vmatpush1.bf16.msra.mxu0 %v1233
          %1295 = vmatprep.subr.bf16.mxu0 0
          %1296 = vmatpush1.bf16.msra.mxu0 %v1234
          %1297 = vmatprep.subr.bf16.mxu0 0
          %1298 = vmatpush1.bf16.msra.mxu0 %v1235
          %1299 = vmatprep.subr.bf16.mxu0 0
          %1300 = vmatpush1.bf16.msra.mxu0 %v1236
          %1301 = vmatprep.subr.bf16.mxu0 0
          %1302 = vmatpush1.bf16.msra.mxu0 %v1237
          %1303 = vmatprep.subr.bf16.mxu0 0
          %1304 = vmatpush1.bf16.msra.mxu0 %v1238
          %1305 = vmatprep.subr.bf16.mxu0 0
          %1306 = vmatpush1.bf16.msra.mxu0 0
          %1307 = vmatprep.subr.bf16.mxu0 0
          %1308 = vmatpush1.bf16.msra.mxu0 0
          %1309 = vmatprep.subr.bf16.mxu0 0
          %1310 = vmatpush1.bf16.msra.mxu0 0
          %1311 = vmatprep.subr.bf16.mxu0 0
          %1312 = vmatpush1.bf16.msra.mxu0 0
          %1313 = vmatprep.subr.bf16.mxu0 0
          %1314 = vmatpush1.bf16.msra.mxu0 0
          %1315 = vmatprep.subr.bf16.mxu0 0
          %1316 = vmatpush1.bf16.msra.mxu0 0
          %1317 = vmatprep.subr.bf16.mxu0 0
          %1318 = vmatpush1.bf16.msra.mxu0 0
          %1319 = vmatprep.subr.bf16.mxu0 0
          %1320 = vmatpush1.bf16.msra.mxu0 0
          %1321 = vmatprep.subr.bf16.mxu0 0
          %1322 = vmatpush1.bf16.msra.mxu0 0
          %1323 = vmatprep.subr.bf16.mxu0 0
          %1324 = vmatpush1.bf16.msra.mxu0 0
          %1325 = vmatprep.mubr.bf16.mxu0 0
          %1326 = vmatmul.mubr.bf16.gmra.mrb[0].mxu0 %v1246
          %v1327 = vpop.f32.mrb[0].mxu0
          %v1328 = vadd.f32 %v1083, %v1327
          %v1329 = vpop.f32.mrb[0].mxu0
          %v1330 = vpop.f32.mrb[0].mxu0
          %v1331 = vadd.f32 %v1086, %v1330
          %v1332 = vpop.f32.mrb[0].mxu0
          %1333 = vmatprep.mubr.bf16.mxu0 0
          %1334 = vmatmul.mubr.bf16.gmra.mrb[0].mxu0 %v1249
          %v1335 = vpop.f32.mrb[0].mxu0
          %v1336 = vadd.f32 %v1091, %v1335
          %v1337 = vpop.f32.mrb[0].mxu0
          %v1338 = vpop.f32.mrb[0].mxu0
          %v1339 = vadd.f32 %v1094, %v1338
          %v1340 = vpop.f32.mrb[0].mxu0
          %1341 = vmatprep.mubr.bf16.mxu0 0
          %1342 = vmatmul.mubr.bf16.gmra.mrb[0].mxu0 %v1252
          %v1343 = vpop.f32.mrb[0].mxu0
          %v1344 = vadd.f32 %v1099, %v1343
          %v1345 = vpop.f32.mrb[0].mxu0
          %v1346 = vpop.f32.mrb[0].mxu0
          %v1347 = vadd.f32 %v1102, %v1346
          %v1348 = vpop.f32.mrb[0].mxu0
          %1349 = vmatprep.mubr.bf16.mxu0 0
          %1350 = vmatmul.mubr.bf16.gmra.mrb[0].mxu0 %v1255
          %v1351 = vpop.f32.mrb[0].mxu0
          %v1352 = vadd.f32 %v1107, %v1351
          %v1353 = vpop.f32.mrb[0].mxu0
          %v1354 = vpop.f32.mrb[0].mxu0
          %v1355 = vadd.f32 %v1110, %v1354
          %v1356 = vpop.f32.mrb[0].mxu0
          %1357 = vmatprep.mubr.bf16.mxu0 0
          %1358 = vmatmul.mubr.bf16.gmra.mrb[0].mxu0 %v1258
          %v1359 = vpop.f32.mrb[0].mxu0
          %v1360 = vadd.f32 %v1115, %v1359
          %v1361 = vpop.f32.mrb[0].mxu0
          %v1362 = vpop.f32.mrb[0].mxu0
          %v1363 = vadd.f32 %v1118, %v1362
          %v1364 = vpop.f32.mrb[0].mxu0
          %1365 = vmatprep.mubr.bf16.mxu0 0
          %1366 = vmatmul.mubr.bf16.gmra.mrb[0].mxu0 %v1261
          %v1367 = vpop.f32.mrb[0].mxu0
          %v1368 = vadd.f32 %v1123, %v1367
          %v1369 = vpop.f32.mrb[0].mxu0
          %v1370 = vpop.f32.mrb[0].mxu0
          %v1371 = vadd.f32 %v1126, %v1370
          %v1372 = vpop.f32.mrb[0].mxu0
          %1373 = vmatprep.mubr.bf16.mxu0 0
          %1374 = vmatmul.mubr.bf16.gmra.mrb[0].mxu0 %v1264
          %v1375 = vpop.f32.mrb[0].mxu0
          %v1376 = vadd.f32 %v1131, %v1375
          %v1377 = vpop.f32.mrb[0].mxu0
          %v1378 = vpop.f32.mrb[0].mxu0
          %v1379 = vadd.f32 %v1134, %v1378
          %v1380 = vpop.f32.mrb[0].mxu0
          %1381 = vmatprep.mubr.bf16.mxu0 0
          %1382 = vmatmul.mubr.bf16.gmra.mrb[0].mxu0 %v1267
          %v1383 = vpop.f32.mrb[0].mxu0
          %v1384 = vadd.f32 %v1139, %v1383
          %v1385 = vpop.f32.mrb[0].mxu0
          %v1386 = vpop.f32.mrb[0].mxu0
          %v1387 = vadd.f32 %v1142, %v1386
          %v1388 = vpop.f32.mrb[0].mxu0
          %1389 = vmatprep.mubr.bf16.mxu0 0
          %1390 = vmatmul.mubr.bf16.gmra.mrb[0].mxu0 %v1270
          %v1391 = vpop.f32.mrb[0].mxu0
          %v1392 = vadd.f32 %v1147, %v1391
          %v1393 = vpop.f32.mrb[0].mxu0
          %v1394 = vpop.f32.mrb[0].mxu0
          %v1395 = vadd.f32 %v1150, %v1394
          %v1396 = vpop.f32.mrb[0].mxu0
          %1397 = vmatprep.mubr.bf16.mxu0 0
          %1398 = vmatmul.mubr.bf16.gmra.mrb[0].mxu0 %v1273
          %v1399 = vpop.f32.mrb[0].mxu0
          %v1400 = vadd.f32 %v1155, %v1399
          %v1401 = vpop.f32.mrb[0].mxu0
          %v1402 = vpop.f32.mrb[0].mxu0
          %v1403 = vadd.f32 %v1158, %v1402
          %v1404 = vpop.f32.mrb[0].mxu0
          %1405 = vmatprep.mubr.bf16.mxu0 0
          %1406 = vmatmul.mubr.bf16.gmra.mrb[0].mxu0 %v1276
          %v1407 = vpop.f32.mrb[0].mxu0
          %v1408 = vadd.f32 %v1163, %v1407
          %v1409 = vpop.f32.mrb[0].mxu0
          %v1410 = vpop.f32.mrb[0].mxu0
          %v1411 = vadd.f32 %v1166, %v1410
          %v1412 = vpop.f32.mrb[0].mxu0
          %1413 = vmatprep.mubr.bf16.mxu0 0
          %1414 = vmatmul.mubr.bf16.gmra.mrb[0].mxu0 %v1279
          %v1415 = vpop.f32.mrb[0].mxu0
          %v1416 = vadd.f32 %v1171, %v1415
          %v1417 = vpop.f32.mrb[0].mxu0
          %v1418 = vpop.f32.mrb[0].mxu0
          %v1419 = vadd.f32 %v1174, %v1418
          %v1420 = vpop.f32.mrb[0].mxu0
          %1421 = vmatprep.mubr.bf16.mxu0 0
          %1422 = vmatmul.mubr.bf16.gmra.mrb[0].mxu0 %v1282
          %v1423 = vpop.f32.mrb[0].mxu0
          %v1424 = vadd.f32 %v1179, %v1423
          %v1425 = vpop.f32.mrb[0].mxu0
          %v1426 = vpop.f32.mrb[0].mxu0
          %v1427 = vadd.f32 %v1182, %v1426
          %v1428 = vpop.f32.mrb[0].mxu0
          %1429 = vmatprep.mubr.bf16.mxu0 0
          %1430 = vmatmul.mubr.bf16.gmra.mrb[0].mxu0 %v1285
          %v1431 = vpop.f32.mrb[0].mxu0
          %v1432 = vadd.f32 %v1187, %v1431
          %v1433 = vpop.f32.mrb[0].mxu0
          %v1434 = vpop.f32.mrb[0].mxu0
          %v1435 = vadd.f32 %v1190, %v1434
          %v1436 = vpop.f32.mrb[0].mxu0
          %1437 = vmatprep.mubr.bf16.mxu0 0
          %1438 = vmatmul.mubr.bf16.gmra.mrb[0].mxu0 %v1288
          %v1439 = vpop.f32.mrb[0].mxu0
          %v1440 = vadd.f32 %v1195, %v1439
          %v1441 = vpop.f32.mrb[0].mxu0
          %v1442 = vpop.f32.mrb[0].mxu0
          %v1443 = vadd.f32 %v1198, %v1442
          %v1444 = vpop.f32.mrb[0].mxu0
          %1445 = vmatprep.mubr.bf16.mxu0 0
          %1446 = vmatmul.mubr.bf16.gmra.mrb[0].mxu0 %v1291
          %v1447 = vpop.f32.mrb[0].mxu0
          %v1448 = vadd.f32 %v1203, %v1447
          %v1449 = vpop.f32.mrb[0].mxu0
          %v1450 = vpop.f32.mrb[0].mxu0
          %v1451 = vadd.f32 %v1206, %v1450
          %v1452 = vpop.f32.mrb[0].mxu0
          %1453 = vdwg.mxu0
          %s1454 = scalar_lea.vmem [#allocation2], 16
          %v1455 = vld [vmem:[%s1454] sm:$0xff]
          %v1456 = vld [vmem:[%s1454 + $0x8] sm:$0xff]
          %v1457 = vld [vmem:[%s1454 + $0x10] sm:$0xff]
          %v1458 = vld [vmem:[%s1454 + $0x18] sm:$0xff]
          %v1459 = vld [vmem:[%s1454 + $0x20] sm:$0xff]
          %v1460 = vld [vmem:[%s1454 + $0x28] sm:$0xff]
          %v1461 = vld [vmem:[%s1454 + $0x30] sm:$0xff]
          %v1462 = vld [vmem:[%s1454 + $0x38] sm:$0xff]
          %v1463 = vld [vmem:[%s1454 + $0x40] sm:$0xff]
          %v1464 = vld [vmem:[%s1454 + $0x48] sm:$0xff]
          %v1465 = vld [vmem:[%s1454 + $0x50] sm:$0xff]
          %v1466 = vld [vmem:[%s1454 + $0x58] sm:$0xff]
          %v1467 = vld [vmem:[%s1454 + $0x60] sm:$0xff]
          %v1468 = vld [vmem:[%s1454 + $0x68] sm:$0xff]
          %v1469 = vld [vmem:[%s1454 + $0x70] sm:$0xff]
          %v1470 = vld [vmem:[%s1454 + $0x78] sm:$0xff]
          %s1471 = sadd.s32 %s916, 2
          %s1472 = smul.u32 %s1471, 12
          %s1473 = smul.addr %s1472, 4
          %s1474 = scalar_lea.vmem [#allocation6], %s1473
          %v1475 = vld [vmem:[%s1474] sm:$0xf]
          %v1476 = vld [vmem:[%s1474 + $0x4] sm:$0xf]
          %v1477 = vld [vmem:[%s1474 + $0x8] sm:$0xf]
          %v1478 = vld [vmem:[%s1474 + $0xc] sm:$0xf]
          %v1479 = vld [vmem:[%s1474 + $0x10] sm:$0xf]
          %v1480 = vld [vmem:[%s1474 + $0x14] sm:$0xf]
          %v1481 = vld [vmem:[%s1474 + $0x18] sm:$0xf]
          %v1482 = vld [vmem:[%s1474 + $0x1c] sm:$0xf]
          %v1483 = vld [vmem:[%s1474 + $0x20] sm:$0xf]
          %v1484 = vld [vmem:[%s1474 + $0x24] sm:$0xf]
          %v1485 = vld [vmem:[%s1474 + $0x28] sm:$0xf]
          %v1486 = vld [vmem:[%s1474 + $0x2c] sm:$0xf]
          %v1499 = vunpack.c.l.b16 %v1475
          %v1500 = vunpack.c.l.b16 %v1476
          %v1501 = vunpack.c.l.b16 %v1477
          %v1502 = vunpack.c.l.b16 %v1478
          %v1503 = vunpack.c.l.b16 %v1479
          %v1504 = vunpack.c.l.b16 %v1480
          %v1505 = vunpack.c.l.b16 %v1481
          %v1506 = vunpack.c.l.b16 %v1482
          %v1507 = vunpack.c.l.b16 %v1483
          %v1508 = vunpack.c.l.b16 %v1484
          %v1509 = vunpack.c.l.b16 %v1485
          %v1510 = vunpack.c.l.b16 %v1486
          %v1511 = vpack.c.b16 %v1500, %v1499
          %v1512 = vpack.c.b16 %v1502, %v1501
          %v1513 = vpack.c.b16 %v1504, %v1503
          %v1514 = vpack.c.b16 %v1506, %v1505
          %v1515 = vpack.c.b16 %v1508, %v1507
          %v1516 = vpack.c.b16 %v1510, %v1509
          %v1524 = vsel %vm300, %v1455, 0
          %v1527 = vsel %vm300, %v1456, 0
          %v1530 = vsel %vm300, %v1457, 0
          %v1533 = vsel %vm300, %v1458, 0
          %v1536 = vsel %vm300, %v1459, 0
          %v1539 = vsel %vm300, %v1460, 0
          %v1542 = vsel %vm300, %v1461, 0
          %v1545 = vsel %vm300, %v1462, 0
          %v1548 = vsel %vm300, %v1463, 0
          %v1551 = vsel %vm300, %v1464, 0
          %v1554 = vsel %vm300, %v1465, 0
          %v1557 = vsel %vm300, %v1466, 0
          %v1560 = vsel %vm300, %v1467, 0
          %v1563 = vsel %vm300, %v1468, 0
          %v1566 = vsel %vm300, %v1469, 0
          %v1569 = vsel %vm300, %v1470, 0
          %1571 = vmatprep.subr.bf16.mxu0 0
          %1572 = vmatpush1.bf16.msra.mxu0 %v1511
          %1573 = vmatprep.subr.bf16.mxu0 0
          %1574 = vmatpush1.bf16.msra.mxu0 %v1512
          %1575 = vmatprep.subr.bf16.mxu0 0
          %1576 = vmatpush1.bf16.msra.mxu0 %v1513
          %1577 = vmatprep.subr.bf16.mxu0 0
          %1578 = vmatpush1.bf16.msra.mxu0 %v1514
          %1579 = vmatprep.subr.bf16.mxu0 0
          %1580 = vmatpush1.bf16.msra.mxu0 %v1515
          %1581 = vmatprep.subr.bf16.mxu0 0
          %1582 = vmatpush1.bf16.msra.mxu0 %v1516
          %1583 = vmatprep.subr.bf16.mxu0 0
          %1584 = vmatpush1.bf16.msra.mxu0 0
          %1585 = vmatprep.subr.bf16.mxu0 0
          %1586 = vmatpush1.bf16.msra.mxu0 0
          %1587 = vmatprep.subr.bf16.mxu0 0
          %1588 = vmatpush1.bf16.msra.mxu0 0
          %1589 = vmatprep.subr.bf16.mxu0 0
          %1590 = vmatpush1.bf16.msra.mxu0 0
          %1591 = vmatprep.subr.bf16.mxu0 0
          %1592 = vmatpush1.bf16.msra.mxu0 0
          %1593 = vmatprep.subr.bf16.mxu0 0
          %1594 = vmatpush1.bf16.msra.mxu0 0
          %1595 = vmatprep.subr.bf16.mxu0 0
          %1596 = vmatpush1.bf16.msra.mxu0 0
          %1597 = vmatprep.subr.bf16.mxu0 0
          %1598 = vmatpush1.bf16.msra.mxu0 0
          %1599 = vmatprep.subr.bf16.mxu0 0
          %1600 = vmatpush1.bf16.msra.mxu0 0
          %1601 = vmatprep.subr.bf16.mxu0 0
          %1602 = vmatpush1.bf16.msra.mxu0 0
          %1603 = vmatprep.mubr.bf16.mxu0 0
          %1604 = vmatmul.mubr.bf16.gmra.mrb[0].mxu0 %v1524
          %v1605 = vpop.f32.mrb[0].mxu0
          %v1606 = vadd.f32 0.0, %v1605
          %v1607 = vpop.f32.mrb[0].mxu0
          %v1608 = vpop.f32.mrb[0].mxu0
          %v1609 = vadd.f32 0.0, %v1608
          %v1610 = vpop.f32.mrb[0].mxu0
          %1611 = vmatprep.mubr.bf16.mxu0 0
          %1612 = vmatmul.mubr.bf16.gmra.mrb[0].mxu0 %v1527
          %v1613 = vpop.f32.mrb[0].mxu0
          %v1614 = vadd.f32 0.0, %v1613
          %v1615 = vpop.f32.mrb[0].mxu0
          %v1616 = vpop.f32.mrb[0].mxu0
          %v1617 = vadd.f32 0.0, %v1616
          %v1618 = vpop.f32.mrb[0].mxu0
          %1619 = vmatprep.mubr.bf16.mxu0 0
          %1620 = vmatmul.mubr.bf16.gmra.mrb[0].mxu0 %v1530
          %v1621 = vpop.f32.mrb[0].mxu0
          %v1622 = vadd.f32 0.0, %v1621
          %v1623 = vpop.f32.mrb[0].mxu0
          %v1624 = vpop.f32.mrb[0].mxu0
          %v1625 = vadd.f32 0.0, %v1624
          %v1626 = vpop.f32.mrb[0].mxu0
          %1627 = vmatprep.mubr.bf16.mxu0 0
          %1628 = vmatmul.mubr.bf16.gmra.mrb[0].mxu0 %v1533
          %v1629 = vpop.f32.mrb[0].mxu0
          %v1630 = vadd.f32 0.0, %v1629
          %v1631 = vpop.f32.mrb[0].mxu0
          %v1632 = vpop.f32.mrb[0].mxu0
          %v1633 = vadd.f32 0.0, %v1632
          %v1634 = vpop.f32.mrb[0].mxu0
          %1635 = vmatprep.mubr.bf16.mxu0 0
          %1636 = vmatmul.mubr.bf16.gmra.mrb[0].mxu0 %v1536
          %v1637 = vpop.f32.mrb[0].mxu0
          %v1638 = vadd.f32 0.0, %v1637
          %v1639 = vpop.f32.mrb[0].mxu0
          %v1640 = vpop.f32.mrb[0].mxu0
          %v1641 = vadd.f32 0.0, %v1640
          %v1642 = vpop.f32.mrb[0].mxu0
          %1643 = vmatprep.mubr.bf16.mxu0 0
          %1644 = vmatmul.mubr.bf16.gmra.mrb[0].mxu0 %v1539
          %v1645 = vpop.f32.mrb[0].mxu0
          %v1646 = vadd.f32 0.0, %v1645
          %v1647 = vpop.f32.mrb[0].mxu0
          %v1648 = vpop.f32.mrb[0].mxu0
          %v1649 = vadd.f32 0.0, %v1648
          %v1650 = vpop.f32.mrb[0].mxu0
          %1651 = vmatprep.mubr.bf16.mxu0 0
          %1652 = vmatmul.mubr.bf16.gmra.mrb[0].mxu0 %v1542
          %v1653 = vpop.f32.mrb[0].mxu0
          %v1654 = vadd.f32 0.0, %v1653
          %v1655 = vpop.f32.mrb[0].mxu0
          %v1656 = vpop.f32.mrb[0].mxu0
          %v1657 = vadd.f32 0.0, %v1656
          %v1658 = vpop.f32.mrb[0].mxu0
          %1659 = vmatprep.mubr.bf16.mxu0 0
          %1660 = vmatmul.mubr.bf16.gmra.mrb[0].mxu0 %v1545
          %v1661 = vpop.f32.mrb[0].mxu0
          %v1662 = vadd.f32 0.0, %v1661
          %v1663 = vpop.f32.mrb[0].mxu0
          %v1664 = vpop.f32.mrb[0].mxu0
          %v1665 = vadd.f32 0.0, %v1664
          %v1666 = vpop.f32.mrb[0].mxu0
          %1667 = vmatprep.mubr.bf16.mxu0 0
          %1668 = vmatmul.mubr.bf16.gmra.mrb[0].mxu0 %v1548
          %v1669 = vpop.f32.mrb[0].mxu0
          %v1670 = vadd.f32 0.0, %v1669
          %v1671 = vpop.f32.mrb[0].mxu0
          %v1672 = vpop.f32.mrb[0].mxu0
          %v1673 = vadd.f32 0.0, %v1672
          %v1674 = vpop.f32.mrb[0].mxu0
          %1675 = vmatprep.mubr.bf16.mxu0 0
          %1676 = vmatmul.mubr.bf16.gmra.mrb[0].mxu0 %v1551
          %v1677 = vpop.f32.mrb[0].mxu0
          %v1678 = vadd.f32 0.0, %v1677
          %v1679 = vpop.f32.mrb[0].mxu0
          %v1680 = vpop.f32.mrb[0].mxu0
          %v1681 = vadd.f32 0.0, %v1680
          %v1682 = vpop.f32.mrb[0].mxu0
          %1683 = vmatprep.mubr.bf16.mxu0 0
          %1684 = vmatmul.mubr.bf16.gmra.mrb[0].mxu0 %v1554
          %v1685 = vpop.f32.mrb[0].mxu0
          %v1686 = vadd.f32 0.0, %v1685
          %v1687 = vpop.f32.mrb[0].mxu0
          %v1688 = vpop.f32.mrb[0].mxu0
          %v1689 = vadd.f32 0.0, %v1688
          %v1690 = vpop.f32.mrb[0].mxu0
          %1691 = vmatprep.mubr.bf16.mxu0 0
          %1692 = vmatmul.mubr.bf16.gmra.mrb[0].mxu0 %v1557
          %v1693 = vpop.f32.mrb[0].mxu0
          %v1694 = vadd.f32 0.0, %v1693
          %v1695 = vpop.f32.mrb[0].mxu0
          %v1696 = vpop.f32.mrb[0].mxu0
          %v1697 = vadd.f32 0.0, %v1696
          %v1698 = vpop.f32.mrb[0].mxu0
          %1699 = vmatprep.mubr.bf16.mxu0 0
          %1700 = vmatmul.mubr.bf16.gmra.mrb[0].mxu0 %v1560
          %v1701 = vpop.f32.mrb[0].mxu0
          %v1702 = vadd.f32 0.0, %v1701
          %v1703 = vpop.f32.mrb[0].mxu0
          %v1704 = vpop.f32.mrb[0].mxu0
          %v1705 = vadd.f32 0.0, %v1704
          %v1706 = vpop.f32.mrb[0].mxu0
          %1707 = vmatprep.mubr.bf16.mxu0 0
          %1708 = vmatmul.mubr.bf16.gmra.mrb[0].mxu0 %v1563
          %v1709 = vpop.f32.mrb[0].mxu0
          %v1710 = vadd.f32 0.0, %v1709
          %v1711 = vpop.f32.mrb[0].mxu0
          %v1712 = vpop.f32.mrb[0].mxu0
          %v1713 = vadd.f32 0.0, %v1712
          %v1714 = vpop.f32.mrb[0].mxu0
          %1715 = vmatprep.mubr.bf16.mxu0 0
          %1716 = vmatmul.mubr.bf16.gmra.mrb[0].mxu0 %v1566
          %v1717 = vpop.f32.mrb[0].mxu0
          %v1718 = vadd.f32 0.0, %v1717
          %v1719 = vpop.f32.mrb[0].mxu0
          %v1720 = vpop.f32.mrb[0].mxu0
          %v1721 = vadd.f32 0.0, %v1720
          %v1722 = vpop.f32.mrb[0].mxu0
          %1723 = vmatprep.mubr.bf16.mxu0 0
          %1724 = vmatmul.mubr.bf16.gmra.mrb[0].mxu0 %v1569
          %v1725 = vpop.f32.mrb[0].mxu0
          %v1726 = vadd.f32 0.0, %v1725
          %v1727 = vpop.f32.mrb[0].mxu0
          %v1728 = vpop.f32.mrb[0].mxu0
          %v1729 = vadd.f32 0.0, %v1728
          %v1730 = vpop.f32.mrb[0].mxu0
          %1731 = vdwg.mxu0
          %v1732 = vadd.f32 %v1328, %v1606
          %v1733 = vadd.f32 %v1331, %v1609
          %v1734 = vadd.f32 %v1336, %v1614
          %v1735 = vadd.f32 %v1339, %v1617
          %v1736 = vadd.f32 %v1344, %v1622
          %v1737 = vadd.f32 %v1347, %v1625
          %v1738 = vadd.f32 %v1352, %v1630
          %v1739 = vadd.f32 %v1355, %v1633
          %v1740 = vadd.f32 %v1360, %v1638
          %v1741 = vadd.f32 %v1363, %v1641
          %v1742 = vadd.f32 %v1368, %v1646
          %v1743 = vadd.f32 %v1371, %v1649
          %v1744 = vadd.f32 %v1376, %v1654
          %v1745 = vadd.f32 %v1379, %v1657
          %v1746 = vadd.f32 %v1384, %v1662
          %v1747 = vadd.f32 %v1387, %v1665
          %v1748 = vadd.f32 %v1392, %v1670
          %v1749 = vadd.f32 %v1395, %v1673
          %v1750 = vadd.f32 %v1400, %v1678
          %v1751 = vadd.f32 %v1403, %v1681
          %v1752 = vadd.f32 %v1408, %v1686
          %v1753 = vadd.f32 %v1411, %v1689
          %v1754 = vadd.f32 %v1416, %v1694
          %v1755 = vadd.f32 %v1419, %v1697
          %v1756 = vadd.f32 %v1424, %v1702
          %v1757 = vadd.f32 %v1427, %v1705
          %v1758 = vadd.f32 %v1432, %v1710
          %v1759 = vadd.f32 %v1435, %v1713
          %v1760 = vadd.f32 %v1440, %v1718
          %v1761 = vadd.f32 %v1443, %v1721
          %v1762 = vadd.f32 %v1448, %v1726
          %v1763 = vadd.f32 %v1451, %v1729
          %s1764 = scalar_lea.vmem [#allocation8], %s895
          %v1765 = vld [vmem:[%s1764] sm:$0x1]
          %v1767 = vlaneseq
          %v1768 = vshrl.u32 %v1767, 7
          %v1769 = vsub.s32 0, %v1768
          %v1770 = vrot.slane %v1765, %v1769
          %v1772 = vadd.f32 %v1732, %v1770
          %v1773 = vadd.f32 %v1733, %v1770
          %v1774 = vadd.f32 %v1734, %v1770
          %v1775 = vadd.f32 %v1735, %v1770
          %v1776 = vadd.f32 %v1736, %v1770
          %v1777 = vadd.f32 %v1737, %v1770
          %v1778 = vadd.f32 %v1738, %v1770
          %v1779 = vadd.f32 %v1739, %v1770
          %v1780 = vadd.f32 %v1740, %v1770
          %v1781 = vadd.f32 %v1741, %v1770
          %v1782 = vadd.f32 %v1742, %v1770
          %v1783 = vadd.f32 %v1743, %v1770
          %v1784 = vadd.f32 %v1744, %v1770
          %v1785 = vadd.f32 %v1745, %v1770
          %v1786 = vadd.f32 %v1746, %v1770
          %v1787 = vadd.f32 %v1747, %v1770
          %v1788 = vadd.f32 %v1748, %v1770
          %v1789 = vadd.f32 %v1749, %v1770
          %v1790 = vadd.f32 %v1750, %v1770
          %v1791 = vadd.f32 %v1751, %v1770
          %v1792 = vadd.f32 %v1752, %v1770
          %v1793 = vadd.f32 %v1753, %v1770
          %v1794 = vadd.f32 %v1754, %v1770
          %v1795 = vadd.f32 %v1755, %v1770
          %v1796 = vadd.f32 %v1756, %v1770
          %v1797 = vadd.f32 %v1757, %v1770
          %v1798 = vadd.f32 %v1758, %v1770
          %v1799 = vadd.f32 %v1759, %v1770
          %v1800 = vadd.f32 %v1760, %v1770
          %v1801 = vadd.f32 %v1761, %v1770
          %v1802 = vadd.f32 %v1762, %v1770
          %v1803 = vadd.f32 %v1763, %v1770
          %v1804 = vmax.f32 %v1772, 0.0
          %v1805 = vmax.f32 %v1773, 0.0
          %v1806 = vmax.f32 %v1774, 0.0
          %v1807 = vmax.f32 %v1775, 0.0
          %v1808 = vmax.f32 %v1776, 0.0
          %v1809 = vmax.f32 %v1777, 0.0
          %v1810 = vmax.f32 %v1778, 0.0
          %v1811 = vmax.f32 %v1779, 0.0
          %v1812 = vmax.f32 %v1780, 0.0
          %v1813 = vmax.f32 %v1781, 0.0
          %v1814 = vmax.f32 %v1782, 0.0
          %v1815 = vmax.f32 %v1783, 0.0
          %v1816 = vmax.f32 %v1784, 0.0
          %v1817 = vmax.f32 %v1785, 0.0
          %v1818 = vmax.f32 %v1786, 0.0
          %v1819 = vmax.f32 %v1787, 0.0
          %v1820 = vmax.f32 %v1788, 0.0
          %v1821 = vmax.f32 %v1789, 0.0
          %v1822 = vmax.f32 %v1790, 0.0
          %v1823 = vmax.f32 %v1791, 0.0
          %v1824 = vmax.f32 %v1792, 0.0
          %v1825 = vmax.f32 %v1793, 0.0
          %v1826 = vmax.f32 %v1794, 0.0
          %v1827 = vmax.f32 %v1795, 0.0
          %v1828 = vmax.f32 %v1796, 0.0
          %v1829 = vmax.f32 %v1797, 0.0
          %v1830 = vmax.f32 %v1798, 0.0
          %v1831 = vmax.f32 %v1799, 0.0
          %v1832 = vmax.f32 %v1800, 0.0
          %v1833 = vmax.f32 %v1801, 0.0
          %v1834 = vmax.f32 %v1802, 0.0
          %v1835 = vmax.f32 %v1803, 0.0
          %v1836 = vpack.c.bf16 %v1805, %v1804
          %v1837 = vpack.c.bf16 %v1807, %v1806
          %v1838 = vpack.c.bf16 %v1809, %v1808
          %v1839 = vpack.c.bf16 %v1811, %v1810
          %v1840 = vpack.c.bf16 %v1813, %v1812
          %v1841 = vpack.c.bf16 %v1815, %v1814
          %v1842 = vpack.c.bf16 %v1817, %v1816
          %v1843 = vpack.c.bf16 %v1819, %v1818
          %v1844 = vpack.c.bf16 %v1821, %v1820
          %v1845 = vpack.c.bf16 %v1823, %v1822
          %v1846 = vpack.c.bf16 %v1825, %v1824
          %v1847 = vpack.c.bf16 %v1827, %v1826
          %v1848 = vpack.c.bf16 %v1829, %v1828
          %v1849 = vpack.c.bf16 %v1831, %v1830
          %v1850 = vpack.c.bf16 %v1833, %v1832
          %v1851 = vpack.c.bf16 %v1835, %v1834
          %1868 = vrot.lane.b32.xlu0 %v1836, 32
          %v1869 = vpop.permute.xlu0 %1868
          %1870 = vrot.lane.b32.xlu0 %v1837, 32
          %v1871 = vpop.permute.xlu0 %1870
          %1872 = vrot.lane.b32.xlu0 %v1838, 32
          %v1873 = vpop.permute.xlu0 %1872
          %1874 = vrot.lane.b32.xlu0 %v1839, 32
          %v1875 = vpop.permute.xlu0 %1874
          %1876 = vrot.lane.b32.xlu0 %v1840, 32
          %v1877 = vpop.permute.xlu0 %1876
          %1878 = vrot.lane.b32.xlu0 %v1841, 32
          %v1879 = vpop.permute.xlu0 %1878
          %1880 = vrot.lane.b32.xlu0 %v1842, 32
          %v1881 = vpop.permute.xlu0 %1880
          %1882 = vrot.lane.b32.xlu0 %v1843, 32
          %v1883 = vpop.permute.xlu0 %1882
          %1884 = vrot.lane.b32.xlu0 %v1844, 32
          %v1885 = vpop.permute.xlu0 %1884
          %1886 = vrot.lane.b32.xlu0 %v1845, 32
          %v1887 = vpop.permute.xlu0 %1886
          %1888 = vrot.lane.b32.xlu0 %v1846, 32
          %v1889 = vpop.permute.xlu0 %1888
          %1890 = vrot.lane.b32.xlu0 %v1847, 32
          %v1891 = vpop.permute.xlu0 %1890
          %1892 = vrot.lane.b32.xlu0 %v1848, 32
          %v1893 = vpop.permute.xlu0 %1892
          %1894 = vrot.lane.b32.xlu0 %v1849, 32
          %v1895 = vpop.permute.xlu0 %1894
          %1896 = vrot.lane.b32.xlu0 %v1850, 32
          %v1897 = vpop.permute.xlu0 %1896
          %1898 = vrot.lane.b32.xlu0 %v1851, 32
          %v1899 = vpop.permute.xlu0 %1898
          %1916 = vst.msk [vmem:[%s304] sm:$0xff] %vm567, %v1869
          %1917 = vst.msk [vmem:[%s304 + $0x8] sm:$0xff] %vm567, %v1871
          %1918 = vst.msk [vmem:[%s304 + $0x10] sm:$0xff] %vm567, %v1873
          %1919 = vst.msk [vmem:[%s304 + $0x18] sm:$0xff] %vm567, %v1875
          %1920 = vst.msk [vmem:[%s304 + $0x20] sm:$0xff] %vm567, %v1877
          %1921 = vst.msk [vmem:[%s304 + $0x28] sm:$0xff] %vm567, %v1879
          %1922 = vst.msk [vmem:[%s304 + $0x30] sm:$0xff] %vm567, %v1881
          %1923 = vst.msk [vmem:[%s304 + $0x38] sm:$0xff] %vm567, %v1883
          %1924 = vst.msk [vmem:[%s304 + $0x40] sm:$0xff] %vm567, %v1885
          %1925 = vst.msk [vmem:[%s304 + $0x48] sm:$0xff] %vm567, %v1887
          %1926 = vst.msk [vmem:[%s304 + $0x50] sm:$0xff] %vm567, %v1889
          %1927 = vst.msk [vmem:[%s304 + $0x58] sm:$0xff] %vm567, %v1891
          %1928 = vst.msk [vmem:[%s304 + $0x60] sm:$0xff] %vm567, %v1893
          %1929 = vst.msk [vmem:[%s304 + $0x68] sm:$0xff] %vm567, %v1895
          %1930 = vst.msk [vmem:[%s304 + $0x70] sm:$0xff] %vm567, %v1897
          %1931 = vst.msk [vmem:[%s304 + $0x78] sm:$0xff] %vm567, %v1899
          %v1933 = vshrl.u32 %v1836, 16
          %v1935 = vrot.slane %v1933, 7
          %v1936 = vshll.u32 %v1836, 16
          %v1938 = vor.u32 %v1935, %v1936
          %v1940 = vshrl.u32 %v1837, 16
          %v1942 = vrot.slane %v1940, 7
          %v1943 = vshll.u32 %v1837, 16
          %v1945 = vor.u32 %v1942, %v1943
          %v1947 = vshrl.u32 %v1838, 16
          %v1949 = vrot.slane %v1947, 7
          %v1950 = vshll.u32 %v1838, 16
          %v1952 = vor.u32 %v1949, %v1950
          %v1954 = vshrl.u32 %v1839, 16
          %v1956 = vrot.slane %v1954, 7
          %v1957 = vshll.u32 %v1839, 16
          %v1959 = vor.u32 %v1956, %v1957
          %v1961 = vshrl.u32 %v1840, 16
          %v1963 = vrot.slane %v1961, 7
          %v1964 = vshll.u32 %v1840, 16
          %v1966 = vor.u32 %v1963, %v1964
          %v1968 = vshrl.u32 %v1841, 16
          %v1970 = vrot.slane %v1968, 7
          %v1971 = vshll.u32 %v1841, 16
          %v1973 = vor.u32 %v1970, %v1971
          %v1975 = vshrl.u32 %v1842, 16
          %v1977 = vrot.slane %v1975, 7
          %v1978 = vshll.u32 %v1842, 16
          %v1980 = vor.u32 %v1977, %v1978
          %v1982 = vshrl.u32 %v1843, 16
          %v1984 = vrot.slane %v1982, 7
          %v1985 = vshll.u32 %v1843, 16
          %v1987 = vor.u32 %v1984, %v1985
          %v1989 = vshrl.u32 %v1844, 16
          %v1991 = vrot.slane %v1989, 7
          %v1992 = vshll.u32 %v1844, 16
          %v1994 = vor.u32 %v1991, %v1992
          %v1996 = vshrl.u32 %v1845, 16
          %v1998 = vrot.slane %v1996, 7
          %v1999 = vshll.u32 %v1845, 16
          %v2001 = vor.u32 %v1998, %v1999
          %v2003 = vshrl.u32 %v1846, 16
          %v2005 = vrot.slane %v2003, 7
          %v2006 = vshll.u32 %v1846, 16
          %v2008 = vor.u32 %v2005, %v2006
          %v2010 = vshrl.u32 %v1847, 16
          %v2012 = vrot.slane %v2010, 7
          %v2013 = vshll.u32 %v1847, 16
          %v2015 = vor.u32 %v2012, %v2013
          %v2017 = vshrl.u32 %v1848, 16
          %v2019 = vrot.slane %v2017, 7
          %v2020 = vshll.u32 %v1848, 16
          %v2022 = vor.u32 %v2019, %v2020
          %v2024 = vshrl.u32 %v1849, 16
          %v2026 = vrot.slane %v2024, 7
          %v2027 = vshll.u32 %v1849, 16
          %v2029 = vor.u32 %v2026, %v2027
          %v2031 = vshrl.u32 %v1850, 16
          %v2033 = vrot.slane %v2031, 7
          %v2034 = vshll.u32 %v1850, 16
          %v2036 = vor.u32 %v2033, %v2034
          %v2038 = vshrl.u32 %v1851, 16
          %v2040 = vrot.slane %v2038, 7
          %v2041 = vshll.u32 %v1851, 16
          %v2043 = vor.u32 %v2040, %v2041
          %v2060 = vld [vmem:[%s304] sm:$0xff]
          %v2061 = vsel %vm714, %v1938, %v2060
          %2062 = vst [vmem:[%s304] sm:$0xff] %v2061
          %v2063 = vld [vmem:[%s304 + $0x8] sm:$0xff]
          %v2064 = vsel %vm714, %v1945, %v2063
          %2065 = vst [vmem:[%s304 + $0x8] sm:$0xff] %v2064
          %v2066 = vld [vmem:[%s304 + $0x10] sm:$0xff]
          %v2067 = vsel %vm714, %v1952, %v2066
          %2068 = vst [vmem:[%s304 + $0x10] sm:$0xff] %v2067
          %v2069 = vld [vmem:[%s304 + $0x18] sm:$0xff]
          %v2070 = vsel %vm714, %v1959, %v2069
          %2071 = vst [vmem:[%s304 + $0x18] sm:$0xff] %v2070
          %v2072 = vld [vmem:[%s304 + $0x20] sm:$0xff]
          %v2073 = vsel %vm714, %v1966, %v2072
          %2074 = vst [vmem:[%s304 + $0x20] sm:$0xff] %v2073
          %v2075 = vld [vmem:[%s304 + $0x28] sm:$0xff]
          %v2076 = vsel %vm714, %v1973, %v2075
          %2077 = vst [vmem:[%s304 + $0x28] sm:$0xff] %v2076
          %v2078 = vld [vmem:[%s304 + $0x30] sm:$0xff]
          %v2079 = vsel %vm714, %v1980, %v2078
          %2080 = vst [vmem:[%s304 + $0x30] sm:$0xff] %v2079
          %v2081 = vld [vmem:[%s304 + $0x38] sm:$0xff]
          %v2082 = vsel %vm714, %v1987, %v2081
          %2083 = vst [vmem:[%s304 + $0x38] sm:$0xff] %v2082
          %v2084 = vld [vmem:[%s304 + $0x40] sm:$0xff]
          %v2085 = vsel %vm714, %v1994, %v2084
          %2086 = vst [vmem:[%s304 + $0x40] sm:$0xff] %v2085
          %v2087 = vld [vmem:[%s304 + $0x48] sm:$0xff]
          %v2088 = vsel %vm714, %v2001, %v2087
          %2089 = vst [vmem:[%s304 + $0x48] sm:$0xff] %v2088
          %v2090 = vld [vmem:[%s304 + $0x50] sm:$0xff]
          %v2091 = vsel %vm714, %v2008, %v2090
          %2092 = vst [vmem:[%s304 + $0x50] sm:$0xff] %v2091
          %v2093 = vld [vmem:[%s304 + $0x58] sm:$0xff]
          %v2094 = vsel %vm714, %v2015, %v2093
          %2095 = vst [vmem:[%s304 + $0x58] sm:$0xff] %v2094
          %v2096 = vld [vmem:[%s304 + $0x60] sm:$0xff]
          %v2097 = vsel %vm714, %v2022, %v2096
          %2098 = vst [vmem:[%s304 + $0x60] sm:$0xff] %v2097
          %v2099 = vld [vmem:[%s304 + $0x68] sm:$0xff]
          %v2100 = vsel %vm714, %v2029, %v2099
          %2101 = vst [vmem:[%s304 + $0x68] sm:$0xff] %v2100
          %v2102 = vld [vmem:[%s304 + $0x70] sm:$0xff]
          %v2103 = vsel %vm714, %v2036, %v2102
          %2104 = vst [vmem:[%s304 + $0x70] sm:$0xff] %v2103
          %v2105 = vld [vmem:[%s304 + $0x78] sm:$0xff]
          %v2106 = vsel %vm714, %v2043, %v2105
          %2107 = vst [vmem:[%s304 + $0x78] sm:$0xff] %v2106
          %v2108 = vrot.slane %v1936, 1
          %v2109 = vor.u32 %v1933, %v2108
          %v2110 = vrot.slane %v1943, 1
          %v2111 = vor.u32 %v1940, %v2110
          %v2112 = vrot.slane %v1950, 1
          %v2113 = vor.u32 %v1947, %v2112
          %v2114 = vrot.slane %v1957, 1
          %v2115 = vor.u32 %v1954, %v2114
          %v2116 = vrot.slane %v1964, 1
          %v2117 = vor.u32 %v1961, %v2116
          %v2118 = vrot.slane %v1971, 1
          %v2119 = vor.u32 %v1968, %v2118
          %v2120 = vrot.slane %v1978, 1
          %v2121 = vor.u32 %v1975, %v2120
          %v2122 = vrot.slane %v1985, 1
          %v2123 = vor.u32 %v1982, %v2122
          %v2124 = vrot.slane %v1992, 1
          %v2125 = vor.u32 %v1989, %v2124
          %v2126 = vrot.slane %v1999, 1
          %v2127 = vor.u32 %v1996, %v2126
          %v2128 = vrot.slane %v2006, 1
          %v2129 = vor.u32 %v2003, %v2128
          %v2130 = vrot.slane %v2013, 1
          %v2131 = vor.u32 %v2010, %v2130
          %v2132 = vrot.slane %v2020, 1
          %v2133 = vor.u32 %v2017, %v2132
          %v2134 = vrot.slane %v2027, 1
          %v2135 = vor.u32 %v2024, %v2134
          %v2136 = vrot.slane %v2034, 1
          %v2137 = vor.u32 %v2031, %v2136
          %v2138 = vrot.slane %v2041, 1
          %v2139 = vor.u32 %v2038, %v2138
          %2140 = vrot.lane.b32.xlu0 %v2109, 64
          %v2141 = vpop.permute.xlu0 %2140
          %2142 = vrot.lane.b32.xlu0 %v2111, 64
          %v2143 = vpop.permute.xlu0 %2142
          %2144 = vrot.lane.b32.xlu0 %v2113, 64
          %v2145 = vpop.permute.xlu0 %2144
          %2146 = vrot.lane.b32.xlu0 %v2115, 64
          %v2147 = vpop.permute.xlu0 %2146
          %2148 = vrot.lane.b32.xlu0 %v2117, 64
          %v2149 = vpop.permute.xlu0 %2148
          %2150 = vrot.lane.b32.xlu0 %v2119, 64
          %v2151 = vpop.permute.xlu0 %2150
          %2152 = vrot.lane.b32.xlu0 %v2121, 64
          %v2153 = vpop.permute.xlu0 %2152
          %2154 = vrot.lane.b32.xlu0 %v2123, 64
          %v2155 = vpop.permute.xlu0 %2154
          %2156 = vrot.lane.b32.xlu0 %v2125, 64
          %v2157 = vpop.permute.xlu0 %2156
          %2158 = vrot.lane.b32.xlu0 %v2127, 64
          %v2159 = vpop.permute.xlu0 %2158
          %2160 = vrot.lane.b32.xlu0 %v2129, 64
          %v2161 = vpop.permute.xlu0 %2160
          %2162 = vrot.lane.b32.xlu0 %v2131, 64
          %v2163 = vpop.permute.xlu0 %2162
          %2164 = vrot.lane.b32.xlu0 %v2133, 64
          %v2165 = vpop.permute.xlu0 %2164
          %2166 = vrot.lane.b32.xlu0 %v2135, 64
          %v2167 = vpop.permute.xlu0 %2166
          %2168 = vrot.lane.b32.xlu0 %v2137, 64
          %v2169 = vpop.permute.xlu0 %2168
          %2170 = vrot.lane.b32.xlu0 %v2139, 64
          %v2171 = vpop.permute.xlu0 %2170
          %v2188 = vld [vmem:[%s304] sm:$0xff]
          %v2189 = vsel %vm845, %v2141, %v2188
          %2190 = vst [vmem:[%s304] sm:$0xff] %v2189
          %v2191 = vld [vmem:[%s304 + $0x8] sm:$0xff]
          %v2192 = vsel %vm845, %v2143, %v2191
          %2193 = vst [vmem:[%s304 + $0x8] sm:$0xff] %v2192
          %v2194 = vld [vmem:[%s304 + $0x10] sm:$0xff]
          %v2195 = vsel %vm845, %v2145, %v2194
          %2196 = vst [vmem:[%s304 + $0x10] sm:$0xff] %v2195
          %v2197 = vld [vmem:[%s304 + $0x18] sm:$0xff]
          %v2198 = vsel %vm845, %v2147, %v2197
          %2199 = vst [vmem:[%s304 + $0x18] sm:$0xff] %v2198
          %v2200 = vld [vmem:[%s304 + $0x20] sm:$0xff]
          %v2201 = vsel %vm845, %v2149, %v2200
          %2202 = vst [vmem:[%s304 + $0x20] sm:$0xff] %v2201
          %v2203 = vld [vmem:[%s304 + $0x28] sm:$0xff]
          %v2204 = vsel %vm845, %v2151, %v2203
          %2205 = vst [vmem:[%s304 + $0x28] sm:$0xff] %v2204
          %v2206 = vld [vmem:[%s304 + $0x30] sm:$0xff]
          %v2207 = vsel %vm845, %v2153, %v2206
          %2208 = vst [vmem:[%s304 + $0x30] sm:$0xff] %v2207
          %v2209 = vld [vmem:[%s304 + $0x38] sm:$0xff]
          %v2210 = vsel %vm845, %v2155, %v2209
          %2211 = vst [vmem:[%s304 + $0x38] sm:$0xff] %v2210
          %v2212 = vld [vmem:[%s304 + $0x40] sm:$0xff]
          %v2213 = vsel %vm845, %v2157, %v2212
          %2214 = vst [vmem:[%s304 + $0x40] sm:$0xff] %v2213
          %v2215 = vld [vmem:[%s304 + $0x48] sm:$0xff]
          %v2216 = vsel %vm845, %v2159, %v2215
          %2217 = vst [vmem:[%s304 + $0x48] sm:$0xff] %v2216
          %v2218 = vld [vmem:[%s304 + $0x50] sm:$0xff]
          %v2219 = vsel %vm845, %v2161, %v2218
          %2220 = vst [vmem:[%s304 + $0x50] sm:$0xff] %v2219
          %v2221 = vld [vmem:[%s304 + $0x58] sm:$0xff]
          %v2222 = vsel %vm845, %v2163, %v2221
          %2223 = vst [vmem:[%s304 + $0x58] sm:$0xff] %v2222
          %v2224 = vld [vmem:[%s304 + $0x60] sm:$0xff]
          %v2225 = vsel %vm845, %v2165, %v2224
          %2226 = vst [vmem:[%s304 + $0x60] sm:$0xff] %v2225
          %v2227 = vld [vmem:[%s304 + $0x68] sm:$0xff]
          %v2228 = vsel %vm845, %v2167, %v2227
          %2229 = vst [vmem:[%s304 + $0x68] sm:$0xff] %v2228
          %v2230 = vld [vmem:[%s304 + $0x70] sm:$0xff]
          %v2231 = vsel %vm845, %v2169, %v2230
          %2232 = vst [vmem:[%s304 + $0x70] sm:$0xff] %v2231
          %v2233 = vld [vmem:[%s304 + $0x78] sm:$0xff]
          %v2234 = vsel %vm845, %v2171, %v2233
          %2235 = vst [vmem:[%s304 + $0x78] sm:$0xff] %v2234
        $region65: #{retina_reg_head_forward.1} parent=39 // loop_footer
          %s899 = sadd.s32 1, %s895
        $region66: #{retina_reg_head_forward.1} parent=39 // loop_footer_branch
          %894 = sbr.rel target = $region62
        $region67: #{retina_reg_head_forward.1} parent=39 // loop_exit
          _
        %v2236 = vld [vmem:[#allocation2] sm:$0xff]
        %v2237 = vld [vmem:[#allocation2 + $0x8] sm:$0xff]
        %v2238 = vld [vmem:[#allocation2 + $0x10] sm:$0xff]
        %v2239 = vld [vmem:[#allocation2 + $0x18] sm:$0xff]
        %v2240 = vld [vmem:[#allocation2 + $0x20] sm:$0xff]
        %v2241 = vld [vmem:[#allocation2 + $0x28] sm:$0xff]
        %v2242 = vld [vmem:[#allocation2 + $0x30] sm:$0xff]
        %v2243 = vld [vmem:[#allocation2 + $0x38] sm:$0xff]
        %v2244 = vld [vmem:[#allocation9] sm:$0xf]
        %v2245 = vld [vmem:[#allocation9 + $0x4] sm:$0xf]
        %v2246 = vld [vmem:[#allocation9 + $0x8] sm:$0xf]
        %v2247 = vld [vmem:[#allocation9 + $0xc] sm:$0xf]
        %v2248 = vld [vmem:[#allocation9 + $0x10] sm:$0xf]
        %v2249 = vld [vmem:[#allocation9 + $0x14] sm:$0xf]
        %v2250 = vld [vmem:[#allocation9 + $0x18] sm:$0xf]
        %v2251 = vld [vmem:[#allocation9 + $0x1c] sm:$0xf]
        %v2252 = vld [vmem:[#allocation9 + $0x20] sm:$0xf]
        %v2253 = vld [vmem:[#allocation9 + $0x24] sm:$0xf]
        %v2254 = vld [vmem:[#allocation9 + $0x28] sm:$0xf]
        %v2255 = vld [vmem:[#allocation9 + $0x2c] sm:$0xf]
        %v2256 = vld [vmem:[%s304] sm:$0xff]
        %v2257 = vld [vmem:[%s304 + $0x8] sm:$0xff]
        %v2258 = vld [vmem:[%s304 + $0x10] sm:$0xff]
        %v2259 = vld [vmem:[%s304 + $0x18] sm:$0xff]
        %v2260 = vld [vmem:[%s304 + $0x20] sm:$0xff]
        %v2261 = vld [vmem:[%s304 + $0x28] sm:$0xff]
        %v2262 = vld [vmem:[%s304 + $0x30] sm:$0xff]
        %v2263 = vld [vmem:[%s304 + $0x38] sm:$0xff]
        %s2264 = scalar_lea.vmem [#allocation9], 48
        %v2265 = vld [vmem:[%s2264] sm:$0xf]
        %v2266 = vld [vmem:[%s2264 + $0x4] sm:$0xf]
        %v2267 = vld [vmem:[%s2264 + $0x8] sm:$0xf]
        %v2268 = vld [vmem:[%s2264 + $0xc] sm:$0xf]
        %v2269 = vld [vmem:[%s2264 + $0x10] sm:$0xf]
        %v2270 = vld [vmem:[%s2264 + $0x14] sm:$0xf]
        %v2271 = vld [vmem:[%s2264 + $0x18] sm:$0xf]
        %v2272 = vld [vmem:[%s2264 + $0x1c] sm:$0xf]
        %v2273 = vld [vmem:[%s2264 + $0x20] sm:$0xf]
        %v2274 = vld [vmem:[%s2264 + $0x24] sm:$0xf]
        %v2275 = vld [vmem:[%s2264 + $0x28] sm:$0xf]
        %v2276 = vld [vmem:[%s2264 + $0x2c] sm:$0xf]
        %v2289 = vunpack.c.l.b16 %v2265
        %v2290 = vunpack.c.l.b16 %v2266
        %v2291 = vunpack.c.l.b16 %v2267
        %v2292 = vunpack.c.l.b16 %v2268
        %v2293 = vunpack.c.l.b16 %v2269
        %v2294 = vunpack.c.l.b16 %v2270
        %v2295 = vunpack.c.l.b16 %v2271
        %v2296 = vunpack.c.l.b16 %v2272
        %v2297 = vunpack.c.l.b16 %v2273
        %v2298 = vunpack.c.l.b16 %v2274
        %v2299 = vunpack.c.l.b16 %v2275
        %v2300 = vunpack.c.l.b16 %v2276
        %v2301 = vpack.c.b16 %v2290, %v2289
        %v2302 = vpack.c.b16 %v2292, %v2291
        %v2303 = vpack.c.b16 %v2294, %v2293
        %v2304 = vpack.c.b16 %v2296, %v2295
        %v2305 = vpack.c.b16 %v2298, %v2297
        %v2306 = vpack.c.b16 %v2300, %v2299
        %v2314 = vsel %vm300, %v2256, 0
        %v2317 = vsel %vm300, %v2257, 0
        %v2320 = vsel %vm300, %v2258, 0
        %v2323 = vsel %vm300, %v2259, 0
        %v2326 = vsel %vm300, %v2260, 0
        %v2329 = vsel %vm300, %v2261, 0
        %v2332 = vsel %vm300, %v2262, 0
        %v2335 = vsel %vm300, %v2263, 0
        %2337 = vmatprep.subr.bf16.mxu0 0
        %2338 = vmatpush1.bf16.msra.mxu0 %v2301
        %2339 = vmatprep.subr.bf16.mxu0 0
        %2340 = vmatpush1.bf16.msra.mxu0 %v2302
        %2341 = vmatprep.subr.bf16.mxu0 0
        %2342 = vmatpush1.bf16.msra.mxu0 %v2303
        %2343 = vmatprep.subr.bf16.mxu0 0
        %2344 = vmatpush1.bf16.msra.mxu0 %v2304
        %2345 = vmatprep.subr.bf16.mxu0 0
        %2346 = vmatpush1.bf16.msra.mxu0 %v2305
        %2347 = vmatprep.subr.bf16.mxu0 0
        %2348 = vmatpush1.bf16.msra.mxu0 %v2306
        %2349 = vmatprep.subr.bf16.mxu0 0
        %2350 = vmatpush1.bf16.msra.mxu0 0
        %2351 = vmatprep.subr.bf16.mxu0 0
        %2352 = vmatpush1.bf16.msra.mxu0 0
        %2353 = vmatprep.subr.bf16.mxu0 0
        %2354 = vmatpush1.bf16.msra.mxu0 0
        %2355 = vmatprep.subr.bf16.mxu0 0
        %2356 = vmatpush1.bf16.msra.mxu0 0
        %2357 = vmatprep.subr.bf16.mxu0 0
        %2358 = vmatpush1.bf16.msra.mxu0 0
        %2359 = vmatprep.subr.bf16.mxu0 0
        %2360 = vmatpush1.bf16.msra.mxu0 0
        %2361 = vmatprep.subr.bf16.mxu0 0
        %2362 = vmatpush1.bf16.msra.mxu0 0
        %2363 = vmatprep.subr.bf16.mxu0 0
        %2364 = vmatpush1.bf16.msra.mxu0 0
        %2365 = vmatprep.subr.bf16.mxu0 0
        %2366 = vmatpush1.bf16.msra.mxu0 0
        %2367 = vmatprep.subr.bf16.mxu0 0
        %2368 = vmatpush1.bf16.msra.mxu0 0
        %2369 = vmatprep.mubr.bf16.mxu0 0
        %2370 = vmatmul.mubr.bf16.gmra.mrb[0].mxu0 %v2314
        %v2371 = vpop.f32.mrb[0].mxu0
        %v2372 = vadd.f32 0.0, %v2371
        %v2373 = vpop.f32.mrb[0].mxu0
        %v2374 = vpop.f32.mrb[0].mxu0
        %v2375 = vadd.f32 0.0, %v2374
        %v2376 = vpop.f32.mrb[0].mxu0
        %2377 = vmatprep.mubr.bf16.mxu0 0
        %2378 = vmatmul.mubr.bf16.gmra.mrb[0].mxu0 %v2317
        %v2379 = vpop.f32.mrb[0].mxu0
        %v2380 = vadd.f32 0.0, %v2379
        %v2381 = vpop.f32.mrb[0].mxu0
        %v2382 = vpop.f32.mrb[0].mxu0
        %v2383 = vadd.f32 0.0, %v2382
        %v2384 = vpop.f32.mrb[0].mxu0
        %2385 = vmatprep.mubr.bf16.mxu0 0
        %2386 = vmatmul.mubr.bf16.gmra.mrb[0].mxu0 %v2320
        %v2387 = vpop.f32.mrb[0].mxu0
        %v2388 = vadd.f32 0.0, %v2387
        %v2389 = vpop.f32.mrb[0].mxu0
        %v2390 = vpop.f32.mrb[0].mxu0
        %v2391 = vadd.f32 0.0, %v2390
        %v2392 = vpop.f32.mrb[0].mxu0
        %2393 = vmatprep.mubr.bf16.mxu0 0
        %2394 = vmatmul.mubr.bf16.gmra.mrb[0].mxu0 %v2323
        %v2395 = vpop.f32.mrb[0].mxu0
        %v2396 = vadd.f32 0.0, %v2395
        %v2397 = vpop.f32.mrb[0].mxu0
        %v2398 = vpop.f32.mrb[0].mxu0
        %v2399 = vadd.f32 0.0, %v2398
        %v2400 = vpop.f32.mrb[0].mxu0
        %2401 = vmatprep.mubr.bf16.mxu0 0
        %2402 = vmatmul.mubr.bf16.gmra.mrb[0].mxu0 %v2326
        %v2403 = vpop.f32.mrb[0].mxu0
        %v2404 = vadd.f32 0.0, %v2403
        %v2405 = vpop.f32.mrb[0].mxu0
        %v2406 = vpop.f32.mrb[0].mxu0
        %v2407 = vadd.f32 0.0, %v2406
        %v2408 = vpop.f32.mrb[0].mxu0
        %2409 = vmatprep.mubr.bf16.mxu0 0
        %2410 = vmatmul.mubr.bf16.gmra.mrb[0].mxu0 %v2329
        %v2411 = vpop.f32.mrb[0].mxu0
        %v2412 = vadd.f32 0.0, %v2411
        %v2413 = vpop.f32.mrb[0].mxu0
        %v2414 = vpop.f32.mrb[0].mxu0
        %v2415 = vadd.f32 0.0, %v2414
        %v2416 = vpop.f32.mrb[0].mxu0
        %2417 = vmatprep.mubr.bf16.mxu0 0
        %2418 = vmatmul.mubr.bf16.gmra.mrb[0].mxu0 %v2332
        %v2419 = vpop.f32.mrb[0].mxu0
        %v2420 = vadd.f32 0.0, %v2419
        %v2421 = vpop.f32.mrb[0].mxu0
        %v2422 = vpop.f32.mrb[0].mxu0
        %v2423 = vadd.f32 0.0, %v2422
        %v2424 = vpop.f32.mrb[0].mxu0
        %2425 = vmatprep.mubr.bf16.mxu0 0
        %2426 = vmatmul.mubr.bf16.gmra.mrb[0].mxu0 %v2335
        %v2427 = vpop.f32.mrb[0].mxu0
        %v2428 = vadd.f32 0.0, %v2427
        %v2429 = vpop.f32.mrb[0].mxu0
        %v2430 = vpop.f32.mrb[0].mxu0
        %v2431 = vadd.f32 0.0, %v2430
        %v2432 = vpop.f32.mrb[0].mxu0
        %2433 = vdwg.mxu0
        %v2446 = vunpack.c.l.b16 %v2244
        %v2447 = vunpack.c.l.b16 %v2245
        %v2448 = vunpack.c.l.b16 %v2246
        %v2449 = vunpack.c.l.b16 %v2247
        %v2450 = vunpack.c.l.b16 %v2248
        %v2451 = vunpack.c.l.b16 %v2249
        %v2452 = vunpack.c.l.b16 %v2250
        %v2453 = vunpack.c.l.b16 %v2251
        %v2454 = vunpack.c.l.b16 %v2252
        %v2455 = vunpack.c.l.b16 %v2253
        %v2456 = vunpack.c.l.b16 %v2254
        %v2457 = vunpack.c.l.b16 %v2255
        %v2458 = vpack.c.b16 %v2447, %v2446
        %v2459 = vpack.c.b16 %v2449, %v2448
        %v2460 = vpack.c.b16 %v2451, %v2450
        %v2461 = vpack.c.b16 %v2453, %v2452
        %v2462 = vpack.c.b16 %v2455, %v2454
        %v2463 = vpack.c.b16 %v2457, %v2456
        %v2471 = vsel %vm300, %v2236, 0
        %v2474 = vsel %vm300, %v2237, 0
        %v2477 = vsel %vm300, %v2238, 0
        %v2480 = vsel %vm300, %v2239, 0
        %v2483 = vsel %vm300, %v2240, 0
        %v2486 = vsel %vm300, %v2241, 0
        %v2489 = vsel %vm300, %v2242, 0
        %v2492 = vsel %vm300, %v2243, 0
        %2494 = vmatprep.subr.bf16.mxu0 0
        %2495 = vmatpush1.bf16.msra.mxu0 %v2458
        %2496 = vmatprep.subr.bf16.mxu0 0
        %2497 = vmatpush1.bf16.msra.mxu0 %v2459
        %2498 = vmatprep.subr.bf16.mxu0 0
        %2499 = vmatpush1.bf16.msra.mxu0 %v2460
        %2500 = vmatprep.subr.bf16.mxu0 0
        %2501 = vmatpush1.bf16.msra.mxu0 %v2461
        %2502 = vmatprep.subr.bf16.mxu0 0
        %2503 = vmatpush1.bf16.msra.mxu0 %v2462
        %2504 = vmatprep.subr.bf16.mxu0 0
        %2505 = vmatpush1.bf16.msra.mxu0 %v2463
        %2506 = vmatprep.subr.bf16.mxu0 0
        %2507 = vmatpush1.bf16.msra.mxu0 0
        %2508 = vmatprep.subr.bf16.mxu0 0
        %2509 = vmatpush1.bf16.msra.mxu0 0
        %2510 = vmatprep.subr.bf16.mxu0 0
        %2511 = vmatpush1.bf16.msra.mxu0 0
        %2512 = vmatprep.subr.bf16.mxu0 0
        %2513 = vmatpush1.bf16.msra.mxu0 0
        %2514 = vmatprep.subr.bf16.mxu0 0
        %2515 = vmatpush1.bf16.msra.mxu0 0
        %2516 = vmatprep.subr.bf16.mxu0 0
        %2517 = vmatpush1.bf16.msra.mxu0 0
        %2518 = vmatprep.subr.bf16.mxu0 0
        %2519 = vmatpush1.bf16.msra.mxu0 0
        %2520 = vmatprep.subr.bf16.mxu0 0
        %2521 = vmatpush1.bf16.msra.mxu0 0
        %2522 = vmatprep.subr.bf16.mxu0 0
        %2523 = vmatpush1.bf16.msra.mxu0 0
        %2524 = vmatprep.subr.bf16.mxu0 0
        %2525 = vmatpush1.bf16.msra.mxu0 0
        %2526 = vmatprep.mubr.bf16.mxu0 0
        %2527 = vmatmul.mubr.bf16.gmra.mrb[0].mxu0 %v2471
        %v2528 = vpop.f32.mrb[0].mxu0
        %v2529 = vadd.f32 %v2372, %v2528
        %v2530 = vpop.f32.mrb[0].mxu0
        %v2531 = vpop.f32.mrb[0].mxu0
        %v2532 = vadd.f32 %v2375, %v2531
        %v2533 = vpop.f32.mrb[0].mxu0
        %2534 = vmatprep.mubr.bf16.mxu0 0
        %2535 = vmatmul.mubr.bf16.gmra.mrb[0].mxu0 %v2474
        %v2536 = vpop.f32.mrb[0].mxu0
        %v2537 = vadd.f32 %v2380, %v2536
        %v2538 = vpop.f32.mrb[0].mxu0
        %v2539 = vpop.f32.mrb[0].mxu0
        %v2540 = vadd.f32 %v2383, %v2539
        %v2541 = vpop.f32.mrb[0].mxu0
        %2542 = vmatprep.mubr.bf16.mxu0 0
        %2543 = vmatmul.mubr.bf16.gmra.mrb[0].mxu0 %v2477
        %v2544 = vpop.f32.mrb[0].mxu0
        %v2545 = vadd.f32 %v2388, %v2544
        %v2546 = vpop.f32.mrb[0].mxu0
        %v2547 = vpop.f32.mrb[0].mxu0
        %v2548 = vadd.f32 %v2391, %v2547
        %v2549 = vpop.f32.mrb[0].mxu0
        %2550 = vmatprep.mubr.bf16.mxu0 0
        %2551 = vmatmul.mubr.bf16.gmra.mrb[0].mxu0 %v2480
        %v2552 = vpop.f32.mrb[0].mxu0
        %v2553 = vadd.f32 %v2396, %v2552
        %v2554 = vpop.f32.mrb[0].mxu0
        %v2555 = vpop.f32.mrb[0].mxu0
        %v2556 = vadd.f32 %v2399, %v2555
        %v2557 = vpop.f32.mrb[0].mxu0
        %2558 = vmatprep.mubr.bf16.mxu0 0
        %2559 = vmatmul.mubr.bf16.gmra.mrb[0].mxu0 %v2483
        %v2560 = vpop.f32.mrb[0].mxu0
        %v2561 = vadd.f32 %v2404, %v2560
        %v2562 = vpop.f32.mrb[0].mxu0
        %v2563 = vpop.f32.mrb[0].mxu0
        %v2564 = vadd.f32 %v2407, %v2563
        %v2565 = vpop.f32.mrb[0].mxu0
        %2566 = vmatprep.mubr.bf16.mxu0 0
        %2567 = vmatmul.mubr.bf16.gmra.mrb[0].mxu0 %v2486
        %v2568 = vpop.f32.mrb[0].mxu0
        %v2569 = vadd.f32 %v2412, %v2568
        %v2570 = vpop.f32.mrb[0].mxu0
        %v2571 = vpop.f32.mrb[0].mxu0
        %v2572 = vadd.f32 %v2415, %v2571
        %v2573 = vpop.f32.mrb[0].mxu0
        %2574 = vmatprep.mubr.bf16.mxu0 0
        %2575 = vmatmul.mubr.bf16.gmra.mrb[0].mxu0 %v2489
        %v2576 = vpop.f32.mrb[0].mxu0
        %v2577 = vadd.f32 %v2420, %v2576
        %v2578 = vpop.f32.mrb[0].mxu0
        %v2579 = vpop.f32.mrb[0].mxu0
        %v2580 = vadd.f32 %v2423, %v2579
        %v2581 = vpop.f32.mrb[0].mxu0
        %2582 = vmatprep.mubr.bf16.mxu0 0
        %2583 = vmatmul.mubr.bf16.gmra.mrb[0].mxu0 %v2492
        %v2584 = vpop.f32.mrb[0].mxu0
        %v2585 = vadd.f32 %v2428, %v2584
        %v2586 = vpop.f32.mrb[0].mxu0
        %v2587 = vpop.f32.mrb[0].mxu0
        %v2588 = vadd.f32 %v2431, %v2587
        %v2589 = vpop.f32.mrb[0].mxu0
        %2590 = vdwg.mxu0
        %s2591 = scalar_lea.vmem [#allocation2], 16
        %v2592 = vld [vmem:[%s2591] sm:$0xff]
        %v2593 = vld [vmem:[%s2591 + $0x8] sm:$0xff]
        %v2594 = vld [vmem:[%s2591 + $0x10] sm:$0xff]
        %v2595 = vld [vmem:[%s2591 + $0x18] sm:$0xff]
        %v2596 = vld [vmem:[%s2591 + $0x20] sm:$0xff]
        %v2597 = vld [vmem:[%s2591 + $0x28] sm:$0xff]
        %v2598 = vld [vmem:[%s2591 + $0x30] sm:$0xff]
        %v2599 = vld [vmem:[%s2591 + $0x38] sm:$0xff]
        %s2600 = scalar_lea.vmem [#allocation9], 96
        %v2601 = vld [vmem:[%s2600] sm:$0xf]
        %v2602 = vld [vmem:[%s2600 + $0x4] sm:$0xf]
        %v2603 = vld [vmem:[%s2600 + $0x8] sm:$0xf]
        %v2604 = vld [vmem:[%s2600 + $0xc] sm:$0xf]
        %v2605 = vld [vmem:[%s2600 + $0x10] sm:$0xf]
        %v2606 = vld [vmem:[%s2600 + $0x14] sm:$0xf]
        %v2607 = vld [vmem:[%s2600 + $0x18] sm:$0xf]
        %v2608 = vld [vmem:[%s2600 + $0x1c] sm:$0xf]
        %v2609 = vld [vmem:[%s2600 + $0x20] sm:$0xf]
        %v2610 = vld [vmem:[%s2600 + $0x24] sm:$0xf]
        %v2611 = vld [vmem:[%s2600 + $0x28] sm:$0xf]
        %v2612 = vld [vmem:[%s2600 + $0x2c] sm:$0xf]
        %v2625 = vunpack.c.l.b16 %v2601
        %v2626 = vunpack.c.l.b16 %v2602
        %v2627 = vunpack.c.l.b16 %v2603
        %v2628 = vunpack.c.l.b16 %v2604
        %v2629 = vunpack.c.l.b16 %v2605
        %v2630 = vunpack.c.l.b16 %v2606
        %v2631 = vunpack.c.l.b16 %v2607
        %v2632 = vunpack.c.l.b16 %v2608
        %v2633 = vunpack.c.l.b16 %v2609
        %v2634 = vunpack.c.l.b16 %v2610
        %v2635 = vunpack.c.l.b16 %v2611
        %v2636 = vunpack.c.l.b16 %v2612
        %v2637 = vpack.c.b16 %v2626, %v2625
        %v2638 = vpack.c.b16 %v2628, %v2627
        %v2639 = vpack.c.b16 %v2630, %v2629
        %v2640 = vpack.c.b16 %v2632, %v2631
        %v2641 = vpack.c.b16 %v2634, %v2633
        %v2642 = vpack.c.b16 %v2636, %v2635
        %v2650 = vsel %vm300, %v2592, 0
        %v2653 = vsel %vm300, %v2593, 0
        %v2656 = vsel %vm300, %v2594, 0
        %v2659 = vsel %vm300, %v2595, 0
        %v2662 = vsel %vm300, %v2596, 0
        %v2665 = vsel %vm300, %v2597, 0
        %v2668 = vsel %vm300, %v2598, 0
        %v2671 = vsel %vm300, %v2599, 0
        %2673 = vmatprep.subr.bf16.mxu0 0
        %2674 = vmatpush1.bf16.msra.mxu0 %v2637
        %2675 = vmatprep.subr.bf16.mxu0 0
        %2676 = vmatpush1.bf16.msra.mxu0 %v2638
        %2677 = vmatprep.subr.bf16.mxu0 0
        %2678 = vmatpush1.bf16.msra.mxu0 %v2639
        %2679 = vmatprep.subr.bf16.mxu0 0
        %2680 = vmatpush1.bf16.msra.mxu0 %v2640
        %2681 = vmatprep.subr.bf16.mxu0 0
        %2682 = vmatpush1.bf16.msra.mxu0 %v2641
        %2683 = vmatprep.subr.bf16.mxu0 0
        %2684 = vmatpush1.bf16.msra.mxu0 %v2642
        %2685 = vmatprep.subr.bf16.mxu0 0
        %2686 = vmatpush1.bf16.msra.mxu0 0
        %2687 = vmatprep.subr.bf16.mxu0 0
        %2688 = vmatpush1.bf16.msra.mxu0 0
        %2689 = vmatprep.subr.bf16.mxu0 0
        %2690 = vmatpush1.bf16.msra.mxu0 0
        %2691 = vmatprep.subr.bf16.mxu0 0
        %2692 = vmatpush1.bf16.msra.mxu0 0
        %2693 = vmatprep.subr.bf16.mxu0 0
        %2694 = vmatpush1.bf16.msra.mxu0 0
        %2695 = vmatprep.subr.bf16.mxu0 0
        %2696 = vmatpush1.bf16.msra.mxu0 0
        %2697 = vmatprep.subr.bf16.mxu0 0
        %2698 = vmatpush1.bf16.msra.mxu0 0
        %2699 = vmatprep.subr.bf16.mxu0 0
        %2700 = vmatpush1.bf16.msra.mxu0 0
        %2701 = vmatprep.subr.bf16.mxu0 0
        %2702 = vmatpush1.bf16.msra.mxu0 0
        %2703 = vmatprep.subr.bf16.mxu0 0
        %2704 = vmatpush1.bf16.msra.mxu0 0
        %2705 = vmatprep.mubr.bf16.mxu0 0
        %2706 = vmatmul.mubr.bf16.gmra.mrb[0].mxu0 %v2650
        %v2707 = vpop.f32.mrb[0].mxu0
        %v2708 = vadd.f32 0.0, %v2707
        %v2709 = vpop.f32.mrb[0].mxu0
        %v2710 = vpop.f32.mrb[0].mxu0
        %v2711 = vadd.f32 0.0, %v2710
        %v2712 = vpop.f32.mrb[0].mxu0
        %2713 = vmatprep.mubr.bf16.mxu0 0
        %2714 = vmatmul.mubr.bf16.gmra.mrb[0].mxu0 %v2653
        %v2715 = vpop.f32.mrb[0].mxu0
        %v2716 = vadd.f32 0.0, %v2715
        %v2717 = vpop.f32.mrb[0].mxu0
        %v2718 = vpop.f32.mrb[0].mxu0
        %v2719 = vadd.f32 0.0, %v2718
        %v2720 = vpop.f32.mrb[0].mxu0
        %2721 = vmatprep.mubr.bf16.mxu0 0
        %2722 = vmatmul.mubr.bf16.gmra.mrb[0].mxu0 %v2656
        %v2723 = vpop.f32.mrb[0].mxu0
        %v2724 = vadd.f32 0.0, %v2723
        %v2725 = vpop.f32.mrb[0].mxu0
        %v2726 = vpop.f32.mrb[0].mxu0
        %v2727 = vadd.f32 0.0, %v2726
        %v2728 = vpop.f32.mrb[0].mxu0
        %2729 = vmatprep.mubr.bf16.mxu0 0
        %2730 = vmatmul.mubr.bf16.gmra.mrb[0].mxu0 %v2659
        %v2731 = vpop.f32.mrb[0].mxu0
        %v2732 = vadd.f32 0.0, %v2731
        %v2733 = vpop.f32.mrb[0].mxu0
        %v2734 = vpop.f32.mrb[0].mxu0
        %v2735 = vadd.f32 0.0, %v2734
        %v2736 = vpop.f32.mrb[0].mxu0
        %2737 = vmatprep.mubr.bf16.mxu0 0
        %2738 = vmatmul.mubr.bf16.gmra.mrb[0].mxu0 %v2662
        %v2739 = vpop.f32.mrb[0].mxu0
        %v2740 = vadd.f32 0.0, %v2739
        %v2741 = vpop.f32.mrb[0].mxu0
        %v2742 = vpop.f32.mrb[0].mxu0
        %v2743 = vadd.f32 0.0, %v2742
        %v2744 = vpop.f32.mrb[0].mxu0
        %2745 = vmatprep.mubr.bf16.mxu0 0
        %2746 = vmatmul.mubr.bf16.gmra.mrb[0].mxu0 %v2665
        %v2747 = vpop.f32.mrb[0].mxu0
        %v2748 = vadd.f32 0.0, %v2747
        %v2749 = vpop.f32.mrb[0].mxu0
        %v2750 = vpop.f32.mrb[0].mxu0
        %v2751 = vadd.f32 0.0, %v2750
        %v2752 = vpop.f32.mrb[0].mxu0
        %2753 = vmatprep.mubr.bf16.mxu0 0
        %2754 = vmatmul.mubr.bf16.gmra.mrb[0].mxu0 %v2668
        %v2755 = vpop.f32.mrb[0].mxu0
        %v2756 = vadd.f32 0.0, %v2755
        %v2757 = vpop.f32.mrb[0].mxu0
        %v2758 = vpop.f32.mrb[0].mxu0
        %v2759 = vadd.f32 0.0, %v2758
        %v2760 = vpop.f32.mrb[0].mxu0
        %2761 = vmatprep.mubr.bf16.mxu0 0
        %2762 = vmatmul.mubr.bf16.gmra.mrb[0].mxu0 %v2671
        %v2763 = vpop.f32.mrb[0].mxu0
        %v2764 = vadd.f32 0.0, %v2763
        %v2765 = vpop.f32.mrb[0].mxu0
        %v2766 = vpop.f32.mrb[0].mxu0
        %v2767 = vadd.f32 0.0, %v2766
        %v2768 = vpop.f32.mrb[0].mxu0
        %2769 = vdwg.mxu0
        %v2770 = vadd.f32 %v2529, %v2708
        %v2771 = vadd.f32 %v2532, %v2711
        %v2772 = vadd.f32 %v2537, %v2716
        %v2773 = vadd.f32 %v2540, %v2719
        %v2774 = vadd.f32 %v2545, %v2724
        %v2775 = vadd.f32 %v2548, %v2727
        %v2776 = vadd.f32 %v2553, %v2732
        %v2777 = vadd.f32 %v2556, %v2735
        %v2778 = vadd.f32 %v2561, %v2740
        %v2779 = vadd.f32 %v2564, %v2743
        %v2780 = vadd.f32 %v2569, %v2748
        %v2781 = vadd.f32 %v2572, %v2751
        %v2782 = vadd.f32 %v2577, %v2756
        %v2783 = vadd.f32 %v2580, %v2759
        %v2784 = vadd.f32 %v2585, %v2764
        %v2785 = vadd.f32 %v2588, %v2767
        %v2786 = vld [vmem:[#allocation11] sm:$0x1]
        %v2788 = vlaneseq
        %v2789 = vshrl.u32 %v2788, 7
        %v2790 = vsub.s32 0, %v2789
        %v2791 = vrot.slane %v2786, %v2790
        %v2793 = vadd.f32 %v2770, %v2791
        %v2794 = vadd.f32 %v2771, %v2791
        %v2795 = vadd.f32 %v2772, %v2791
        %v2796 = vadd.f32 %v2773, %v2791
        %v2797 = vadd.f32 %v2774, %v2791
        %v2798 = vadd.f32 %v2775, %v2791
        %v2799 = vadd.f32 %v2776, %v2791
        %v2800 = vadd.f32 %v2777, %v2791
        %v2801 = vadd.f32 %v2778, %v2791
        %v2802 = vadd.f32 %v2779, %v2791
        %v2803 = vadd.f32 %v2780, %v2791
        %v2804 = vadd.f32 %v2781, %v2791
        %v2805 = vadd.f32 %v2782, %v2791
        %v2806 = vadd.f32 %v2783, %v2791
        %v2807 = vadd.f32 %v2784, %v2791
        %v2808 = vadd.f32 %v2785, %v2791
        %2809 = vst [vmem:[%s298] sm:$0xff] %v2793
        %2810 = vst [vmem:[%s298 + $0x8] sm:$0xff] %v2794
        %2811 = vst [vmem:[%s298 + $0x10] sm:$0xff] %v2795
        %2812 = vst [vmem:[%s298 + $0x18] sm:$0xff] %v2796
        %2813 = vst [vmem:[%s298 + $0x20] sm:$0xff] %v2797
        %2814 = vst [vmem:[%s298 + $0x28] sm:$0xff] %v2798
        %2815 = vst [vmem:[%s298 + $0x30] sm:$0xff] %v2799
        %2816 = vst [vmem:[%s298 + $0x38] sm:$0xff] %v2800
        %2817 = vst [vmem:[%s298 + $0x40] sm:$0xff] %v2801
        %2818 = vst [vmem:[%s298 + $0x48] sm:$0xff] %v2802
        %2819 = vst [vmem:[%s298 + $0x50] sm:$0xff] %v2803
        %2820 = vst [vmem:[%s298 + $0x58] sm:$0xff] %v2804
        %2821 = vst [vmem:[%s298 + $0x60] sm:$0xff] %v2805
        %2822 = vst [vmem:[%s298 + $0x68] sm:$0xff] %v2806
        %2823 = vst [vmem:[%s298 + $0x70] sm:$0xff] %v2807
        %2824 = vst [vmem:[%s298 + $0x78] sm:$0xff] %v2808
        %s2825 = scalar_lea.vmem [#allocation2], 64
        %v2826 = vld [vmem:[%s2825] sm:$0xff]
        %v2827 = vld [vmem:[%s2825 + $0x8] sm:$0xff]
        %v2828 = vld [vmem:[%s2825 + $0x10] sm:$0xff]
        %v2829 = vld [vmem:[%s2825 + $0x18] sm:$0xff]
        %v2830 = vld [vmem:[%s2825 + $0x20] sm:$0xff]
        %v2831 = vld [vmem:[%s2825 + $0x28] sm:$0xff]
        %v2832 = vld [vmem:[%s2825 + $0x30] sm:$0xff]
        %v2833 = vld [vmem:[%s2825 + $0x38] sm:$0xff]
        %v2834 = vld [vmem:[#allocation9] sm:$0xf]
        %v2835 = vld [vmem:[#allocation9 + $0x4] sm:$0xf]
        %v2836 = vld [vmem:[#allocation9 + $0x8] sm:$0xf]
        %v2837 = vld [vmem:[#allocation9 + $0xc] sm:$0xf]
        %v2838 = vld [vmem:[#allocation9 + $0x10] sm:$0xf]
        %v2839 = vld [vmem:[#allocation9 + $0x14] sm:$0xf]
        %v2840 = vld [vmem:[#allocation9 + $0x18] sm:$0xf]
        %v2841 = vld [vmem:[#allocation9 + $0x1c] sm:$0xf]
        %v2842 = vld [vmem:[#allocation9 + $0x20] sm:$0xf]
        %v2843 = vld [vmem:[#allocation9 + $0x24] sm:$0xf]
        %v2844 = vld [vmem:[#allocation9 + $0x28] sm:$0xf]
        %v2845 = vld [vmem:[#allocation9 + $0x2c] sm:$0xf]
        %s2846 = scalar_lea.vmem [#allocation2], 72
        %v2847 = vld [vmem:[%s2846] sm:$0xff]
        %v2848 = vld [vmem:[%s2846 + $0x8] sm:$0xff]
        %v2849 = vld [vmem:[%s2846 + $0x10] sm:$0xff]
        %v2850 = vld [vmem:[%s2846 + $0x18] sm:$0xff]
        %v2851 = vld [vmem:[%s2846 + $0x20] sm:$0xff]
        %v2852 = vld [vmem:[%s2846 + $0x28] sm:$0xff]
        %v2853 = vld [vmem:[%s2846 + $0x30] sm:$0xff]
        %v2854 = vld [vmem:[%s2846 + $0x38] sm:$0xff]
        %v2855 = vld [vmem:[%s2264] sm:$0xf]
        %v2856 = vld [vmem:[%s2264 + $0x4] sm:$0xf]
        %v2857 = vld [vmem:[%s2264 + $0x8] sm:$0xf]
        %v2858 = vld [vmem:[%s2264 + $0xc] sm:$0xf]
        %v2859 = vld [vmem:[%s2264 + $0x10] sm:$0xf]
        %v2860 = vld [vmem:[%s2264 + $0x14] sm:$0xf]
        %v2861 = vld [vmem:[%s2264 + $0x18] sm:$0xf]
        %v2862 = vld [vmem:[%s2264 + $0x1c] sm:$0xf]
        %v2863 = vld [vmem:[%s2264 + $0x20] sm:$0xf]
        %v2864 = vld [vmem:[%s2264 + $0x24] sm:$0xf]
        %v2865 = vld [vmem:[%s2264 + $0x28] sm:$0xf]
        %v2866 = vld [vmem:[%s2264 + $0x2c] sm:$0xf]
        %v2879 = vunpack.c.l.b16 %v2855
        %v2880 = vunpack.c.l.b16 %v2856
        %v2881 = vunpack.c.l.b16 %v2857
        %v2882 = vunpack.c.l.b16 %v2858
        %v2883 = vunpack.c.l.b16 %v2859
        %v2884 = vunpack.c.l.b16 %v2860
        %v2885 = vunpack.c.l.b16 %v2861
        %v2886 = vunpack.c.l.b16 %v2862
        %v2887 = vunpack.c.l.b16 %v2863
        %v2888 = vunpack.c.l.b16 %v2864
        %v2889 = vunpack.c.l.b16 %v2865
        %v2890 = vunpack.c.l.b16 %v2866
        %v2891 = vpack.c.b16 %v2880, %v2879
        %v2892 = vpack.c.b16 %v2882, %v2881
        %v2893 = vpack.c.b16 %v2884, %v2883
        %v2894 = vpack.c.b16 %v2886, %v2885
        %v2895 = vpack.c.b16 %v2888, %v2887
        %v2896 = vpack.c.b16 %v2890, %v2889
        %v2904 = vsel %vm300, %v2847, 0
        %v2907 = vsel %vm300, %v2848, 0
        %v2910 = vsel %vm300, %v2849, 0
        %v2913 = vsel %vm300, %v2850, 0
        %v2916 = vsel %vm300, %v2851, 0
        %v2919 = vsel %vm300, %v2852, 0
        %v2922 = vsel %vm300, %v2853, 0
        %v2925 = vsel %vm300, %v2854, 0
        %2927 = vmatprep.subr.bf16.mxu0 0
        %2928 = vmatpush1.bf16.msra.mxu0 %v2891
        %2929 = vmatprep.subr.bf16.mxu0 0
        %2930 = vmatpush1.bf16.msra.mxu0 %v2892
        %2931 = vmatprep.subr.bf16.mxu0 0
        %2932 = vmatpush1.bf16.msra.mxu0 %v2893
        %2933 = vmatprep.subr.bf16.mxu0 0
        %2934 = vmatpush1.bf16.msra.mxu0 %v2894
        %2935 = vmatprep.subr.bf16.mxu0 0
        %2936 = vmatpush1.bf16.msra.mxu0 %v2895
        %2937 = vmatprep.subr.bf16.mxu0 0
        %2938 = vmatpush1.bf16.msra.mxu0 %v2896
        %2939 = vmatprep.subr.bf16.mxu0 0
        %2940 = vmatpush1.bf16.msra.mxu0 0
        %2941 = vmatprep.subr.bf16.mxu0 0
        %2942 = vmatpush1.bf16.msra.mxu0 0
        %2943 = vmatprep.subr.bf16.mxu0 0
        %2944 = vmatpush1.bf16.msra.mxu0 0
        %2945 = vmatprep.subr.bf16.mxu0 0
        %2946 = vmatpush1.bf16.msra.mxu0 0
        %2947 = vmatprep.subr.bf16.mxu0 0
        %2948 = vmatpush1.bf16.msra.mxu0 0
        %2949 = vmatprep.subr.bf16.mxu0 0
        %2950 = vmatpush1.bf16.msra.mxu0 0
        %2951 = vmatprep.subr.bf16.mxu0 0
        %2952 = vmatpush1.bf16.msra.mxu0 0
        %2953 = vmatprep.subr.bf16.mxu0 0
        %2954 = vmatpush1.bf16.msra.mxu0 0
        %2955 = vmatprep.subr.bf16.mxu0 0
        %2956 = vmatpush1.bf16.msra.mxu0 0
        %2957 = vmatprep.subr.bf16.mxu0 0
        %2958 = vmatpush1.bf16.msra.mxu0 0
        %2959 = vmatprep.mubr.bf16.mxu0 0
        %2960 = vmatmul.mubr.bf16.gmra.mrb[0].mxu0 %v2904
        %v2961 = vpop.f32.mrb[0].mxu0
        %v2962 = vadd.f32 0.0, %v2961
        %v2963 = vpop.f32.mrb[0].mxu0
        %v2964 = vpop.f32.mrb[0].mxu0
        %v2965 = vadd.f32 0.0, %v2964
        %v2966 = vpop.f32.mrb[0].mxu0
        %2967 = vmatprep.mubr.bf16.mxu0 0
        %2968 = vmatmul.mubr.bf16.gmra.mrb[0].mxu0 %v2907
        %v2969 = vpop.f32.mrb[0].mxu0
        %v2970 = vadd.f32 0.0, %v2969
        %v2971 = vpop.f32.mrb[0].mxu0
        %v2972 = vpop.f32.mrb[0].mxu0
        %v2973 = vadd.f32 0.0, %v2972
        %v2974 = vpop.f32.mrb[0].mxu0
        %2975 = vmatprep.mubr.bf16.mxu0 0
        %2976 = vmatmul.mubr.bf16.gmra.mrb[0].mxu0 %v2910
        %v2977 = vpop.f32.mrb[0].mxu0
        %v2978 = vadd.f32 0.0, %v2977
        %v2979 = vpop.f32.mrb[0].mxu0
        %v2980 = vpop.f32.mrb[0].mxu0
        %v2981 = vadd.f32 0.0, %v2980
        %v2982 = vpop.f32.mrb[0].mxu0
        %2983 = vmatprep.mubr.bf16.mxu0 0
        %2984 = vmatmul.mubr.bf16.gmra.mrb[0].mxu0 %v2913
        %v2985 = vpop.f32.mrb[0].mxu0
        %v2986 = vadd.f32 0.0, %v2985
        %v2987 = vpop.f32.mrb[0].mxu0
        %v2988 = vpop.f32.mrb[0].mxu0
        %v2989 = vadd.f32 0.0, %v2988
        %v2990 = vpop.f32.mrb[0].mxu0
        %2991 = vmatprep.mubr.bf16.mxu0 0
        %2992 = vmatmul.mubr.bf16.gmra.mrb[0].mxu0 %v2916
        %v2993 = vpop.f32.mrb[0].mxu0
        %v2994 = vadd.f32 0.0, %v2993
        %v2995 = vpop.f32.mrb[0].mxu0
        %v2996 = vpop.f32.mrb[0].mxu0
        %v2997 = vadd.f32 0.0, %v2996
        %v2998 = vpop.f32.mrb[0].mxu0
        %2999 = vmatprep.mubr.bf16.mxu0 0
        %3000 = vmatmul.mubr.bf16.gmra.mrb[0].mxu0 %v2919
        %v3001 = vpop.f32.mrb[0].mxu0
        %v3002 = vadd.f32 0.0, %v3001
        %v3003 = vpop.f32.mrb[0].mxu0
        %v3004 = vpop.f32.mrb[0].mxu0
        %v3005 = vadd.f32 0.0, %v3004
        %v3006 = vpop.f32.mrb[0].mxu0
        %3007 = vmatprep.mubr.bf16.mxu0 0
        %3008 = vmatmul.mubr.bf16.gmra.mrb[0].mxu0 %v2922
        %v3009 = vpop.f32.mrb[0].mxu0
        %v3010 = vadd.f32 0.0, %v3009
        %v3011 = vpop.f32.mrb[0].mxu0
        %v3012 = vpop.f32.mrb[0].mxu0
        %v3013 = vadd.f32 0.0, %v3012
        %v3014 = vpop.f32.mrb[0].mxu0
        %3015 = vmatprep.mubr.bf16.mxu0 0
        %3016 = vmatmul.mubr.bf16.gmra.mrb[0].mxu0 %v2925
        %v3017 = vpop.f32.mrb[0].mxu0
        %v3018 = vadd.f32 0.0, %v3017
        %v3019 = vpop.f32.mrb[0].mxu0
        %v3020 = vpop.f32.mrb[0].mxu0
        %v3021 = vadd.f32 0.0, %v3020
        %v3022 = vpop.f32.mrb[0].mxu0
        %3023 = vdwg.mxu0
        %v3036 = vunpack.c.l.b16 %v2834
        %v3037 = vunpack.c.l.b16 %v2835
        %v3038 = vunpack.c.l.b16 %v2836
        %v3039 = vunpack.c.l.b16 %v2837
        %v3040 = vunpack.c.l.b16 %v2838
        %v3041 = vunpack.c.l.b16 %v2839
        %v3042 = vunpack.c.l.b16 %v2840
        %v3043 = vunpack.c.l.b16 %v2841
        %v3044 = vunpack.c.l.b16 %v2842
        %v3045 = vunpack.c.l.b16 %v2843
        %v3046 = vunpack.c.l.b16 %v2844
        %v3047 = vunpack.c.l.b16 %v2845
        %v3048 = vpack.c.b16 %v3037, %v3036
        %v3049 = vpack.c.b16 %v3039, %v3038
        %v3050 = vpack.c.b16 %v3041, %v3040
        %v3051 = vpack.c.b16 %v3043, %v3042
        %v3052 = vpack.c.b16 %v3045, %v3044
        %v3053 = vpack.c.b16 %v3047, %v3046
        %v3061 = vsel %vm300, %v2826, 0
        %v3064 = vsel %vm300, %v2827, 0
        %v3067 = vsel %vm300, %v2828, 0
        %v3070 = vsel %vm300, %v2829, 0
        %v3073 = vsel %vm300, %v2830, 0
        %v3076 = vsel %vm300, %v2831, 0
        %v3079 = vsel %vm300, %v2832, 0
        %v3082 = vsel %vm300, %v2833, 0
        %3084 = vmatprep.subr.bf16.mxu0 0
        %3085 = vmatpush1.bf16.msra.mxu0 %v3048
        %3086 = vmatprep.subr.bf16.mxu0 0
        %3087 = vmatpush1.bf16.msra.mxu0 %v3049
        %3088 = vmatprep.subr.bf16.mxu0 0
        %3089 = vmatpush1.bf16.msra.mxu0 %v3050
        %3090 = vmatprep.subr.bf16.mxu0 0
        %3091 = vmatpush1.bf16.msra.mxu0 %v3051
        %3092 = vmatprep.subr.bf16.mxu0 0
        %3093 = vmatpush1.bf16.msra.mxu0 %v3052
        %3094 = vmatprep.subr.bf16.mxu0 0
        %3095 = vmatpush1.bf16.msra.mxu0 %v3053
        %3096 = vmatprep.subr.bf16.mxu0 0
        %3097 = vmatpush1.bf16.msra.mxu0 0
        %3098 = vmatprep.subr.bf16.mxu0 0
        %3099 = vmatpush1.bf16.msra.mxu0 0
        %3100 = vmatprep.subr.bf16.mxu0 0
        %3101 = vmatpush1.bf16.msra.mxu0 0
        %3102 = vmatprep.subr.bf16.mxu0 0
        %3103 = vmatpush1.bf16.msra.mxu0 0
        %3104 = vmatprep.subr.bf16.mxu0 0
        %3105 = vmatpush1.bf16.msra.mxu0 0
        %3106 = vmatprep.subr.bf16.mxu0 0
        %3107 = vmatpush1.bf16.msra.mxu0 0
        %3108 = vmatprep.subr.bf16.mxu0 0
        %3109 = vmatpush1.bf16.msra.mxu0 0
        %3110 = vmatprep.subr.bf16.mxu0 0
        %3111 = vmatpush1.bf16.msra.mxu0 0
        %3112 = vmatprep.subr.bf16.mxu0 0
        %3113 = vmatpush1.bf16.msra.mxu0 0
        %3114 = vmatprep.subr.bf16.mxu0 0
        %3115 = vmatpush1.bf16.msra.mxu0 0
        %3116 = vmatprep.mubr.bf16.mxu0 0
        %3117 = vmatmul.mubr.bf16.gmra.mrb[0].mxu0 %v3061
        %v3118 = vpop.f32.mrb[0].mxu0
        %v3119 = vadd.f32 %v2962, %v3118
        %v3120 = vpop.f32.mrb[0].mxu0
        %v3121 = vpop.f32.mrb[0].mxu0
        %v3122 = vadd.f32 %v2965, %v3121
        %v3123 = vpop.f32.mrb[0].mxu0
        %3124 = vmatprep.mubr.bf16.mxu0 0
        %3125 = vmatmul.mubr.bf16.gmra.mrb[0].mxu0 %v3064
        %v3126 = vpop.f32.mrb[0].mxu0
        %v3127 = vadd.f32 %v2970, %v3126
        %v3128 = vpop.f32.mrb[0].mxu0
        %v3129 = vpop.f32.mrb[0].mxu0
        %v3130 = vadd.f32 %v2973, %v3129
        %v3131 = vpop.f32.mrb[0].mxu0
        %3132 = vmatprep.mubr.bf16.mxu0 0
        %3133 = vmatmul.mubr.bf16.gmra.mrb[0].mxu0 %v3067
        %v3134 = vpop.f32.mrb[0].mxu0
        %v3135 = vadd.f32 %v2978, %v3134
        %v3136 = vpop.f32.mrb[0].mxu0
        %v3137 = vpop.f32.mrb[0].mxu0
        %v3138 = vadd.f32 %v2981, %v3137
        %v3139 = vpop.f32.mrb[0].mxu0
        %3140 = vmatprep.mubr.bf16.mxu0 0
        %3141 = vmatmul.mubr.bf16.gmra.mrb[0].mxu0 %v3070
        %v3142 = vpop.f32.mrb[0].mxu0
        %v3143 = vadd.f32 %v2986, %v3142
        %v3144 = vpop.f32.mrb[0].mxu0
        %v3145 = vpop.f32.mrb[0].mxu0
        %v3146 = vadd.f32 %v2989, %v3145
        %v3147 = vpop.f32.mrb[0].mxu0
        %3148 = vmatprep.mubr.bf16.mxu0 0
        %3149 = vmatmul.mubr.bf16.gmra.mrb[0].mxu0 %v3073
        %v3150 = vpop.f32.mrb[0].mxu0
        %v3151 = vadd.f32 %v2994, %v3150
        %v3152 = vpop.f32.mrb[0].mxu0
        %v3153 = vpop.f32.mrb[0].mxu0
        %v3154 = vadd.f32 %v2997, %v3153
        %v3155 = vpop.f32.mrb[0].mxu0
        %3156 = vmatprep.mubr.bf16.mxu0 0
        %3157 = vmatmul.mubr.bf16.gmra.mrb[0].mxu0 %v3076
        %v3158 = vpop.f32.mrb[0].mxu0
        %v3159 = vadd.f32 %v3002, %v3158
        %v3160 = vpop.f32.mrb[0].mxu0
        %v3161 = vpop.f32.mrb[0].mxu0
        %v3162 = vadd.f32 %v3005, %v3161
        %v3163 = vpop.f32.mrb[0].mxu0
        %3164 = vmatprep.mubr.bf16.mxu0 0
        %3165 = vmatmul.mubr.bf16.gmra.mrb[0].mxu0 %v3079
        %v3166 = vpop.f32.mrb[0].mxu0
        %v3167 = vadd.f32 %v3010, %v3166
        %v3168 = vpop.f32.mrb[0].mxu0
        %v3169 = vpop.f32.mrb[0].mxu0
        %v3170 = vadd.f32 %v3013, %v3169
        %v3171 = vpop.f32.mrb[0].mxu0
        %3172 = vmatprep.mubr.bf16.mxu0 0
        %3173 = vmatmul.mubr.bf16.gmra.mrb[0].mxu0 %v3082
        %v3174 = vpop.f32.mrb[0].mxu0
        %v3175 = vadd.f32 %v3018, %v3174
        %v3176 = vpop.f32.mrb[0].mxu0
        %v3177 = vpop.f32.mrb[0].mxu0
        %v3178 = vadd.f32 %v3021, %v3177
        %v3179 = vpop.f32.mrb[0].mxu0
        %3180 = vdwg.mxu0
        %s3181 = scalar_lea.vmem [#allocation2], 80
        %v3182 = vld [vmem:[%s3181] sm:$0xff]
        %v3183 = vld [vmem:[%s3181 + $0x8] sm:$0xff]
        %v3184 = vld [vmem:[%s3181 + $0x10] sm:$0xff]
        %v3185 = vld [vmem:[%s3181 + $0x18] sm:$0xff]
        %v3186 = vld [vmem:[%s3181 + $0x20] sm:$0xff]
        %v3187 = vld [vmem:[%s3181 + $0x28] sm:$0xff]
        %v3188 = vld [vmem:[%s3181 + $0x30] sm:$0xff]
        %v3189 = vld [vmem:[%s3181 + $0x38] sm:$0xff]
        %v3190 = vld [vmem:[%s2600] sm:$0xf]
        %v3191 = vld [vmem:[%s2600 + $0x4] sm:$0xf]
        %v3192 = vld [vmem:[%s2600 + $0x8] sm:$0xf]
        %v3193 = vld [vmem:[%s2600 + $0xc] sm:$0xf]
        %v3194 = vld [vmem:[%s2600 + $0x10] sm:$0xf]
        %v3195 = vld [vmem:[%s2600 + $0x14] sm:$0xf]
        %v3196 = vld [vmem:[%s2600 + $0x18] sm:$0xf]
        %v3197 = vld [vmem:[%s2600 + $0x1c] sm:$0xf]
        %v3198 = vld [vmem:[%s2600 + $0x20] sm:$0xf]
        %v3199 = vld [vmem:[%s2600 + $0x24] sm:$0xf]
        %v3200 = vld [vmem:[%s2600 + $0x28] sm:$0xf]
        %v3201 = vld [vmem:[%s2600 + $0x2c] sm:$0xf]
        %v3214 = vunpack.c.l.b16 %v3190
        %v3215 = vunpack.c.l.b16 %v3191
        %v3216 = vunpack.c.l.b16 %v3192
        %v3217 = vunpack.c.l.b16 %v3193
        %v3218 = vunpack.c.l.b16 %v3194
        %v3219 = vunpack.c.l.b16 %v3195
        %v3220 = vunpack.c.l.b16 %v3196
        %v3221 = vunpack.c.l.b16 %v3197
        %v3222 = vunpack.c.l.b16 %v3198
        %v3223 = vunpack.c.l.b16 %v3199
        %v3224 = vunpack.c.l.b16 %v3200
        %v3225 = vunpack.c.l.b16 %v3201
        %v3226 = vpack.c.b16 %v3215, %v3214
        %v3227 = vpack.c.b16 %v3217, %v3216
        %v3228 = vpack.c.b16 %v3219, %v3218
        %v3229 = vpack.c.b16 %v3221, %v3220
        %v3230 = vpack.c.b16 %v3223, %v3222
        %v3231 = vpack.c.b16 %v3225, %v3224
        %v3239 = vsel %vm300, %v3182, 0
        %v3242 = vsel %vm300, %v3183, 0
        %v3245 = vsel %vm300, %v3184, 0
        %v3248 = vsel %vm300, %v3185, 0
        %v3251 = vsel %vm300, %v3186, 0
        %v3254 = vsel %vm300, %v3187, 0
        %v3257 = vsel %vm300, %v3188, 0
        %v3260 = vsel %vm300, %v3189, 0
        %3262 = vmatprep.subr.bf16.mxu0 0
        %3263 = vmatpush1.bf16.msra.mxu0 %v3226
        %3264 = vmatprep.subr.bf16.mxu0 0
        %3265 = vmatpush1.bf16.msra.mxu0 %v3227
        %3266 = vmatprep.subr.bf16.mxu0 0
        %3267 = vmatpush1.bf16.msra.mxu0 %v3228
        %3268 = vmatprep.subr.bf16.mxu0 0
        %3269 = vmatpush1.bf16.msra.mxu0 %v3229
        %3270 = vmatprep.subr.bf16.mxu0 0
        %3271 = vmatpush1.bf16.msra.mxu0 %v3230
        %3272 = vmatprep.subr.bf16.mxu0 0
        %3273 = vmatpush1.bf16.msra.mxu0 %v3231
        %3274 = vmatprep.subr.bf16.mxu0 0
        %3275 = vmatpush1.bf16.msra.mxu0 0
        %3276 = vmatprep.subr.bf16.mxu0 0
        %3277 = vmatpush1.bf16.msra.mxu0 0
        %3278 = vmatprep.subr.bf16.mxu0 0
        %3279 = vmatpush1.bf16.msra.mxu0 0
        %3280 = vmatprep.subr.bf16.mxu0 0
        %3281 = vmatpush1.bf16.msra.mxu0 0
        %3282 = vmatprep.subr.bf16.mxu0 0
        %3283 = vmatpush1.bf16.msra.mxu0 0
        %3284 = vmatprep.subr.bf16.mxu0 0
        %3285 = vmatpush1.bf16.msra.mxu0 0
        %3286 = vmatprep.subr.bf16.mxu0 0
        %3287 = vmatpush1.bf16.msra.mxu0 0
        %3288 = vmatprep.subr.bf16.mxu0 0
        %3289 = vmatpush1.bf16.msra.mxu0 0
        %3290 = vmatprep.subr.bf16.mxu0 0
        %3291 = vmatpush1.bf16.msra.mxu0 0
        %3292 = vmatprep.subr.bf16.mxu0 0
        %3293 = vmatpush1.bf16.msra.mxu0 0
        %3294 = vmatprep.mubr.bf16.mxu0 0
        %3295 = vmatmul.mubr.bf16.gmra.mrb[0].mxu0 %v3239
        %v3296 = vpop.f32.mrb[0].mxu0
        %v3297 = vadd.f32 0.0, %v3296
        %v3298 = vpop.f32.mrb[0].mxu0
        %v3299 = vpop.f32.mrb[0].mxu0
        %v3300 = vadd.f32 0.0, %v3299
        %v3301 = vpop.f32.mrb[0].mxu0
        %3302 = vmatprep.mubr.bf16.mxu0 0
        %3303 = vmatmul.mubr.bf16.gmra.mrb[0].mxu0 %v3242
        %v3304 = vpop.f32.mrb[0].mxu0
        %v3305 = vadd.f32 0.0, %v3304
        %v3306 = vpop.f32.mrb[0].mxu0
        %v3307 = vpop.f32.mrb[0].mxu0
        %v3308 = vadd.f32 0.0, %v3307
        %v3309 = vpop.f32.mrb[0].mxu0
        %3310 = vmatprep.mubr.bf16.mxu0 0
        %3311 = vmatmul.mubr.bf16.gmra.mrb[0].mxu0 %v3245
        %v3312 = vpop.f32.mrb[0].mxu0
        %v3313 = vadd.f32 0.0, %v3312
        %v3314 = vpop.f32.mrb[0].mxu0
        %v3315 = vpop.f32.mrb[0].mxu0
        %v3316 = vadd.f32 0.0, %v3315
        %v3317 = vpop.f32.mrb[0].mxu0
        %3318 = vmatprep.mubr.bf16.mxu0 0
        %3319 = vmatmul.mubr.bf16.gmra.mrb[0].mxu0 %v3248
        %v3320 = vpop.f32.mrb[0].mxu0
        %v3321 = vadd.f32 0.0, %v3320
        %v3322 = vpop.f32.mrb[0].mxu0
        %v3323 = vpop.f32.mrb[0].mxu0
        %v3324 = vadd.f32 0.0, %v3323
        %v3325 = vpop.f32.mrb[0].mxu0
        %3326 = vmatprep.mubr.bf16.mxu0 0
        %3327 = vmatmul.mubr.bf16.gmra.mrb[0].mxu0 %v3251
        %v3328 = vpop.f32.mrb[0].mxu0
        %v3329 = vadd.f32 0.0, %v3328
        %v3330 = vpop.f32.mrb[0].mxu0
        %v3331 = vpop.f32.mrb[0].mxu0
        %v3332 = vadd.f32 0.0, %v3331
        %v3333 = vpop.f32.mrb[0].mxu0
        %3334 = vmatprep.mubr.bf16.mxu0 0
        %3335 = vmatmul.mubr.bf16.gmra.mrb[0].mxu0 %v3254
        %v3336 = vpop.f32.mrb[0].mxu0
        %v3337 = vadd.f32 0.0, %v3336
        %v3338 = vpop.f32.mrb[0].mxu0
        %v3339 = vpop.f32.mrb[0].mxu0
        %v3340 = vadd.f32 0.0, %v3339
        %v3341 = vpop.f32.mrb[0].mxu0
        %3342 = vmatprep.mubr.bf16.mxu0 0
        %3343 = vmatmul.mubr.bf16.gmra.mrb[0].mxu0 %v3257
        %v3344 = vpop.f32.mrb[0].mxu0
        %v3345 = vadd.f32 0.0, %v3344
        %v3346 = vpop.f32.mrb[0].mxu0
        %v3347 = vpop.f32.mrb[0].mxu0
        %v3348 = vadd.f32 0.0, %v3347
        %v3349 = vpop.f32.mrb[0].mxu0
        %3350 = vmatprep.mubr.bf16.mxu0 0
        %3351 = vmatmul.mubr.bf16.gmra.mrb[0].mxu0 %v3260
        %v3352 = vpop.f32.mrb[0].mxu0
        %v3353 = vadd.f32 0.0, %v3352
        %v3354 = vpop.f32.mrb[0].mxu0
        %v3355 = vpop.f32.mrb[0].mxu0
        %v3356 = vadd.f32 0.0, %v3355
        %v3357 = vpop.f32.mrb[0].mxu0
        %3358 = vdwg.mxu0
        %v3359 = vadd.f32 %v3119, %v3297
        %v3360 = vadd.f32 %v3122, %v3300
        %v3361 = vadd.f32 %v3127, %v3305
        %v3362 = vadd.f32 %v3130, %v3308
        %v3363 = vadd.f32 %v3135, %v3313
        %v3364 = vadd.f32 %v3138, %v3316
        %v3365 = vadd.f32 %v3143, %v3321
        %v3366 = vadd.f32 %v3146, %v3324
        %v3367 = vadd.f32 %v3151, %v3329
        %v3368 = vadd.f32 %v3154, %v3332
        %v3369 = vadd.f32 %v3159, %v3337
        %v3370 = vadd.f32 %v3162, %v3340
        %v3371 = vadd.f32 %v3167, %v3345
        %v3372 = vadd.f32 %v3170, %v3348
        %v3373 = vadd.f32 %v3175, %v3353
        %v3374 = vadd.f32 %v3178, %v3356
        %v3375 = vld [vmem:[#allocation11] sm:$0x1]
        %v3377 = vlaneseq
        %v3378 = vshrl.u32 %v3377, 7
        %v3379 = vsub.s32 0, %v3378
        %v3380 = vrot.slane %v3375, %v3379
        %v3382 = vadd.f32 %v3359, %v3380
        %v3383 = vadd.f32 %v3360, %v3380
        %v3384 = vadd.f32 %v3361, %v3380
        %v3385 = vadd.f32 %v3362, %v3380
        %v3386 = vadd.f32 %v3363, %v3380
        %v3387 = vadd.f32 %v3364, %v3380
        %v3388 = vadd.f32 %v3365, %v3380
        %v3389 = vadd.f32 %v3366, %v3380
        %v3390 = vadd.f32 %v3367, %v3380
        %v3391 = vadd.f32 %v3368, %v3380
        %v3392 = vadd.f32 %v3369, %v3380
        %v3393 = vadd.f32 %v3370, %v3380
        %v3394 = vadd.f32 %v3371, %v3380
        %v3395 = vadd.f32 %v3372, %v3380
        %v3396 = vadd.f32 %v3373, %v3380
        %v3397 = vadd.f32 %v3374, %v3380
        %s3398 = scalar_lea.vmem %s298, 128 [#allocation12]
        %3399 = vst [vmem:[%s3398] sm:$0xff] %v3382
        %3400 = vst [vmem:[%s3398 + $0x8] sm:$0xff] %v3383
        %3401 = vst [vmem:[%s3398 + $0x10] sm:$0xff] %v3384
        %3402 = vst [vmem:[%s3398 + $0x18] sm:$0xff] %v3385
        %3403 = vst [vmem:[%s3398 + $0x20] sm:$0xff] %v3386
        %3404 = vst [vmem:[%s3398 + $0x28] sm:$0xff] %v3387
        %3405 = vst [vmem:[%s3398 + $0x30] sm:$0xff] %v3388
        %3406 = vst [vmem:[%s3398 + $0x38] sm:$0xff] %v3389
        %3407 = vst [vmem:[%s3398 + $0x40] sm:$0xff] %v3390
        %3408 = vst [vmem:[%s3398 + $0x48] sm:$0xff] %v3391
        %3409 = vst [vmem:[%s3398 + $0x50] sm:$0xff] %v3392
        %3410 = vst [vmem:[%s3398 + $0x58] sm:$0xff] %v3393
        %3411 = vst [vmem:[%s3398 + $0x60] sm:$0xff] %v3394
        %3412 = vst [vmem:[%s3398 + $0x68] sm:$0xff] %v3395
        %3413 = vst [vmem:[%s3398 + $0x70] sm:$0xff] %v3396
        %3414 = vst [vmem:[%s3398 + $0x78] sm:$0xff] %v3397
        %s3415 = sand.u32 %s142, 1
        %s3416 = scalar_lea.sflag [#allocation5], %s3415
        %s3417 = sand.u32 %s142, 1
        %s3418 = smul.addr %s3417, 256
        %s3419 = scalar_lea.vmem [#allocation12], %s3418
        // Predicated region
        $region68: #{retina_reg_head_forward.1} parent=39 // pred_check
          %p3420 = pneg %p152
        $region69: #{retina_reg_head_forward.1} parent=39 // pred_check_branch
          %3422 = sbr.rel (%p3420) target = $region71
        $region70: #{retina_reg_head_forward.1} parent=39 // pred_region
          %s3424 = ssub.s32 4096, 4096
          %3425 = vsyncadd %s3416, %s3424
          %s3426 = smul.addr %s24, 32
          %s3427 = smul.addr %s3426, 128
          %s3428 = scalar_lea.hbm %s5, %s3427
          %s3429 = sshll.u32 %s3419, 4
          %s3430 = int_to_ptr.vmem [resolvable:$true] %s3429
          %3435 = dma.vmem_to_hbm [thread:$0]  %s3430, 4096, %s3428, %s3416, 128, 128, 8
        $region71: #{retina_reg_head_forward.1} parent=39 // pred_fallthru
          _
      $region40: #{retina_reg_head_forward.1} parent=5 // pred_fallthru
        _
      %p3436 = scmp.le.s32.totalorder 2, %s19
      // Predicated region
      $region72: #{retina_reg_head_forward.1} parent=5 // pred_check
        %p3437 = pneg %p3436
      $region73: #{retina_reg_head_forward.1} parent=5 // pred_check_branch
        %3439 = sbr.rel (%p3437) target = $region75
      $region74: #{retina_reg_head_forward.1} parent=5 // pred_region
        %s3440 = ssub.s32 %s19, 2
        // Predicated region
        $region76: #{retina_reg_head_forward.1} parent=74 // pred_check
          %p3441 = pneg %p158
        $region77: #{retina_reg_head_forward.1} parent=74 // pred_check_branch
          %3443 = sbr.rel (%p3441) target = $region79
        $region78: #{retina_reg_head_forward.1} parent=74 // pred_region
          %s3444 = sand.u32 %s143, 1
          %s3445 = scalar_lea.sflag [#allocation5], %s3444
          %s3446 = sand.u32 %s143, 1
          %s3447 = smul.addr %s3446, 256
          %s3448 = scalar_lea.vmem [#allocation12], %s3447
          %3449 = dma.done %s3445, 4096
        $region79: #{retina_reg_head_forward.1} parent=74 // pred_fallthru
          _
      $region75: #{retina_reg_head_forward.1} parent=5 // pred_fallthru
        _
    $region6: #{retina_reg_head_forward.1} parent=1 // loop_footer
      %s23 = sadd.s32 1, %s19
    $region7: #{retina_reg_head_forward.1} parent=1 // loop_footer_branch
      %18 = sbr.rel target = $region3
    $region8: #{retina_reg_head_forward.1} parent=1 // loop_exit
      _
    %3450 = vsyncpa [#allocation4], 1
    %s3451 = scalar_lea.sflag [#allocation4], 1
    %3452 = vsyncpa %s3451, 1
    %3453 = vsyncpa [#allocation7], 1
    %3454 = vsyncpa [#allocation10], 1
    %3455 = vsyncpa [#allocation5], 1
    %s3456 = scalar_lea.sflag [#allocation5], 1
    %3457 = vsyncpa %s3456, 1

</llo_original>
